<compile_context>
chip_gen: v6e
topology: v6e:2x2x1
jax: 0.10.0
libtpu: 0.0.40
codegen_flags: <defaults>
</compile_context>

<pallas_src>
import jax
import jax.numpy as jnp
from jax.experimental import pallas as pl
from jax.experimental.pallas import tpu as pltpu

DIMS = [3072, 512, 256, 128, 64, 10]
NUM_CLASSES = 10
PADDED_CLASSES = 128       # lane-dense output width (multiple of 128)
PAD_BIAS = -1.0e30         # pad-lane bias -> exp underflows to exactly 0


def mlp_kernel(x_ref,
               w1_ref, b1_ref,
               w3_ref, b3_ref,
               w5_ref, b5_ref,
               w7_ref, b7_ref,
               w8_ref, b8_ref,
               o_ref):
    # x arrives as bf16 (cast in the wrapper). All matmuls take bf16 operands
    # and accumulate in f32 on the MXU; bias/ReLU/log_softmax run in f32.
    h = x_ref[...]

    h = jnp.dot(h, w1_ref[...], preferred_element_type=jnp.float32) + b1_ref[...]
    h = jnp.maximum(h, 0.0).astype(jnp.bfloat16)

    h = jnp.dot(h, w3_ref[...], preferred_element_type=jnp.float32) + b3_ref[...]
    h = jnp.maximum(h, 0.0).astype(jnp.bfloat16)

    h = jnp.dot(h, w5_ref[...], preferred_element_type=jnp.float32) + b5_ref[...]
    h = jnp.maximum(h, 0.0).astype(jnp.bfloat16)

    h = jnp.dot(h, w7_ref[...], preferred_element_type=jnp.float32) + b7_ref[...]
    h = jnp.maximum(h, 0.0).astype(jnp.bfloat16)

    # fc8: weight columns zero-padded 10 -> 128; pad-lane bias entries are
    # -1e30, so pad logits are ~-1e30 and contribute exp(...) == 0 below.
    logits = jnp.dot(h, w8_ref[...], preferred_element_type=jnp.float32) + b8_ref[...]

    # log_softmax along the (padded) class dimension.
    m = jnp.max(logits, axis=-1, keepdims=True)
    z = logits - m
    lse = jnp.log(jnp.sum(jnp.exp(z), axis=-1, keepdims=True))
    o_ref[...] = (z - lse).astype(o_ref.dtype)


def _round_up(n, m):
    return ((n + m - 1) // m) * m


def _tpu_defaults():
    """(default_tb, vmem_limit_bytes, is_v7x) chosen per TPU generation."""
    try:
        kind = jax.devices()[0].device_kind.lower()
    except Exception:  # pragma: no cover - defensive
        kind = ""
    if "v7" in kind:
        # v7x: 64 MiB VMEM per TensorCore -> smaller tiles, modest VMEM cap.
        return 256, 48 << 20, True
    # v5e / v6e: 128 MiB VMEM -> bigger tiles amortize per-step overhead.
    return 512, 64 << 20, False


def mlp_forward(x, params, *, tb=None, vmem_limit_bytes=None):
    """x: (B, 3072) float array. params: list of (W, b) with W shaped (in, out)."""
    B, D = x.shape
    assert D == DIMS[0], f"expected {DIMS[0]} input features, got {D}"

    default_tb, default_vmem, is_v7x = _tpu_defaults()
    if tb is None:
        tb = default_tb
    if vmem_limit_bytes is None:
        vmem_limit_bytes = default_vmem

    # Clamp the batch tile to the (rounded-up) batch. Multiple of 16 because
    # bf16 packs 16 sublanes per vreg.
    tb = min(tb, max(16, _round_up(B, 16)))
    # v7x has 2 TensorCores: prefer >= 2 batch tiles so both get work.
    if is_v7x and pl.cdiv(B, tb) < 2 and tb >= 32:
        tb = _round_up(tb // 2, 16)

    b_pad = pl.cdiv(B, tb) * tb
    x = x.astype(jnp.bfloat16)          # bf16 MXU input, halves x HBM traffic
    if b_pad != B:
        x = jnp.pad(x, ((0, b_pad - B), (0, 0)))

    flat_params = []
    in_specs = [pl.BlockSpec((tb, DIMS[0]), lambda i: (i, 0))]  # x: tiled over batch
    n_layers = len(params)
    for li, (w, b) in enumerate(params):
        fan_in, fan_out = w.shape
        if li == n_layers - 1:
            # Lane-dense last layer: zero-pad weight columns, pad the bias
            # with a large negative constant so pad lanes vanish in softmax.
            w = jnp.pad(w, ((0, 0), (0, PADDED_CLASSES - fan_out)))
            b = jnp.pad(b, ((0, PADDED_CLASSES - fan_out),),
                        constant_values=PAD_BIAS)
            fan_out = PADDED_CLASSES
        flat_params.append(w.astype(jnp.bfloat16))          # bf16 weights
        flat_params.append(b.astype(jnp.float32).reshape(1, fan_out))  # f32 bias row
        # Constant index_map + single-buffered: weights/biases stay resident
        # in VMEM across batch tiles without a useless second buffer.
        in_specs.append(pl.BlockSpec((fan_in, fan_out), lambda i: (0, 0),
                                     pipeline_mode=pl.Buffered(1)))
        in_specs.append(pl.BlockSpec((1, fan_out), lambda i: (0, 0),
                                     pipeline_mode=pl.Buffered(1)))

    out = pl.pallas_call(
        mlp_kernel,
        out_shape=jax.ShapeDtypeStruct((b_pad, PADDED_CLASSES), jnp.float32),
        grid=(b_pad // tb,),
        in_specs=in_specs,
        out_specs=pl.BlockSpec((tb, PADDED_CLASSES), lambda i: (i, 0)),
        compiler_params=pltpu.CompilerParams(
            dimension_semantics=("parallel",),
            vmem_limit_bytes=vmem_limit_bytes,
        ),
    )(x, *flat_params)

    return out[:B, :NUM_CLASSES]


def init_params(key):
    """Deterministic init matching nn.Linear shapes (weights stored transposed)."""
    params = []
    for i in range(len(DIMS) - 1):
        fan_in, fan_out = DIMS[i], DIMS[i + 1]
        key, kw, kb = jax.random.split(key, 3)
        bound = 1.0 / jnp.sqrt(fan_in)
        w = jax.random.uniform(kw, (fan_in, fan_out), jnp.float32, -bound, bound)
        b = jax.random.uniform(kb, (fan_out,), jnp.float32, -bound, bound)
        params.append((w, b))
    return params


def reference_forward(x, params):
    """Pure-JAX f32 reference (same math as the PyTorch module)."""
    h = x
    for i, (w, b) in enumerate(params):
        h = h @ w + b
        if i < len(params) - 1:
            h = jnp.maximum(h, 0.0)
    return jax.nn.log_softmax(h, axis=1)


if __name__ == "__main__":
    key = jax.random.PRNGKey(0)
    key, kx = jax.random.split(key)

    # Small batch; input is the flattened (3, 32, 32) = 3072-feature vector.
    B = 8
    x_nchw = jax.random.normal(kx, (B, 3, 32, 32), jnp.float32)
    x = x_nchw.reshape(B, -1)  # x.view(x.shape[0], -1)

    params = init_params(key)

    out = mlp_forward(x, params)
    out = jax.block_until_ready(out)

    ref = reference_forward(x, params)
    assert out.shape == (B, NUM_CLASSES)
    # bf16 matmul inputs (f32 accumulation) -> looser tolerance than pure f32.
    assert jnp.allclose(out, ref, atol=5e-2, rtol=5e-2), "mismatch vs reference"
    # log_softmax rows must exponentiate to 1.
    assert jnp.allclose(jnp.sum(jnp.exp(out), axis=1), 1.0, atol=1e-3)

    # Also exercise a batch that is not a multiple of the tile size.
    key, kx2 = jax.random.split(key)
    B2 = 37
    x2 = jax.random.normal(kx2, (B2, 3072), jnp.float32)
    out2 = jax.block_until_ready(mlp_forward(x2, params))
    ref2 = reference_forward(x2, params)
    assert out2.shape == (B2, NUM_CLASSES)
    assert jnp.allclose(out2, ref2, atol=5e-2, rtol=5e-2), "mismatch vs reference (B=37)"

    print("KERNEL_OK")
</pallas_src>

<mosaic_0001>
module attributes {stable_mosaic.version = 11 : i64} {
  func.func @mlp_kernel(%arg0: i32, %arg1: memref<16x3072xbf16, #tpu.memory_space<vmem>>, %arg2: memref<3072x512xbf16, #tpu.memory_space<vmem>>, %arg3: memref<1x512xf32, #tpu.memory_space<vmem>>, %arg4: memref<512x256xbf16, #tpu.memory_space<vmem>>, %arg5: memref<1x256xf32, #tpu.memory_space<vmem>>, %arg6: memref<256x128xbf16, #tpu.memory_space<vmem>>, %arg7: memref<1x128xf32, #tpu.memory_space<vmem>>, %arg8: memref<128x64xbf16, #tpu.memory_space<vmem>>, %arg9: memref<1x64xf32, #tpu.memory_space<vmem>>, %arg10: memref<64x128xbf16, #tpu.memory_space<vmem>>, %arg11: memref<1x128xf32, #tpu.memory_space<vmem>>, %arg12: memref<16x128xf32, #tpu.memory_space<vmem>>) attributes {dimension_semantics = [#tpu.dimension_semantics<parallel>], iteration_bounds = array<i64: 1>, scalar_prefetch = 0 : i64, scratch_operands = 0 : i64, tpu.core_type = #tpu.core_type<tc>, window_params = [{transform_indices = @transform_0, window_bounds = array<i64: 16, 3072>}, {pipeline_mode = #tpu.pipeline_mode<synchronous>, transform_indices = @transform_1, window_bounds = array<i64: 3072, 512>}, {pipeline_mode = #tpu.pipeline_mode<synchronous>, transform_indices = @transform_2, window_bounds = array<i64: 1, 512>}, {pipeline_mode = #tpu.pipeline_mode<synchronous>, transform_indices = @transform_3, window_bounds = array<i64: 512, 256>}, {pipeline_mode = #tpu.pipeline_mode<synchronous>, transform_indices = @transform_4, window_bounds = array<i64: 1, 256>}, {pipeline_mode = #tpu.pipeline_mode<synchronous>, transform_indices = @transform_5, window_bounds = array<i64: 256, 128>}, {pipeline_mode = #tpu.pipeline_mode<synchronous>, transform_indices = @transform_6, window_bounds = array<i64: 1, 128>}, {pipeline_mode = #tpu.pipeline_mode<synchronous>, transform_indices = @transform_7, window_bounds = array<i64: 128, 64>}, {pipeline_mode = #tpu.pipeline_mode<synchronous>, transform_indices = @transform_8, window_bounds = array<i64: 1, 64>}, {pipeline_mode = #tpu.pipeline_mode<synchronous>, transform_indices = @transform_9, window_bounds = array<i64: 64, 128>}, {pipeline_mode = #tpu.pipeline_mode<synchronous>, transform_indices = @transform_10, window_bounds = array<i64: 1, 128>}, {transform_indices = @transform_11, window_bounds = array<i64: 16, 128>}]} {
    %c0 = arith.constant 0 : index
    %c0_0 = arith.constant 0 : index
    %0 = vector.load %arg1[%c0, %c0_0] : memref<16x3072xbf16, #tpu.memory_space<vmem>>, vector<16x3072xbf16>
    %c0_1 = arith.constant 0 : index
    %c0_2 = arith.constant 0 : index
    %1 = vector.load %arg2[%c0_1, %c0_2] : memref<3072x512xbf16, #tpu.memory_space<vmem>>, vector<3072x512xbf16>
    %cst = arith.constant dense<0.000000e+00> : vector<16x512xf32>
    %2 = tpu.matmul %0, %1, %cst {dimension_numbers = #tpu.dot_dimension_numbers<[1], [0], [0], [1], [0, 0, 1, 1], [], []>} : vector<16x3072xbf16>, vector<3072x512xbf16>, vector<16x512xf32> -> vector<16x512xf32>
    %c0_3 = arith.constant 0 : index
    %c0_4 = arith.constant 0 : index
    %3 = vector.load %arg3[%c0_3, %c0_4] : memref<1x512xf32, #tpu.memory_space<vmem>>, vector<1x512xf32>
    %4 = vector.broadcast %3 : vector<1x512xf32> to vector<16x512xf32>
    %5 = arith.addf %2, %4 : vector<16x512xf32>
    %cst_5 = arith.constant 0.000000e+00 : f32
    %6 = vector.broadcast %cst_5 : f32 to vector<16x512xf32>
    %7 = arith.maximumf %5, %6 : vector<16x512xf32>
    %8 = arith.truncf %7 : vector<16x512xf32> to vector<16x512xbf16>
    %c0_6 = arith.constant 0 : index
    %c0_7 = arith.constant 0 : index
    %9 = vector.load %arg4[%c0_6, %c0_7] : memref<512x256xbf16, #tpu.memory_space<vmem>>, vector<512x256xbf16>
    %cst_8 = arith.constant dense<0.000000e+00> : vector<16x256xf32>
    %10 = tpu.matmul %8, %9, %cst_8 {dimension_numbers = #tpu.dot_dimension_numbers<[1], [0], [0], [1], [0, 0, 1, 1], [], []>} : vector<16x512xbf16>, vector<512x256xbf16>, vector<16x256xf32> -> vector<16x256xf32>
    %c0_9 = arith.constant 0 : index
    %c0_10 = arith.constant 0 : index
    %11 = vector.load %arg5[%c0_9, %c0_10] : memref<1x256xf32, #tpu.memory_space<vmem>>, vector<1x256xf32>
    %12 = vector.broadcast %11 : vector<1x256xf32> to vector<16x256xf32>
    %13 = arith.addf %10, %12 : vector<16x256xf32>
    %cst_11 = arith.constant 0.000000e+00 : f32
    %14 = vector.broadcast %cst_11 : f32 to vector<16x256xf32>
    %15 = arith.maximumf %13, %14 : vector<16x256xf32>
    %16 = arith.truncf %15 : vector<16x256xf32> to vector<16x256xbf16>
    %c0_12 = arith.constant 0 : index
    %c0_13 = arith.constant 0 : index
    %17 = vector.load %arg6[%c0_12, %c0_13] : memref<256x128xbf16, #tpu.memory_space<vmem>>, vector<256x128xbf16>
    %cst_14 = arith.constant dense<0.000000e+00> : vector<16x128xf32>
    %18 = tpu.matmul %16, %17, %cst_14 {dimension_numbers = #tpu.dot_dimension_numbers<[1], [0], [0], [1], [0, 0, 1, 1], [], []>} : vector<16x256xbf16>, vector<256x128xbf16>, vector<16x128xf32> -> vector<16x128xf32>
    %c0_15 = arith.constant 0 : index
    %c0_16 = arith.constant 0 : index
    %19 = vector.load %arg7[%c0_15, %c0_16] : memref<1x128xf32, #tpu.memory_space<vmem>>, vector<1x128xf32>
    %20 = vector.broadcast %19 : vector<1x128xf32> to vector<16x128xf32>
    %21 = arith.addf %18, %20 : vector<16x128xf32>
    %cst_17 = arith.constant 0.000000e+00 : f32
    %22 = vector.broadcast %cst_17 : f32 to vector<16x128xf32>
    %23 = arith.maximumf %21, %22 : vector<16x128xf32>
    %24 = arith.truncf %23 : vector<16x128xf32> to vector<16x128xbf16>
    %c0_18 = arith.constant 0 : index
    %c0_19 = arith.constant 0 : index
    %25 = vector.load %arg8[%c0_18, %c0_19] : memref<128x64xbf16, #tpu.memory_space<vmem>>, vector<128x64xbf16>
    %cst_20 = arith.constant dense<0.000000e+00> : vector<16x64xf32>
    %26 = tpu.matmul %24, %25, %cst_20 {dimension_numbers = #tpu.dot_dimension_numbers<[1], [0], [0], [1], [0, 0, 1, 1], [], []>} : vector<16x128xbf16>, vector<128x64xbf16>, vector<16x64xf32> -> vector<16x64xf32>
    %c0_21 = arith.constant 0 : index
    %c0_22 = arith.constant 0 : index
    %27 = vector.load %arg9[%c0_21, %c0_22] : memref<1x64xf32, #tpu.memory_space<vmem>>, vector<1x64xf32>
    %28 = vector.broadcast %27 : vector<1x64xf32> to vector<16x64xf32>
    %29 = arith.addf %26, %28 : vector<16x64xf32>
    %cst_23 = arith.constant 0.000000e+00 : f32
    %30 = vector.broadcast %cst_23 : f32 to vector<16x64xf32>
    %31 = arith.maximumf %29, %30 : vector<16x64xf32>
    %32 = arith.truncf %31 : vector<16x64xf32> to vector<16x64xbf16>
    %c0_24 = arith.constant 0 : index
    %c0_25 = arith.constant 0 : index
    %33 = vector.load %arg10[%c0_24, %c0_25] : memref<64x128xbf16, #tpu.memory_space<vmem>>, vector<64x128xbf16>
    %cst_26 = arith.constant dense<0.000000e+00> : vector<16x128xf32>
    %34 = tpu.matmul %32, %33, %cst_26 {dimension_numbers = #tpu.dot_dimension_numbers<[1], [0], [0], [1], [0, 0, 1, 1], [], []>} : vector<16x64xbf16>, vector<64x128xbf16>, vector<16x128xf32> -> vector<16x128xf32>
    %c0_27 = arith.constant 0 : index
    %c0_28 = arith.constant 0 : index
    %35 = vector.load %arg11[%c0_27, %c0_28] : memref<1x128xf32, #tpu.memory_space<vmem>>, vector<1x128xf32>
    %36 = vector.broadcast %35 : vector<1x128xf32> to vector<16x128xf32>
    %37 = arith.addf %34, %36 : vector<16x128xf32>
    %cst_29 = arith.constant dense<0xFF800000> : vector<16xf32>
    %38 = vector.multi_reduction <maximumf>, %37, %cst_29 [1] : vector<16x128xf32> to vector<16xf32>
    %39 = vector.shape_cast %38 : vector<16xf32> to vector<16x1xf32>
    %40 = vector.broadcast %39 : vector<16x1xf32> to vector<16x128xf32>
    %41 = arith.subf %37, %40 : vector<16x128xf32>
    %42 = math.exp %41 : vector<16x128xf32>
    %cst_30 = arith.constant dense<0.000000e+00> : vector<16xf32>
    %43 = vector.multi_reduction <add>, %42, %cst_30 [1] : vector<16x128xf32> to vector<16xf32>
    %44 = vector.shape_cast %43 : vector<16xf32> to vector<16x1xf32>
    %45 = math.log %44 : vector<16x1xf32>
    %46 = vector.broadcast %45 : vector<16x1xf32> to vector<16x128xf32>
    %47 = arith.subf %41, %46 : vector<16x128xf32>
    %c0_31 = arith.constant 0 : index
    %c0_32 = arith.constant 0 : index
    %48 = vector.load %arg12[%c0_31, %c0_32] : memref<16x128xf32, #tpu.memory_space<vmem>>, vector<16x128xf32>
    tpu.vector_store %arg12[%c0_31, %c0_32], %47 {strides = array<i32>} : memref<16x128xf32, #tpu.memory_space<vmem>>, vector<16x128xf32>,
    return
  }
  func.func @transform_0(%arg0: i32) -> (i32, i32) {
    %c0_i32 = arith.constant 0 : i32
    %c0_i32_0 = arith.constant 0 : i32
    return %arg0, %c0_i32 : i32, i32
  }
  func.func @transform_1(%arg0: i32) -> (i32, i32) {
    %c0_i32 = arith.constant 0 : i32
    %c0_i32_0 = arith.constant 0 : i32
    %c0_i32_1 = arith.constant 0 : i32
    return %c0_i32, %c0_i32_0 : i32, i32
  }
  func.func @transform_2(%arg0: i32) -> (i32, i32) {
    %c0_i32 = arith.constant 0 : i32
    %c0_i32_0 = arith.constant 0 : i32
    %c0_i32_1 = arith.constant 0 : i32
    return %c0_i32, %c0_i32_0 : i32, i32
  }
  func.func @transform_3(%arg0: i32) -> (i32, i32) {
    %c0_i32 = arith.constant 0 : i32
    %c0_i32_0 = arith.constant 0 : i32
    %c0_i32_1 = arith.constant 0 : i32
    return %c0_i32, %c0_i32_0 : i32, i32
  }
  func.func @transform_4(%arg0: i32) -> (i32, i32) {
    %c0_i32 = arith.constant 0 : i32
    %c0_i32_0 = arith.constant 0 : i32
    %c0_i32_1 = arith.constant 0 : i32
    return %c0_i32, %c0_i32_0 : i32, i32
  }
  func.func @transform_5(%arg0: i32) -> (i32, i32) {
    %c0_i32 = arith.constant 0 : i32
    %c0_i32_0 = arith.constant 0 : i32
    %c0_i32_1 = arith.constant 0 : i32
    return %c0_i32, %c0_i32_0 : i32, i32
  }
  func.func @transform_6(%arg0: i32) -> (i32, i32) {
    %c0_i32 = arith.constant 0 : i32
    %c0_i32_0 = arith.constant 0 : i32
    %c0_i32_1 = arith.constant 0 : i32
    return %c0_i32, %c0_i32_0 : i32, i32
  }
  func.func @transform_7(%arg0: i32) -> (i32, i32) {
    %c0_i32 = arith.constant 0 : i32
    %c0_i32_0 = arith.constant 0 : i32
    %c0_i32_1 = arith.constant 0 : i32
    return %c0_i32, %c0_i32_0 : i32, i32
  }
  func.func @transform_8(%arg0: i32) -> (i32, i32) {
    %c0_i32 = arith.constant 0 : i32
    %c0_i32_0 = arith.constant 0 : i32
    %c0_i32_1 = arith.constant 0 : i32
    return %c0_i32, %c0_i32_0 : i32, i32
  }
  func.func @transform_9(%arg0: i32) -> (i32, i32) {
    %c0_i32 = arith.constant 0 : i32
    %c0_i32_0 = arith.constant 0 : i32
    %c0_i32_1 = arith.constant 0 : i32
    return %c0_i32, %c0_i32_0 : i32, i32
  }
  func.func @transform_10(%arg0: i32) -> (i32, i32) {
    %c0_i32 = arith.constant 0 : i32
    %c0_i32_0 = arith.constant 0 : i32
    %c0_i32_1 = arith.constant 0 : i32
    return %c0_i32, %c0_i32_0 : i32, i32
  }
  func.func @transform_11(%arg0: i32) -> (i32, i32) {
    %c0_i32 = arith.constant 0 : i32
    %c0_i32_0 = arith.constant 0 : i32
    return %arg0, %c0_i32 : i32, i32
  }
}

</mosaic_0001>

<llo_original>
// kernel: tpu_custom_call.1
$region0: #{tpu_custom_call.1}
  #allocation0 [shape = 'u32[]', space=smem, size = 0x4, offset = 0x4, fixed_abs, tag = 'smem constant byte address 0x4 - core index']
  #allocation1 [shape = 'u32[144,128]{1,0:T(1,128)}', space=vmem, size = 0x12000, scoped, tag = 'internal scratch']
  %s0 = inlined_call_operand.hbm [shape: bf16[16,3072], index: 0, kind: input, shape index: {}]
  %s1 = inlined_call_operand.hbm [shape: bf16[3072,512], index: 1, kind: input, shape index: {}]
  %s2 = inlined_call_operand.hbm [shape: f32[1,512], index: 2, kind: input, shape index: {}]
  %s3 = inlined_call_operand.hbm [shape: bf16[512,256], index: 3, kind: input, shape index: {}]
  %s4 = inlined_call_operand.hbm [shape: f32[1,256], index: 4, kind: input, shape index: {}]
  %s5 = inlined_call_operand.hbm [shape: bf16[256,128], index: 5, kind: input, shape index: {}]
  %s6 = inlined_call_operand.hbm [shape: f32[1,128], index: 6, kind: input, shape index: {}]
  %s7 = inlined_call_operand.vmem [shape: bf16[128,64], index: 7, kind: input, shape index: {}]
  %s8 = inlined_call_operand.hbm [shape: f32[1,64], index: 8, kind: input, shape index: {}]
  %s9 = inlined_call_operand.hbm [shape: bf16[64,128], index: 9, kind: input, shape index: {}]
  %s10 = inlined_call_operand.hbm [shape: f32[1,128], index: 10, kind: input, shape index: {}]
  %s11 = inlined_call_operand.hbm [shape: f32[16,128], index: 11, kind: output, shape index: {}]
  %s12 = sld [smem:[#allocation0]]
  $region94: #{tpu_custom_call.1} parent=0
    _
  %s14 = ssub.s32 1, %s12
  %s15 = scalar_select 0, %s14, %s12
  $region1: #{tpu_custom_call.1} parent=0
    #allocation2 [shape = 'u8[98304]{0}', space=vmem, size = 0x18000, scoped, tag = 'input window, operand 0, single buffered']
    #allocation3 [shape = 's32[1]{0}', space=sflag, size = 0x4, scoped, tag = 'scoped memory for tpu_custom_call.1']
    #allocation4 [shape = 's32[1]{0}', space=sflag, size = 0x4, scoped, tag = 'scoped memory for tpu_custom_call.1']
    #allocation5 [shape = 'u8[3145728]{0}', space=vmem, size = 0x300000, scoped, tag = 'input window, operand 1, single buffered']
    #allocation6 [shape = 's32[1]{0}', space=sflag, size = 0x4, scoped, tag = 'scoped memory for tpu_custom_call.1']
    #allocation7 [shape = 'u8[2048]{0}', space=vmem, size = 0x800, scoped, tag = 'input window, operand 2, single buffered']
    #allocation8 [shape = 'u8[262144]{0}', space=vmem, size = 0x40000, scoped, tag = 'input window, operand 3, single buffered']
    #allocation9 [shape = 's32[1]{0}', space=sflag, size = 0x4, scoped, tag = 'scoped memory for tpu_custom_call.1']
    #allocation10 [shape = 'u8[1024]{0}', space=vmem, size = 0x400, scoped, tag = 'input window, operand 4, single buffered']
    #allocation11 [shape = 'u8[65536]{0}', space=vmem, size = 0x10000, scoped, tag = 'input window, operand 5, single buffered']
    #allocation12 [shape = 's32[1]{0}', space=sflag, size = 0x4, scoped, tag = 'scoped memory for tpu_custom_call.1']
    #allocation13 [shape = 'u8[512]{0}', space=vmem, size = 0x400, scoped, tag = 'input window, operand 6, single buffered']
    #allocation14 [shape = 'u8[512]{0}', space=vmem, size = 0x400, scoped, tag = 'input window, operand 8, single buffered']
    #allocation15 [shape = 's32[1]{0}', space=sflag, size = 0x4, scoped, tag = 'scoped memory for tpu_custom_call.1']
    #allocation16 [shape = 'u8[16384]{0}', space=vmem, size = 0x4000, scoped, tag = 'input window, operand 9, single buffered']
    #allocation17 [shape = 'u8[512]{0}', space=vmem, size = 0x400, scoped, tag = 'input window, operand 10, single buffered']
    #allocation18 [shape = 's32[1]{0}', space=sflag, size = 0x4, scoped, tag = 'scoped memory for tpu_custom_call.1']
    #allocation19 [shape = 'u8[8192]{0}', space=vmem, size = 0x2000, scoped, tag = 'output window, operand 0, single buffered']
    %16 = vsyncpa [#allocation3], 0
    %17 = vsyncpa [#allocation6], 0
    %18 = vsyncpa [#allocation9], 0
    %19 = vsyncpa [#allocation12], 0
    %20 = vsyncpa [#allocation15], 0
    %21 = vsyncpa [#allocation18], 0
    %22 = vsyncpa [#allocation4], 0
    // Predicated region
    $region2: #{tpu_custom_call.1} parent=1 // pred_check
      _
    $region3: #{tpu_custom_call.1} parent=1 // pred_check_branch
      %24 = sbr.rel (0) target = $region5
    $region4: #{tpu_custom_call.1} parent=1 // pred_region
      %s26 = ssub.s32 3072, 3072
      %27 = vsyncadd [#allocation3], %s26
      %s28 = sshll.u32 [#allocation2], 4
      %s29 = int_to_ptr.vmem [resolvable:$true] %s28
      %34 = dma.hbm_to_vmem [thread:$0]  %s0, 3072, %s29, [#allocation3], 1536, 1536, 96
    $region5: #{tpu_custom_call.1} parent=1 // pred_fallthru
      _
    // Predicated region
    $region6: #{tpu_custom_call.1} parent=1 // pred_check
      _
    $region7: #{tpu_custom_call.1} parent=1 // pred_check_branch
      %36 = sbr.rel (0) target = $region9
    $region8: #{tpu_custom_call.1} parent=1 // pred_region
      %s38 = ssub.s32 98304, 98304
      %39 = vsyncadd [#allocation6], %s38
      %s40 = sshll.u32 [#allocation5], 4
      %s41 = int_to_ptr.vmem [resolvable:$true] %s40
      %46 = dma.hbm_to_vmem [thread:$0]  %s1, 98304, %s41, [#allocation6], 256, 256, 16
    $region9: #{tpu_custom_call.1} parent=1 // pred_fallthru
      _
    // Predicated region
    $region10: #{tpu_custom_call.1} parent=1 // pred_check
      _
    $region11: #{tpu_custom_call.1} parent=1 // pred_check_branch
      %48 = sbr.rel (0) target = $region13
    $region12: #{tpu_custom_call.1} parent=1 // pred_region
      %s50 = ssub.s32 64, 64
      %51 = vsyncadd [#allocation6], %s50
      %s53 = sshll.u32 [#allocation7], 4
      %s54 = int_to_ptr.vmem [resolvable:$true] %s53
      %56 = dma.hbm_to_vmem [thread:$0]  %s2, 64, %s54, [#allocation6]
    $region13: #{tpu_custom_call.1} parent=1 // pred_fallthru
      _
    // Predicated region
    $region14: #{tpu_custom_call.1} parent=1 // pred_check
      _
    $region15: #{tpu_custom_call.1} parent=1 // pred_check_branch
      %58 = sbr.rel (0) target = $region17
    $region16: #{tpu_custom_call.1} parent=1 // pred_region
      %s60 = ssub.s32 8192, 8192
      %61 = vsyncadd [#allocation9], %s60
      %s62 = sshll.u32 [#allocation8], 4
      %s63 = int_to_ptr.vmem [resolvable:$true] %s62
      %68 = dma.hbm_to_vmem [thread:$0]  %s3, 8192, %s63, [#allocation9], 128, 128, 8
    $region17: #{tpu_custom_call.1} parent=1 // pred_fallthru
      _
    // Predicated region
    $region18: #{tpu_custom_call.1} parent=1 // pred_check
      _
    $region19: #{tpu_custom_call.1} parent=1 // pred_check_branch
      %70 = sbr.rel (0) target = $region21
    $region20: #{tpu_custom_call.1} parent=1 // pred_region
      %s72 = ssub.s32 32, 32
      %73 = vsyncadd [#allocation9], %s72
      %s75 = sshll.u32 [#allocation10], 4
      %s76 = int_to_ptr.vmem [resolvable:$true] %s75
      %78 = dma.hbm_to_vmem [thread:$0]  %s4, 32, %s76, [#allocation9]
    $region21: #{tpu_custom_call.1} parent=1 // pred_fallthru
      _
    // Predicated region
    $region22: #{tpu_custom_call.1} parent=1 // pred_check
      _
    $region23: #{tpu_custom_call.1} parent=1 // pred_check_branch
      %80 = sbr.rel (0) target = $region25
    $region24: #{tpu_custom_call.1} parent=1 // pred_region
      %s82 = ssub.s32 2048, 2048
      %83 = vsyncadd [#allocation12], %s82
      %s84 = sshll.u32 [#allocation11], 4
      %s85 = int_to_ptr.vmem [resolvable:$true] %s84
      %90 = dma.hbm_to_vmem [thread:$0]  %s5, 2048, %s85, [#allocation12], 64, 64, 4
    $region25: #{tpu_custom_call.1} parent=1 // pred_fallthru
      _
    // Predicated region
    $region26: #{tpu_custom_call.1} parent=1 // pred_check
      _
    $region27: #{tpu_custom_call.1} parent=1 // pred_check_branch
      %92 = sbr.rel (0) target = $region29
    $region28: #{tpu_custom_call.1} parent=1 // pred_region
      %s94 = ssub.s32 16, 16
      %95 = vsyncadd [#allocation12], %s94
      %s97 = sshll.u32 [#allocation13], 4
      %s98 = int_to_ptr.vmem [resolvable:$true] %s97
      %100 = dma.hbm_to_vmem [thread:$0]  %s6, 16, %s98, [#allocation12]
    $region29: #{tpu_custom_call.1} parent=1 // pred_fallthru
      _
    // Predicated region
    $region30: #{tpu_custom_call.1} parent=1 // pred_check
      _
    $region31: #{tpu_custom_call.1} parent=1 // pred_check_branch
      %102 = sbr.rel (0) target = $region33
    $region32: #{tpu_custom_call.1} parent=1 // pred_region
      _
    $region33: #{tpu_custom_call.1} parent=1 // pred_fallthru
      _
    // Predicated region
    $region34: #{tpu_custom_call.1} parent=1 // pred_check
      _
    $region35: #{tpu_custom_call.1} parent=1 // pred_check_branch
      %104 = sbr.rel (0) target = $region37
    $region36: #{tpu_custom_call.1} parent=1 // pred_region
      %s106 = ssub.s32 16, 16
      %107 = vsyncadd [#allocation15], %s106
      %s109 = sshll.u32 [#allocation14], 4
      %s110 = int_to_ptr.vmem [resolvable:$true] %s109
      %112 = dma.hbm_to_vmem [thread:$0]  %s8, 16, %s110, [#allocation15]
    $region37: #{tpu_custom_call.1} parent=1 // pred_fallthru
      _
    // Predicated region
    $region38: #{tpu_custom_call.1} parent=1 // pred_check
      _
    $region39: #{tpu_custom_call.1} parent=1 // pred_check_branch
      %114 = sbr.rel (0) target = $region41
    $region40: #{tpu_custom_call.1} parent=1 // pred_region
      %s116 = ssub.s32 512, 512
      %117 = vsyncadd [#allocation15], %s116
      %s118 = sshll.u32 [#allocation16], 4
      %s119 = int_to_ptr.vmem [resolvable:$true] %s118
      %124 = dma.hbm_to_vmem [thread:$0]  %s9, 512, %s119, [#allocation15], 64, 64, 4
    $region41: #{tpu_custom_call.1} parent=1 // pred_fallthru
      _
    // Predicated region
    $region42: #{tpu_custom_call.1} parent=1 // pred_check
      _
    $region43: #{tpu_custom_call.1} parent=1 // pred_check_branch
      %126 = sbr.rel (0) target = $region45
    $region44: #{tpu_custom_call.1} parent=1 // pred_region
      %s128 = ssub.s32 16, 16
      %129 = vsyncadd [#allocation18], %s128
      %s131 = sshll.u32 [#allocation17], 4
      %s132 = int_to_ptr.vmem [resolvable:$true] %s131
      %134 = dma.hbm_to_vmem [thread:$0]  %s10, 16, %s132, [#allocation18]
    $region45: #{tpu_custom_call.1} parent=1 // pred_fallthru
      _
    // Predicated region
    $region46: #{tpu_custom_call.1} parent=1 // pred_check
      _
    $region47: #{tpu_custom_call.1} parent=1 // pred_check_branch
      %136 = sbr.rel (0) target = $region49
    $region48: #{tpu_custom_call.1} parent=1 // pred_region
      %137 = dma.done [#allocation3], 3072
    $region49: #{tpu_custom_call.1} parent=1 // pred_fallthru
      _
    // Predicated region
    $region50: #{tpu_custom_call.1} parent=1 // pred_check
      _
    $region51: #{tpu_custom_call.1} parent=1 // pred_check_branch
      %139 = sbr.rel (0) target = $region53
    $region52: #{tpu_custom_call.1} parent=1 // pred_region
      %140 = dma.done [#allocation6], 98304
    $region53: #{tpu_custom_call.1} parent=1 // pred_fallthru
      _
    // Predicated region
    $region54: #{tpu_custom_call.1} parent=1 // pred_check
      _
    $region55: #{tpu_custom_call.1} parent=1 // pred_check_branch
      %142 = sbr.rel (0) target = $region57
    $region56: #{tpu_custom_call.1} parent=1 // pred_region
      %143 = dma.done [#allocation6], 64
    $region57: #{tpu_custom_call.1} parent=1 // pred_fallthru
      _
    // Predicated region
    $region58: #{tpu_custom_call.1} parent=1 // pred_check
      _
    $region59: #{tpu_custom_call.1} parent=1 // pred_check_branch
      %145 = sbr.rel (0) target = $region61
    $region60: #{tpu_custom_call.1} parent=1 // pred_region
      %146 = dma.done [#allocation9], 8192
    $region61: #{tpu_custom_call.1} parent=1 // pred_fallthru
      _
    // Predicated region
    $region62: #{tpu_custom_call.1} parent=1 // pred_check
      _
    $region63: #{tpu_custom_call.1} parent=1 // pred_check_branch
      %148 = sbr.rel (0) target = $region65
    $region64: #{tpu_custom_call.1} parent=1 // pred_region
      %149 = dma.done [#allocation9], 32
    $region65: #{tpu_custom_call.1} parent=1 // pred_fallthru
      _
    // Predicated region
    $region66: #{tpu_custom_call.1} parent=1 // pred_check
      _
    $region67: #{tpu_custom_call.1} parent=1 // pred_check_branch
      %151 = sbr.rel (0) target = $region69
    $region68: #{tpu_custom_call.1} parent=1 // pred_region
      %152 = dma.done [#allocation12], 2048
    $region69: #{tpu_custom_call.1} parent=1 // pred_fallthru
      _
    // Predicated region
    $region70: #{tpu_custom_call.1} parent=1 // pred_check
      _
    $region71: #{tpu_custom_call.1} parent=1 // pred_check_branch
      %154 = sbr.rel (0) target = $region73
    $region72: #{tpu_custom_call.1} parent=1 // pred_region
      %155 = dma.done [#allocation12], 16
    $region73: #{tpu_custom_call.1} parent=1 // pred_fallthru
      _
    // Predicated region
    $region74: #{tpu_custom_call.1} parent=1 // pred_check
      _
    $region75: #{tpu_custom_call.1} parent=1 // pred_check_branch
      %157 = sbr.rel (0) target = $region77
    $region76: #{tpu_custom_call.1} parent=1 // pred_region
      %158 = dma.done [#allocation15], 16
    $region77: #{tpu_custom_call.1} parent=1 // pred_fallthru
      _
    // Predicated region
    $region78: #{tpu_custom_call.1} parent=1 // pred_check
      _
    $region79: #{tpu_custom_call.1} parent=1 // pred_check_branch
      %160 = sbr.rel (0) target = $region81
    $region80: #{tpu_custom_call.1} parent=1 // pred_region
      %161 = dma.done [#allocation15], 512
    $region81: #{tpu_custom_call.1} parent=1 // pred_fallthru
      _
    // Predicated region
    $region82: #{tpu_custom_call.1} parent=1 // pred_check
      _
    $region83: #{tpu_custom_call.1} parent=1 // pred_check_branch
      %163 = sbr.rel (0) target = $region85
    $region84: #{tpu_custom_call.1} parent=1 // pred_region
      %164 = dma.done [#allocation18], 16
    $region85: #{tpu_custom_call.1} parent=1 // pred_fallthru
      _
    %v166 = vld [vmem:[#allocation2] sm:$0xff]
    %v167 = vld [vmem:[#allocation2 + $0x8] sm:$0xff]
    %v168 = vld [vmem:[#allocation2 + $0x10] sm:$0xff]
    %v169 = vld [vmem:[#allocation2 + $0x18] sm:$0xff]
    %v170 = vld [vmem:[#allocation2 + $0x20] sm:$0xff]
    %v171 = vld [vmem:[#allocation2 + $0x28] sm:$0xff]
    %v172 = vld [vmem:[#allocation2 + $0x30] sm:$0xff]
    %v173 = vld [vmem:[#allocation2 + $0x38] sm:$0xff]
    %v174 = vld [vmem:[#allocation2 + $0x40] sm:$0xff]
    %v175 = vld [vmem:[#allocation2 + $0x48] sm:$0xff]
    %v176 = vld [vmem:[#allocation2 + $0x50] sm:$0xff]
    %v177 = vld [vmem:[#allocation2 + $0x58] sm:$0xff]
    %v178 = vld [vmem:[#allocation2 + $0x60] sm:$0xff]
    %v179 = vld [vmem:[#allocation2 + $0x68] sm:$0xff]
    %v180 = vld [vmem:[#allocation2 + $0x70] sm:$0xff]
    %v181 = vld [vmem:[#allocation2 + $0x78] sm:$0xff]
    %v182 = vld [vmem:[#allocation2 + $0x80] sm:$0xff]
    %v183 = vld [vmem:[#allocation2 + $0x88] sm:$0xff]
    %v184 = vld [vmem:[#allocation2 + $0x90] sm:$0xff]
    %v185 = vld [vmem:[#allocation2 + $0x98] sm:$0xff]
    %v186 = vld [vmem:[#allocation2 + $0xa0] sm:$0xff]
    %v187 = vld [vmem:[#allocation2 + $0xa8] sm:$0xff]
    %v188 = vld [vmem:[#allocation2 + $0xb0] sm:$0xff]
    %v189 = vld [vmem:[#allocation2 + $0xb8] sm:$0xff]
    %v190 = vld [vmem:[#allocation5] sm:$0xff]
    %v191 = vld [vmem:[#allocation5 + $0x8] sm:$0xff]
    %v192 = vld [vmem:[#allocation5 + $0x10] sm:$0xff]
    %v193 = vld [vmem:[#allocation5 + $0x18] sm:$0xff]
    %v194 = vld [vmem:[#allocation5 + $0x20] sm:$0xff]
    %v195 = vld [vmem:[#allocation5 + $0x28] sm:$0xff]
    %v196 = vld [vmem:[#allocation5 + $0x30] sm:$0xff]
    %v197 = vld [vmem:[#allocation5 + $0x38] sm:$0xff]
    %v198 = vld [vmem:[#allocation5 + $0x40] sm:$0xff]
    %v199 = vld [vmem:[#allocation5 + $0x48] sm:$0xff]
    %v200 = vld [vmem:[#allocation5 + $0x50] sm:$0xff]
    %v201 = vld [vmem:[#allocation5 + $0x58] sm:$0xff]
    %v202 = vld [vmem:[#allocation5 + $0x60] sm:$0xff]
    %v203 = vld [vmem:[#allocation5 + $0x68] sm:$0xff]
    %v204 = vld [vmem:[#allocation5 + $0x70] sm:$0xff]
    %v205 = vld [vmem:[#allocation5 + $0x78] sm:$0xff]
    %v206 = vld [vmem:[#allocation5 + $0x80] sm:$0xff]
    %v207 = vld [vmem:[#allocation5 + $0x88] sm:$0xff]
    %v208 = vld [vmem:[#allocation5 + $0x90] sm:$0xff]
    %v209 = vld [vmem:[#allocation5 + $0x98] sm:$0xff]
    %v210 = vld [vmem:[#allocation5 + $0xa0] sm:$0xff]
    %v211 = vld [vmem:[#allocation5 + $0xa8] sm:$0xff]
    %v212 = vld [vmem:[#allocation5 + $0xb0] sm:$0xff]
    %v213 = vld [vmem:[#allocation5 + $0xb8] sm:$0xff]
    %v214 = vld [vmem:[#allocation5 + $0xc0] sm:$0xff]
    %v215 = vld [vmem:[#allocation5 + $0xc8] sm:$0xff]
    %v216 = vld [vmem:[#allocation5 + $0xd0] sm:$0xff]
    %v217 = vld [vmem:[#allocation5 + $0xd8] sm:$0xff]
    %v218 = vld [vmem:[#allocation5 + $0xe0] sm:$0xff]
    %v219 = vld [vmem:[#allocation5 + $0xe8] sm:$0xff]
    %v220 = vld [vmem:[#allocation5 + $0xf0] sm:$0xff]
    %v221 = vld [vmem:[#allocation5 + $0xf8] sm:$0xff]
    %v222 = vld [vmem:[#allocation5 + $0x100] sm:$0xff]
    %v223 = vld [vmem:[#allocation5 + $0x108] sm:$0xff]
    %v224 = vld [vmem:[#allocation5 + $0x110] sm:$0xff]
    %v225 = vld [vmem:[#allocation5 + $0x118] sm:$0xff]
    %v226 = vld [vmem:[#allocation5 + $0x120] sm:$0xff]
    %v227 = vld [vmem:[#allocation5 + $0x128] sm:$0xff]
    %v228 = vld [vmem:[#allocation5 + $0x130] sm:$0xff]
    %v229 = vld [vmem:[#allocation5 + $0x138] sm:$0xff]
    %v230 = vld [vmem:[#allocation5 + $0x140] sm:$0xff]
    %v231 = vld [vmem:[#allocation5 + $0x148] sm:$0xff]
    %v232 = vld [vmem:[#allocation5 + $0x150] sm:$0xff]
    %v233 = vld [vmem:[#allocation5 + $0x158] sm:$0xff]
    %v234 = vld [vmem:[#allocation5 + $0x160] sm:$0xff]
    %v235 = vld [vmem:[#allocation5 + $0x168] sm:$0xff]
    %v236 = vld [vmem:[#allocation5 + $0x170] sm:$0xff]
    %v237 = vld [vmem:[#allocation5 + $0x178] sm:$0xff]
    %v238 = vld [vmem:[#allocation5 + $0x180] sm:$0xff]
    %v239 = vld [vmem:[#allocation5 + $0x188] sm:$0xff]
    %v240 = vld [vmem:[#allocation5 + $0x190] sm:$0xff]
    %v241 = vld [vmem:[#allocation5 + $0x198] sm:$0xff]
    %v242 = vld [vmem:[#allocation5 + $0x1a0] sm:$0xff]
    %v243 = vld [vmem:[#allocation5 + $0x1a8] sm:$0xff]
    %v244 = vld [vmem:[#allocation5 + $0x1b0] sm:$0xff]
    %v245 = vld [vmem:[#allocation5 + $0x1b8] sm:$0xff]
    %v246 = vld [vmem:[#allocation5 + $0x1c0] sm:$0xff]
    %v247 = vld [vmem:[#allocation5 + $0x1c8] sm:$0xff]
    %v248 = vld [vmem:[#allocation5 + $0x1d0] sm:$0xff]
    %v249 = vld [vmem:[#allocation5 + $0x1d8] sm:$0xff]
    %v250 = vld [vmem:[#allocation5 + $0x1e0] sm:$0xff]
    %v251 = vld [vmem:[#allocation5 + $0x1e8] sm:$0xff]
    %v252 = vld [vmem:[#allocation5 + $0x1f0] sm:$0xff]
    %v253 = vld [vmem:[#allocation5 + $0x1f8] sm:$0xff]
    %v254 = vld [vmem:[#allocation5 + $0x200] sm:$0xff]
    %v255 = vld [vmem:[#allocation5 + $0x208] sm:$0xff]
    %v256 = vld [vmem:[#allocation5 + $0x210] sm:$0xff]
    %v257 = vld [vmem:[#allocation5 + $0x218] sm:$0xff]
    %v258 = vld [vmem:[#allocation5 + $0x220] sm:$0xff]
    %v259 = vld [vmem:[#allocation5 + $0x228] sm:$0xff]
    %v260 = vld [vmem:[#allocation5 + $0x230] sm:$0xff]
    %v261 = vld [vmem:[#allocation5 + $0x238] sm:$0xff]
    %v262 = vld [vmem:[#allocation5 + $0x240] sm:$0xff]
    %v263 = vld [vmem:[#allocation5 + $0x248] sm:$0xff]
    %v264 = vld [vmem:[#allocation5 + $0x250] sm:$0xff]
    %v265 = vld [vmem:[#allocation5 + $0x258] sm:$0xff]
    %v266 = vld [vmem:[#allocation5 + $0x260] sm:$0xff]
    %v267 = vld [vmem:[#allocation5 + $0x268] sm:$0xff]
    %v268 = vld [vmem:[#allocation5 + $0x270] sm:$0xff]
    %v269 = vld [vmem:[#allocation5 + $0x278] sm:$0xff]
    %v270 = vld [vmem:[#allocation5 + $0x280] sm:$0xff]
    %v271 = vld [vmem:[#allocation5 + $0x288] sm:$0xff]
    %v272 = vld [vmem:[#allocation5 + $0x290] sm:$0xff]
    %v273 = vld [vmem:[#allocation5 + $0x298] sm:$0xff]
    %v274 = vld [vmem:[#allocation5 + $0x2a0] sm:$0xff]
    %v275 = vld [vmem:[#allocation5 + $0x2a8] sm:$0xff]
    %v276 = vld [vmem:[#allocation5 + $0x2b0] sm:$0xff]
    %v277 = vld [vmem:[#allocation5 + $0x2b8] sm:$0xff]
    %v278 = vld [vmem:[#allocation5 + $0x2c0] sm:$0xff]
    %v279 = vld [vmem:[#allocation5 + $0x2c8] sm:$0xff]
    %v280 = vld [vmem:[#allocation5 + $0x2d0] sm:$0xff]
    %v281 = vld [vmem:[#allocation5 + $0x2d8] sm:$0xff]
    %v282 = vld [vmem:[#allocation5 + $0x2e0] sm:$0xff]
    %v283 = vld [vmem:[#allocation5 + $0x2e8] sm:$0xff]
    %v284 = vld [vmem:[#allocation5 + $0x2f0] sm:$0xff]
    %v285 = vld [vmem:[#allocation5 + $0x2f8] sm:$0xff]
    %v286 = vld [vmem:[#allocation5 + $0x300] sm:$0xff]
    %v287 = vld [vmem:[#allocation5 + $0x308] sm:$0xff]
    %v288 = vld [vmem:[#allocation5 + $0x310] sm:$0xff]
    %v289 = vld [vmem:[#allocation5 + $0x318] sm:$0xff]
    %v290 = vld [vmem:[#allocation5 + $0x320] sm:$0xff]
    %v291 = vld [vmem:[#allocation5 + $0x328] sm:$0xff]
    %v292 = vld [vmem:[#allocation5 + $0x330] sm:$0xff]
    %v293 = vld [vmem:[#allocation5 + $0x338] sm:$0xff]
    %v294 = vld [vmem:[#allocation5 + $0x340] sm:$0xff]
    %v295 = vld [vmem:[#allocation5 + $0x348] sm:$0xff]
    %v296 = vld [vmem:[#allocation5 + $0x350] sm:$0xff]
    %v297 = vld [vmem:[#allocation5 + $0x358] sm:$0xff]
    %v298 = vld [vmem:[#allocation5 + $0x360] sm:$0xff]
    %v299 = vld [vmem:[#allocation5 + $0x368] sm:$0xff]
    %v300 = vld [vmem:[#allocation5 + $0x370] sm:$0xff]
    %v301 = vld [vmem:[#allocation5 + $0x378] sm:$0xff]
    %v302 = vld [vmem:[#allocation5 + $0x380] sm:$0xff]
    %v303 = vld [vmem:[#allocation5 + $0x388] sm:$0xff]
    %v304 = vld [vmem:[#allocation5 + $0x390] sm:$0xff]
    %v305 = vld [vmem:[#allocation5 + $0x398] sm:$0xff]
    %v306 = vld [vmem:[#allocation5 + $0x3a0] sm:$0xff]
    %v307 = vld [vmem:[#allocation5 + $0x3a8] sm:$0xff]
    %v308 = vld [vmem:[#allocation5 + $0x3b0] sm:$0xff]
    %v309 = vld [vmem:[#allocation5 + $0x3b8] sm:$0xff]
    %v310 = vld [vmem:[#allocation5 + $0x3c0] sm:$0xff]
    %v311 = vld [vmem:[#allocation5 + $0x3c8] sm:$0xff]
    %v312 = vld [vmem:[#allocation5 + $0x3d0] sm:$0xff]
    %v313 = vld [vmem:[#allocation5 + $0x3d8] sm:$0xff]
    %v314 = vld [vmem:[#allocation5 + $0x3e0] sm:$0xff]
    %v315 = vld [vmem:[#allocation5 + $0x3e8] sm:$0xff]
    %v316 = vld [vmem:[#allocation5 + $0x3f0] sm:$0xff]
    %v317 = vld [vmem:[#allocation5 + $0x3f8] sm:$0xff]
    %v318 = vld [vmem:[#allocation5 + $0x400] sm:$0xff]
    %v319 = vld [vmem:[#allocation5 + $0x408] sm:$0xff]
    %v320 = vld [vmem:[#allocation5 + $0x410] sm:$0xff]
    %v321 = vld [vmem:[#allocation5 + $0x418] sm:$0xff]
    %v322 = vld [vmem:[#allocation5 + $0x420] sm:$0xff]
    %v323 = vld [vmem:[#allocation5 + $0x428] sm:$0xff]
    %v324 = vld [vmem:[#allocation5 + $0x430] sm:$0xff]
    %v325 = vld [vmem:[#allocation5 + $0x438] sm:$0xff]
    %v326 = vld [vmem:[#allocation5 + $0x440] sm:$0xff]
    %v327 = vld [vmem:[#allocation5 + $0x448] sm:$0xff]
    %v328 = vld [vmem:[#allocation5 + $0x450] sm:$0xff]
    %v329 = vld [vmem:[#allocation5 + $0x458] sm:$0xff]
    %v330 = vld [vmem:[#allocation5 + $0x460] sm:$0xff]
    %v331 = vld [vmem:[#allocation5 + $0x468] sm:$0xff]
    %v332 = vld [vmem:[#allocation5 + $0x470] sm:$0xff]
    %v333 = vld [vmem:[#allocation5 + $0x478] sm:$0xff]
    %v334 = vld [vmem:[#allocation5 + $0x480] sm:$0xff]
    %v335 = vld [vmem:[#allocation5 + $0x488] sm:$0xff]
    %v336 = vld [vmem:[#allocation5 + $0x490] sm:$0xff]
    %v337 = vld [vmem:[#allocation5 + $0x498] sm:$0xff]
    %v338 = vld [vmem:[#allocation5 + $0x4a0] sm:$0xff]
    %v339 = vld [vmem:[#allocation5 + $0x4a8] sm:$0xff]
    %v340 = vld [vmem:[#allocation5 + $0x4b0] sm:$0xff]
    %v341 = vld [vmem:[#allocation5 + $0x4b8] sm:$0xff]
    %v342 = vld [vmem:[#allocation5 + $0x4c0] sm:$0xff]
    %v343 = vld [vmem:[#allocation5 + $0x4c8] sm:$0xff]
    %v344 = vld [vmem:[#allocation5 + $0x4d0] sm:$0xff]
    %v345 = vld [vmem:[#allocation5 + $0x4d8] sm:$0xff]
    %v346 = vld [vmem:[#allocation5 + $0x4e0] sm:$0xff]
    %v347 = vld [vmem:[#allocation5 + $0x4e8] sm:$0xff]
    %v348 = vld [vmem:[#allocation5 + $0x4f0] sm:$0xff]
    %v349 = vld [vmem:[#allocation5 + $0x4f8] sm:$0xff]
    %v350 = vld [vmem:[#allocation5 + $0x500] sm:$0xff]
    %v351 = vld [vmem:[#allocation5 + $0x508] sm:$0xff]
    %v352 = vld [vmem:[#allocation5 + $0x510] sm:$0xff]
    %v353 = vld [vmem:[#allocation5 + $0x518] sm:$0xff]
    %v354 = vld [vmem:[#allocation5 + $0x520] sm:$0xff]
    %v355 = vld [vmem:[#allocation5 + $0x528] sm:$0xff]
    %v356 = vld [vmem:[#allocation5 + $0x530] sm:$0xff]
    %v357 = vld [vmem:[#allocation5 + $0x538] sm:$0xff]
    %v358 = vld [vmem:[#allocation5 + $0x540] sm:$0xff]
    %v359 = vld [vmem:[#allocation5 + $0x548] sm:$0xff]
    %v360 = vld [vmem:[#allocation5 + $0x550] sm:$0xff]
    %v361 = vld [vmem:[#allocation5 + $0x558] sm:$0xff]
    %v362 = vld [vmem:[#allocation5 + $0x560] sm:$0xff]
    %v363 = vld [vmem:[#allocation5 + $0x568] sm:$0xff]
    %v364 = vld [vmem:[#allocation5 + $0x570] sm:$0xff]
    %v365 = vld [vmem:[#allocation5 + $0x578] sm:$0xff]
    %v366 = vld [vmem:[#allocation5 + $0x580] sm:$0xff]
    %v367 = vld [vmem:[#allocation5 + $0x588] sm:$0xff]
    %v368 = vld [vmem:[#allocation5 + $0x590] sm:$0xff]
    %v369 = vld [vmem:[#allocation5 + $0x598] sm:$0xff]
    %v370 = vld [vmem:[#allocation5 + $0x5a0] sm:$0xff]
    %v371 = vld [vmem:[#allocation5 + $0x5a8] sm:$0xff]
    %v372 = vld [vmem:[#allocation5 + $0x5b0] sm:$0xff]
    %v373 = vld [vmem:[#allocation5 + $0x5b8] sm:$0xff]
    %v374 = vld [vmem:[#allocation5 + $0x5c0] sm:$0xff]
    %v375 = vld [vmem:[#allocation5 + $0x5c8] sm:$0xff]
    %v376 = vld [vmem:[#allocation5 + $0x5d0] sm:$0xff]
    %v377 = vld [vmem:[#allocation5 + $0x5d8] sm:$0xff]
    %v378 = vld [vmem:[#allocation5 + $0x5e0] sm:$0xff]
    %v379 = vld [vmem:[#allocation5 + $0x5e8] sm:$0xff]
    %v380 = vld [vmem:[#allocation5 + $0x5f0] sm:$0xff]
    %v381 = vld [vmem:[#allocation5 + $0x5f8] sm:$0xff]
    %v382 = vld [vmem:[#allocation5 + $0x600] sm:$0xff]
    %v383 = vld [vmem:[#allocation5 + $0x608] sm:$0xff]
    %v384 = vld [vmem:[#allocation5 + $0x610] sm:$0xff]
    %v385 = vld [vmem:[#allocation5 + $0x618] sm:$0xff]
    %v386 = vld [vmem:[#allocation5 + $0x620] sm:$0xff]
    %v387 = vld [vmem:[#allocation5 + $0x628] sm:$0xff]
    %v388 = vld [vmem:[#allocation5 + $0x630] sm:$0xff]
    %v389 = vld [vmem:[#allocation5 + $0x638] sm:$0xff]
    %v390 = vld [vmem:[#allocation5 + $0x640] sm:$0xff]
    %v391 = vld [vmem:[#allocation5 + $0x648] sm:$0xff]
    %v392 = vld [vmem:[#allocation5 + $0x650] sm:$0xff]
    %v393 = vld [vmem:[#allocation5 + $0x658] sm:$0xff]
    %v394 = vld [vmem:[#allocation5 + $0x660] sm:$0xff]
    %v395 = vld [vmem:[#allocation5 + $0x668] sm:$0xff]
    %v396 = vld [vmem:[#allocation5 + $0x670] sm:$0xff]
    %v397 = vld [vmem:[#allocation5 + $0x678] sm:$0xff]
    %v398 = vld [vmem:[#allocation5 + $0x680] sm:$0xff]
    %v399 = vld [vmem:[#allocation5 + $0x688] sm:$0xff]
    %v400 = vld [vmem:[#allocation5 + $0x690] sm:$0xff]
    %v401 = vld [vmem:[#allocation5 + $0x698] sm:$0xff]
    %v402 = vld [vmem:[#allocation5 + $0x6a0] sm:$0xff]
    %v403 = vld [vmem:[#allocation5 + $0x6a8] sm:$0xff]
    %v404 = vld [vmem:[#allocation5 + $0x6b0] sm:$0xff]
    %v405 = vld [vmem:[#allocation5 + $0x6b8] sm:$0xff]
    %v406 = vld [vmem:[#allocation5 + $0x6c0] sm:$0xff]
    %v407 = vld [vmem:[#allocation5 + $0x6c8] sm:$0xff]
    %v408 = vld [vmem:[#allocation5 + $0x6d0] sm:$0xff]
    %v409 = vld [vmem:[#allocation5 + $0x6d8] sm:$0xff]
    %v410 = vld [vmem:[#allocation5 + $0x6e0] sm:$0xff]
    %v411 = vld [vmem:[#allocation5 + $0x6e8] sm:$0xff]
    %v412 = vld [vmem:[#allocation5 + $0x6f0] sm:$0xff]
    %v413 = vld [vmem:[#allocation5 + $0x6f8] sm:$0xff]
    %v414 = vld [vmem:[#allocation5 + $0x700] sm:$0xff]
    %v415 = vld [vmem:[#allocation5 + $0x708] sm:$0xff]
    %v416 = vld [vmem:[#allocation5 + $0x710] sm:$0xff]
    %v417 = vld [vmem:[#allocation5 + $0x718] sm:$0xff]
    %v418 = vld [vmem:[#allocation5 + $0x720] sm:$0xff]
    %v419 = vld [vmem:[#allocation5 + $0x728] sm:$0xff]
    %v420 = vld [vmem:[#allocation5 + $0x730] sm:$0xff]
    %v421 = vld [vmem:[#allocation5 + $0x738] sm:$0xff]
    %v422 = vld [vmem:[#allocation5 + $0x740] sm:$0xff]
    %v423 = vld [vmem:[#allocation5 + $0x748] sm:$0xff]
    %v424 = vld [vmem:[#allocation5 + $0x750] sm:$0xff]
    %v425 = vld [vmem:[#allocation5 + $0x758] sm:$0xff]
    %v426 = vld [vmem:[#allocation5 + $0x760] sm:$0xff]
    %v427 = vld [vmem:[#allocation5 + $0x768] sm:$0xff]
    %v428 = vld [vmem:[#allocation5 + $0x770] sm:$0xff]
    %v429 = vld [vmem:[#allocation5 + $0x778] sm:$0xff]
    %v430 = vld [vmem:[#allocation5 + $0x780] sm:$0xff]
    %v431 = vld [vmem:[#allocation5 + $0x788] sm:$0xff]
    %v432 = vld [vmem:[#allocation5 + $0x790] sm:$0xff]
    %v433 = vld [vmem:[#allocation5 + $0x798] sm:$0xff]
    %v434 = vld [vmem:[#allocation5 + $0x7a0] sm:$0xff]
    %v435 = vld [vmem:[#allocation5 + $0x7a8] sm:$0xff]
    %v436 = vld [vmem:[#allocation5 + $0x7b0] sm:$0xff]
    %v437 = vld [vmem:[#allocation5 + $0x7b8] sm:$0xff]
    %v438 = vld [vmem:[#allocation5 + $0x7c0] sm:$0xff]
    %v439 = vld [vmem:[#allocation5 + $0x7c8] sm:$0xff]
    %v440 = vld [vmem:[#allocation5 + $0x7d0] sm:$0xff]
    %v441 = vld [vmem:[#allocation5 + $0x7d8] sm:$0xff]
    %v442 = vld [vmem:[#allocation5 + $0x7e0] sm:$0xff]
    %v443 = vld [vmem:[#allocation5 + $0x7e8] sm:$0xff]
    %v444 = vld [vmem:[#allocation5 + $0x7f0] sm:$0xff]
    %v445 = vld [vmem:[#allocation5 + $0x7f8] sm:$0xff]
    %v446 = vld [vmem:[#allocation5 + $0x800] sm:$0xff]
    %v447 = vld [vmem:[#allocation5 + $0x808] sm:$0xff]
    %v448 = vld [vmem:[#allocation5 + $0x810] sm:$0xff]
    %v449 = vld [vmem:[#allocation5 + $0x818] sm:$0xff]
    %v450 = vld [vmem:[#allocation5 + $0x820] sm:$0xff]
    %v451 = vld [vmem:[#allocation5 + $0x828] sm:$0xff]
    %v452 = vld [vmem:[#allocation5 + $0x830] sm:$0xff]
    %v453 = vld [vmem:[#allocation5 + $0x838] sm:$0xff]
    %v454 = vld [vmem:[#allocation5 + $0x840] sm:$0xff]
    %v455 = vld [vmem:[#allocation5 + $0x848] sm:$0xff]
    %v456 = vld [vmem:[#allocation5 + $0x850] sm:$0xff]
    %v457 = vld [vmem:[#allocation5 + $0x858] sm:$0xff]
    %v458 = vld [vmem:[#allocation5 + $0x860] sm:$0xff]
    %v459 = vld [vmem:[#allocation5 + $0x868] sm:$0xff]
    %v460 = vld [vmem:[#allocation5 + $0x870] sm:$0xff]
    %v461 = vld [vmem:[#allocation5 + $0x878] sm:$0xff]
    %v462 = vld [vmem:[#allocation5 + $0x880] sm:$0xff]
    %v463 = vld [vmem:[#allocation5 + $0x888] sm:$0xff]
    %v464 = vld [vmem:[#allocation5 + $0x890] sm:$0xff]
    %v465 = vld [vmem:[#allocation5 + $0x898] sm:$0xff]
    %v466 = vld [vmem:[#allocation5 + $0x8a0] sm:$0xff]
    %v467 = vld [vmem:[#allocation5 + $0x8a8] sm:$0xff]
    %v468 = vld [vmem:[#allocation5 + $0x8b0] sm:$0xff]
    %v469 = vld [vmem:[#allocation5 + $0x8b8] sm:$0xff]
    %v470 = vld [vmem:[#allocation5 + $0x8c0] sm:$0xff]
    %v471 = vld [vmem:[#allocation5 + $0x8c8] sm:$0xff]
    %v472 = vld [vmem:[#allocation5 + $0x8d0] sm:$0xff]
    %v473 = vld [vmem:[#allocation5 + $0x8d8] sm:$0xff]
    %v474 = vld [vmem:[#allocation5 + $0x8e0] sm:$0xff]
    %v475 = vld [vmem:[#allocation5 + $0x8e8] sm:$0xff]
    %v476 = vld [vmem:[#allocation5 + $0x8f0] sm:$0xff]
    %v477 = vld [vmem:[#allocation5 + $0x8f8] sm:$0xff]
    %v478 = vld [vmem:[#allocation5 + $0x900] sm:$0xff]
    %v479 = vld [vmem:[#allocation5 + $0x908] sm:$0xff]
    %v480 = vld [vmem:[#allocation5 + $0x910] sm:$0xff]
    %v481 = vld [vmem:[#allocation5 + $0x918] sm:$0xff]
    %v482 = vld [vmem:[#allocation5 + $0x920] sm:$0xff]
    %v483 = vld [vmem:[#allocation5 + $0x928] sm:$0xff]
    %v484 = vld [vmem:[#allocation5 + $0x930] sm:$0xff]
    %v485 = vld [vmem:[#allocation5 + $0x938] sm:$0xff]
    %v486 = vld [vmem:[#allocation5 + $0x940] sm:$0xff]
    %v487 = vld [vmem:[#allocation5 + $0x948] sm:$0xff]
    %v488 = vld [vmem:[#allocation5 + $0x950] sm:$0xff]
    %v489 = vld [vmem:[#allocation5 + $0x958] sm:$0xff]
    %v490 = vld [vmem:[#allocation5 + $0x960] sm:$0xff]
    %v491 = vld [vmem:[#allocation5 + $0x968] sm:$0xff]
    %v492 = vld [vmem:[#allocation5 + $0x970] sm:$0xff]
    %v493 = vld [vmem:[#allocation5 + $0x978] sm:$0xff]
    %v494 = vld [vmem:[#allocation5 + $0x980] sm:$0xff]
    %v495 = vld [vmem:[#allocation5 + $0x988] sm:$0xff]
    %v496 = vld [vmem:[#allocation5 + $0x990] sm:$0xff]
    %v497 = vld [vmem:[#allocation5 + $0x998] sm:$0xff]
    %v498 = vld [vmem:[#allocation5 + $0x9a0] sm:$0xff]
    %v499 = vld [vmem:[#allocation5 + $0x9a8] sm:$0xff]
    %v500 = vld [vmem:[#allocation5 + $0x9b0] sm:$0xff]
    %v501 = vld [vmem:[#allocation5 + $0x9b8] sm:$0xff]
    %v502 = vld [vmem:[#allocation5 + $0x9c0] sm:$0xff]
    %v503 = vld [vmem:[#allocation5 + $0x9c8] sm:$0xff]
    %v504 = vld [vmem:[#allocation5 + $0x9d0] sm:$0xff]
    %v505 = vld [vmem:[#allocation5 + $0x9d8] sm:$0xff]
    %v506 = vld [vmem:[#allocation5 + $0x9e0] sm:$0xff]
    %v507 = vld [vmem:[#allocation5 + $0x9e8] sm:$0xff]
    %v508 = vld [vmem:[#allocation5 + $0x9f0] sm:$0xff]
    %v509 = vld [vmem:[#allocation5 + $0x9f8] sm:$0xff]
    %v510 = vld [vmem:[#allocation5 + $0xa00] sm:$0xff]
    %v511 = vld [vmem:[#allocation5 + $0xa08] sm:$0xff]
    %v512 = vld [vmem:[#allocation5 + $0xa10] sm:$0xff]
    %v513 = vld [vmem:[#allocation5 + $0xa18] sm:$0xff]
    %v514 = vld [vmem:[#allocation5 + $0xa20] sm:$0xff]
    %v515 = vld [vmem:[#allocation5 + $0xa28] sm:$0xff]
    %v516 = vld [vmem:[#allocation5 + $0xa30] sm:$0xff]
    %v517 = vld [vmem:[#allocation5 + $0xa38] sm:$0xff]
    %v518 = vld [vmem:[#allocation5 + $0xa40] sm:$0xff]
    %v519 = vld [vmem:[#allocation5 + $0xa48] sm:$0xff]
    %v520 = vld [vmem:[#allocation5 + $0xa50] sm:$0xff]
    %v521 = vld [vmem:[#allocation5 + $0xa58] sm:$0xff]
    %v522 = vld [vmem:[#allocation5 + $0xa60] sm:$0xff]
    %v523 = vld [vmem:[#allocation5 + $0xa68] sm:$0xff]
    %v524 = vld [vmem:[#allocation5 + $0xa70] sm:$0xff]
    %v525 = vld [vmem:[#allocation5 + $0xa78] sm:$0xff]
    %v526 = vld [vmem:[#allocation5 + $0xa80] sm:$0xff]
    %v527 = vld [vmem:[#allocation5 + $0xa88] sm:$0xff]
    %v528 = vld [vmem:[#allocation5 + $0xa90] sm:$0xff]
    %v529 = vld [vmem:[#allocation5 + $0xa98] sm:$0xff]
    %v530 = vld [vmem:[#allocation5 + $0xaa0] sm:$0xff]
    %v531 = vld [vmem:[#allocation5 + $0xaa8] sm:$0xff]
    %v532 = vld [vmem:[#allocation5 + $0xab0] sm:$0xff]
    %v533 = vld [vmem:[#allocation5 + $0xab8] sm:$0xff]
    %v534 = vld [vmem:[#allocation5 + $0xac0] sm:$0xff]
    %v535 = vld [vmem:[#allocation5 + $0xac8] sm:$0xff]
    %v536 = vld [vmem:[#allocation5 + $0xad0] sm:$0xff]
    %v537 = vld [vmem:[#allocation5 + $0xad8] sm:$0xff]
    %v538 = vld [vmem:[#allocation5 + $0xae0] sm:$0xff]
    %v539 = vld [vmem:[#allocation5 + $0xae8] sm:$0xff]
    %v540 = vld [vmem:[#allocation5 + $0xaf0] sm:$0xff]
    %v541 = vld [vmem:[#allocation5 + $0xaf8] sm:$0xff]
    %v542 = vld [vmem:[#allocation5 + $0xb00] sm:$0xff]
    %v543 = vld [vmem:[#allocation5 + $0xb08] sm:$0xff]
    %v544 = vld [vmem:[#allocation5 + $0xb10] sm:$0xff]
    %v545 = vld [vmem:[#allocation5 + $0xb18] sm:$0xff]
    %v546 = vld [vmem:[#allocation5 + $0xb20] sm:$0xff]
    %v547 = vld [vmem:[#allocation5 + $0xb28] sm:$0xff]
    %v548 = vld [vmem:[#allocation5 + $0xb30] sm:$0xff]
    %v549 = vld [vmem:[#allocation5 + $0xb38] sm:$0xff]
    %v550 = vld [vmem:[#allocation5 + $0xb40] sm:$0xff]
    %v551 = vld [vmem:[#allocation5 + $0xb48] sm:$0xff]
    %v552 = vld [vmem:[#allocation5 + $0xb50] sm:$0xff]
    %v553 = vld [vmem:[#allocation5 + $0xb58] sm:$0xff]
    %v554 = vld [vmem:[#allocation5 + $0xb60] sm:$0xff]
    %v555 = vld [vmem:[#allocation5 + $0xb68] sm:$0xff]
    %v556 = vld [vmem:[#allocation5 + $0xb70] sm:$0xff]
    %v557 = vld [vmem:[#allocation5 + $0xb78] sm:$0xff]
    %v558 = vld [vmem:[#allocation5 + $0xb80] sm:$0xff]
    %v559 = vld [vmem:[#allocation5 + $0xb88] sm:$0xff]
    %v560 = vld [vmem:[#allocation5 + $0xb90] sm:$0xff]
    %v561 = vld [vmem:[#allocation5 + $0xb98] sm:$0xff]
    %v562 = vld [vmem:[#allocation5 + $0xba0] sm:$0xff]
    %v563 = vld [vmem:[#allocation5 + $0xba8] sm:$0xff]
    %v564 = vld [vmem:[#allocation5 + $0xbb0] sm:$0xff]
    %v565 = vld [vmem:[#allocation5 + $0xbb8] sm:$0xff]
    %v566 = vld [vmem:[#allocation5 + $0xbc0] sm:$0xff]
    %v567 = vld [vmem:[#allocation5 + $0xbc8] sm:$0xff]
    %v568 = vld [vmem:[#allocation5 + $0xbd0] sm:$0xff]
    %v569 = vld [vmem:[#allocation5 + $0xbd8] sm:$0xff]
    %v570 = vld [vmem:[#allocation5 + $0xbe0] sm:$0xff]
    %v571 = vld [vmem:[#allocation5 + $0xbe8] sm:$0xff]
    %v572 = vld [vmem:[#allocation5 + $0xbf0] sm:$0xff]
    %v573 = vld [vmem:[#allocation5 + $0xbf8] sm:$0xff]
    %v574 = vld [vmem:[#allocation5 + $0xc00] sm:$0xff]
    %v575 = vld [vmem:[#allocation5 + $0xc08] sm:$0xff]
    %v576 = vld [vmem:[#allocation5 + $0xc10] sm:$0xff]
    %v577 = vld [vmem:[#allocation5 + $0xc18] sm:$0xff]
    %v578 = vld [vmem:[#allocation5 + $0xc20] sm:$0xff]
    %v579 = vld [vmem:[#allocation5 + $0xc28] sm:$0xff]
    %v580 = vld [vmem:[#allocation5 + $0xc30] sm:$0xff]
    %v581 = vld [vmem:[#allocation5 + $0xc38] sm:$0xff]
    %v582 = vld [vmem:[#allocation5 + $0xc40] sm:$0xff]
    %v583 = vld [vmem:[#allocation5 + $0xc48] sm:$0xff]
    %v584 = vld [vmem:[#allocation5 + $0xc50] sm:$0xff]
    %v585 = vld [vmem:[#allocation5 + $0xc58] sm:$0xff]
    %v586 = vld [vmem:[#allocation5 + $0xc60] sm:$0xff]
    %v587 = vld [vmem:[#allocation5 + $0xc68] sm:$0xff]
    %v588 = vld [vmem:[#allocation5 + $0xc70] sm:$0xff]
    %v589 = vld [vmem:[#allocation5 + $0xc78] sm:$0xff]
    %v590 = vld [vmem:[#allocation5 + $0xc80] sm:$0xff]
    %v591 = vld [vmem:[#allocation5 + $0xc88] sm:$0xff]
    %v592 = vld [vmem:[#allocation5 + $0xc90] sm:$0xff]
    %v593 = vld [vmem:[#allocation5 + $0xc98] sm:$0xff]
    %v594 = vld [vmem:[#allocation5 + $0xca0] sm:$0xff]
    %v595 = vld [vmem:[#allocation5 + $0xca8] sm:$0xff]
    %v596 = vld [vmem:[#allocation5 + $0xcb0] sm:$0xff]
    %v597 = vld [vmem:[#allocation5 + $0xcb8] sm:$0xff]
    %v598 = vld [vmem:[#allocation5 + $0xcc0] sm:$0xff]
    %v599 = vld [vmem:[#allocation5 + $0xcc8] sm:$0xff]
    %v600 = vld [vmem:[#allocation5 + $0xcd0] sm:$0xff]
    %v601 = vld [vmem:[#allocation5 + $0xcd8] sm:$0xff]
    %v602 = vld [vmem:[#allocation5 + $0xce0] sm:$0xff]
    %v603 = vld [vmem:[#allocation5 + $0xce8] sm:$0xff]
    %v604 = vld [vmem:[#allocation5 + $0xcf0] sm:$0xff]
    %v605 = vld [vmem:[#allocation5 + $0xcf8] sm:$0xff]
    %v606 = vld [vmem:[#allocation5 + $0xd00] sm:$0xff]
    %v607 = vld [vmem:[#allocation5 + $0xd08] sm:$0xff]
    %v608 = vld [vmem:[#allocation5 + $0xd10] sm:$0xff]
    %v609 = vld [vmem:[#allocation5 + $0xd18] sm:$0xff]
    %v610 = vld [vmem:[#allocation5 + $0xd20] sm:$0xff]
    %v611 = vld [vmem:[#allocation5 + $0xd28] sm:$0xff]
    %v612 = vld [vmem:[#allocation5 + $0xd30] sm:$0xff]
    %v613 = vld [vmem:[#allocation5 + $0xd38] sm:$0xff]
    %v614 = vld [vmem:[#allocation5 + $0xd40] sm:$0xff]
    %v615 = vld [vmem:[#allocation5 + $0xd48] sm:$0xff]
    %v616 = vld [vmem:[#allocation5 + $0xd50] sm:$0xff]
    %v617 = vld [vmem:[#allocation5 + $0xd58] sm:$0xff]
    %v618 = vld [vmem:[#allocation5 + $0xd60] sm:$0xff]
    %v619 = vld [vmem:[#allocation5 + $0xd68] sm:$0xff]
    %v620 = vld [vmem:[#allocation5 + $0xd70] sm:$0xff]
    %v621 = vld [vmem:[#allocation5 + $0xd78] sm:$0xff]
    %v622 = vld [vmem:[#allocation5 + $0xd80] sm:$0xff]
    %v623 = vld [vmem:[#allocation5 + $0xd88] sm:$0xff]
    %v624 = vld [vmem:[#allocation5 + $0xd90] sm:$0xff]
    %v625 = vld [vmem:[#allocation5 + $0xd98] sm:$0xff]
    %v626 = vld [vmem:[#allocation5 + $0xda0] sm:$0xff]
    %v627 = vld [vmem:[#allocation5 + $0xda8] sm:$0xff]
    %v628 = vld [vmem:[#allocation5 + $0xdb0] sm:$0xff]
    %v629 = vld [vmem:[#allocation5 + $0xdb8] sm:$0xff]
    %v630 = vld [vmem:[#allocation5 + $0xdc0] sm:$0xff]
    %v631 = vld [vmem:[#allocation5 + $0xdc8] sm:$0xff]
    %v632 = vld [vmem:[#allocation5 + $0xdd0] sm:$0xff]
    %v633 = vld [vmem:[#allocation5 + $0xdd8] sm:$0xff]
    %v634 = vld [vmem:[#allocation5 + $0xde0] sm:$0xff]
    %v635 = vld [vmem:[#allocation5 + $0xde8] sm:$0xff]
    %v636 = vld [vmem:[#allocation5 + $0xdf0] sm:$0xff]
    %v637 = vld [vmem:[#allocation5 + $0xdf8] sm:$0xff]
    %v638 = vld [vmem:[#allocation5 + $0xe00] sm:$0xff]
    %v639 = vld [vmem:[#allocation5 + $0xe08] sm:$0xff]
    %v640 = vld [vmem:[#allocation5 + $0xe10] sm:$0xff]
    %v641 = vld [vmem:[#allocation5 + $0xe18] sm:$0xff]
    %v642 = vld [vmem:[#allocation5 + $0xe20] sm:$0xff]
    %v643 = vld [vmem:[#allocation5 + $0xe28] sm:$0xff]
    %v644 = vld [vmem:[#allocation5 + $0xe30] sm:$0xff]
    %v645 = vld [vmem:[#allocation5 + $0xe38] sm:$0xff]
    %v646 = vld [vmem:[#allocation5 + $0xe40] sm:$0xff]
    %v647 = vld [vmem:[#allocation5 + $0xe48] sm:$0xff]
    %v648 = vld [vmem:[#allocation5 + $0xe50] sm:$0xff]
    %v649 = vld [vmem:[#allocation5 + $0xe58] sm:$0xff]
    %v650 = vld [vmem:[#allocation5 + $0xe60] sm:$0xff]
    %v651 = vld [vmem:[#allocation5 + $0xe68] sm:$0xff]
    %v652 = vld [vmem:[#allocation5 + $0xe70] sm:$0xff]
    %v653 = vld [vmem:[#allocation5 + $0xe78] sm:$0xff]
    %v654 = vld [vmem:[#allocation5 + $0xe80] sm:$0xff]
    %v655 = vld [vmem:[#allocation5 + $0xe88] sm:$0xff]
    %v656 = vld [vmem:[#allocation5 + $0xe90] sm:$0xff]
    %v657 = vld [vmem:[#allocation5 + $0xe98] sm:$0xff]
    %v658 = vld [vmem:[#allocation5 + $0xea0] sm:$0xff]
    %v659 = vld [vmem:[#allocation5 + $0xea8] sm:$0xff]
    %v660 = vld [vmem:[#allocation5 + $0xeb0] sm:$0xff]
    %v661 = vld [vmem:[#allocation5 + $0xeb8] sm:$0xff]
    %v662 = vld [vmem:[#allocation5 + $0xec0] sm:$0xff]
    %v663 = vld [vmem:[#allocation5 + $0xec8] sm:$0xff]
    %v664 = vld [vmem:[#allocation5 + $0xed0] sm:$0xff]
    %v665 = vld [vmem:[#allocation5 + $0xed8] sm:$0xff]
    %v666 = vld [vmem:[#allocation5 + $0xee0] sm:$0xff]
    %v667 = vld [vmem:[#allocation5 + $0xee8] sm:$0xff]
    %v668 = vld [vmem:[#allocation5 + $0xef0] sm:$0xff]
    %v669 = vld [vmem:[#allocation5 + $0xef8] sm:$0xff]
    %v670 = vld [vmem:[#allocation5 + $0xf00] sm:$0xff]
    %v671 = vld [vmem:[#allocation5 + $0xf08] sm:$0xff]
    %v672 = vld [vmem:[#allocation5 + $0xf10] sm:$0xff]
    %v673 = vld [vmem:[#allocation5 + $0xf18] sm:$0xff]
    %v674 = vld [vmem:[#allocation5 + $0xf20] sm:$0xff]
    %v675 = vld [vmem:[#allocation5 + $0xf28] sm:$0xff]
    %v676 = vld [vmem:[#allocation5 + $0xf30] sm:$0xff]
    %v677 = vld [vmem:[#allocation5 + $0xf38] sm:$0xff]
    %v678 = vld [vmem:[#allocation5 + $0xf40] sm:$0xff]
    %v679 = vld [vmem:[#allocation5 + $0xf48] sm:$0xff]
    %v680 = vld [vmem:[#allocation5 + $0xf50] sm:$0xff]
    %v681 = vld [vmem:[#allocation5 + $0xf58] sm:$0xff]
    %v682 = vld [vmem:[#allocation5 + $0xf60] sm:$0xff]
    %v683 = vld [vmem:[#allocation5 + $0xf68] sm:$0xff]
    %v684 = vld [vmem:[#allocation5 + $0xf70] sm:$0xff]
    %v685 = vld [vmem:[#allocation5 + $0xf78] sm:$0xff]
    %v686 = vld [vmem:[#allocation5 + $0xf80] sm:$0xff]
    %v687 = vld [vmem:[#allocation5 + $0xf88] sm:$0xff]
    %v688 = vld [vmem:[#allocation5 + $0xf90] sm:$0xff]
    %v689 = vld [vmem:[#allocation5 + $0xf98] sm:$0xff]
    %v690 = vld [vmem:[#allocation5 + $0xfa0] sm:$0xff]
    %v691 = vld [vmem:[#allocation5 + $0xfa8] sm:$0xff]
    %v692 = vld [vmem:[#allocation5 + $0xfb0] sm:$0xff]
    %v693 = vld [vmem:[#allocation5 + $0xfb8] sm:$0xff]
    %v694 = vld [vmem:[#allocation5 + $0xfc0] sm:$0xff]
    %v695 = vld [vmem:[#allocation5 + $0xfc8] sm:$0xff]
    %v696 = vld [vmem:[#allocation5 + $0xfd0] sm:$0xff]
    %v697 = vld [vmem:[#allocation5 + $0xfd8] sm:$0xff]
    %v698 = vld [vmem:[#allocation5 + $0xfe0] sm:$0xff]
    %v699 = vld [vmem:[#allocation5 + $0xfe8] sm:$0xff]
    %v700 = vld [vmem:[#allocation5 + $0xff0] sm:$0xff]
    %v701 = vld [vmem:[#allocation5 + $0xff8] sm:$0xff]
    %v702 = vld [vmem:[#allocation5 + $0x1000] sm:$0xff]
    %v703 = vld [vmem:[#allocation5 + $0x1008] sm:$0xff]
    %v704 = vld [vmem:[#allocation5 + $0x1010] sm:$0xff]
    %v705 = vld [vmem:[#allocation5 + $0x1018] sm:$0xff]
    %v706 = vld [vmem:[#allocation5 + $0x1020] sm:$0xff]
    %v707 = vld [vmem:[#allocation5 + $0x1028] sm:$0xff]
    %v708 = vld [vmem:[#allocation5 + $0x1030] sm:$0xff]
    %v709 = vld [vmem:[#allocation5 + $0x1038] sm:$0xff]
    %v710 = vld [vmem:[#allocation5 + $0x1040] sm:$0xff]
    %v711 = vld [vmem:[#allocation5 + $0x1048] sm:$0xff]
    %v712 = vld [vmem:[#allocation5 + $0x1050] sm:$0xff]
    %v713 = vld [vmem:[#allocation5 + $0x1058] sm:$0xff]
    %v714 = vld [vmem:[#allocation5 + $0x1060] sm:$0xff]
    %v715 = vld [vmem:[#allocation5 + $0x1068] sm:$0xff]
    %v716 = vld [vmem:[#allocation5 + $0x1070] sm:$0xff]
    %v717 = vld [vmem:[#allocation5 + $0x1078] sm:$0xff]
    %v718 = vld [vmem:[#allocation5 + $0x1080] sm:$0xff]
    %v719 = vld [vmem:[#allocation5 + $0x1088] sm:$0xff]
    %v720 = vld [vmem:[#allocation5 + $0x1090] sm:$0xff]
    %v721 = vld [vmem:[#allocation5 + $0x1098] sm:$0xff]
    %v722 = vld [vmem:[#allocation5 + $0x10a0] sm:$0xff]
    %v723 = vld [vmem:[#allocation5 + $0x10a8] sm:$0xff]
    %v724 = vld [vmem:[#allocation5 + $0x10b0] sm:$0xff]
    %v725 = vld [vmem:[#allocation5 + $0x10b8] sm:$0xff]
    %v726 = vld [vmem:[#allocation5 + $0x10c0] sm:$0xff]
    %v727 = vld [vmem:[#allocation5 + $0x10c8] sm:$0xff]
    %v728 = vld [vmem:[#allocation5 + $0x10d0] sm:$0xff]
    %v729 = vld [vmem:[#allocation5 + $0x10d8] sm:$0xff]
    %v730 = vld [vmem:[#allocation5 + $0x10e0] sm:$0xff]
    %v731 = vld [vmem:[#allocation5 + $0x10e8] sm:$0xff]
    %v732 = vld [vmem:[#allocation5 + $0x10f0] sm:$0xff]
    %v733 = vld [vmem:[#allocation5 + $0x10f8] sm:$0xff]
    %v734 = vld [vmem:[#allocation5 + $0x1100] sm:$0xff]
    %v735 = vld [vmem:[#allocation5 + $0x1108] sm:$0xff]
    %v736 = vld [vmem:[#allocation5 + $0x1110] sm:$0xff]
    %v737 = vld [vmem:[#allocation5 + $0x1118] sm:$0xff]
    %v738 = vld [vmem:[#allocation5 + $0x1120] sm:$0xff]
    %v739 = vld [vmem:[#allocation5 + $0x1128] sm:$0xff]
    %v740 = vld [vmem:[#allocation5 + $0x1130] sm:$0xff]
    %v741 = vld [vmem:[#allocation5 + $0x1138] sm:$0xff]
    %v742 = vld [vmem:[#allocation5 + $0x1140] sm:$0xff]
    %v743 = vld [vmem:[#allocation5 + $0x1148] sm:$0xff]
    %v744 = vld [vmem:[#allocation5 + $0x1150] sm:$0xff]
    %v745 = vld [vmem:[#allocation5 + $0x1158] sm:$0xff]
    %v746 = vld [vmem:[#allocation5 + $0x1160] sm:$0xff]
    %v747 = vld [vmem:[#allocation5 + $0x1168] sm:$0xff]
    %v748 = vld [vmem:[#allocation5 + $0x1170] sm:$0xff]
    %v749 = vld [vmem:[#allocation5 + $0x1178] sm:$0xff]
    %v750 = vld [vmem:[#allocation5 + $0x1180] sm:$0xff]
    %v751 = vld [vmem:[#allocation5 + $0x1188] sm:$0xff]
    %v752 = vld [vmem:[#allocation5 + $0x1190] sm:$0xff]
    %v753 = vld [vmem:[#allocation5 + $0x1198] sm:$0xff]
    %v754 = vld [vmem:[#allocation5 + $0x11a0] sm:$0xff]
    %v755 = vld [vmem:[#allocation5 + $0x11a8] sm:$0xff]
    %v756 = vld [vmem:[#allocation5 + $0x11b0] sm:$0xff]
    %v757 = vld [vmem:[#allocation5 + $0x11b8] sm:$0xff]
    %v758 = vld [vmem:[#allocation5 + $0x11c0] sm:$0xff]
    %v759 = vld [vmem:[#allocation5 + $0x11c8] sm:$0xff]
    %v760 = vld [vmem:[#allocation5 + $0x11d0] sm:$0xff]
    %v761 = vld [vmem:[#allocation5 + $0x11d8] sm:$0xff]
    %v762 = vld [vmem:[#allocation5 + $0x11e0] sm:$0xff]
    %v763 = vld [vmem:[#allocation5 + $0x11e8] sm:$0xff]
    %v764 = vld [vmem:[#allocation5 + $0x11f0] sm:$0xff]
    %v765 = vld [vmem:[#allocation5 + $0x11f8] sm:$0xff]
    %v766 = vld [vmem:[#allocation5 + $0x1200] sm:$0xff]
    %v767 = vld [vmem:[#allocation5 + $0x1208] sm:$0xff]
    %v768 = vld [vmem:[#allocation5 + $0x1210] sm:$0xff]
    %v769 = vld [vmem:[#allocation5 + $0x1218] sm:$0xff]
    %v770 = vld [vmem:[#allocation5 + $0x1220] sm:$0xff]
    %v771 = vld [vmem:[#allocation5 + $0x1228] sm:$0xff]
    %v772 = vld [vmem:[#allocation5 + $0x1230] sm:$0xff]
    %v773 = vld [vmem:[#allocation5 + $0x1238] sm:$0xff]
    %v774 = vld [vmem:[#allocation5 + $0x1240] sm:$0xff]
    %v775 = vld [vmem:[#allocation5 + $0x1248] sm:$0xff]
    %v776 = vld [vmem:[#allocation5 + $0x1250] sm:$0xff]
    %v777 = vld [vmem:[#allocation5 + $0x1258] sm:$0xff]
    %v778 = vld [vmem:[#allocation5 + $0x1260] sm:$0xff]
    %v779 = vld [vmem:[#allocation5 + $0x1268] sm:$0xff]
    %v780 = vld [vmem:[#allocation5 + $0x1270] sm:$0xff]
    %v781 = vld [vmem:[#allocation5 + $0x1278] sm:$0xff]
    %v782 = vld [vmem:[#allocation5 + $0x1280] sm:$0xff]
    %v783 = vld [vmem:[#allocation5 + $0x1288] sm:$0xff]
    %v784 = vld [vmem:[#allocation5 + $0x1290] sm:$0xff]
    %v785 = vld [vmem:[#allocation5 + $0x1298] sm:$0xff]
    %v786 = vld [vmem:[#allocation5 + $0x12a0] sm:$0xff]
    %v787 = vld [vmem:[#allocation5 + $0x12a8] sm:$0xff]
    %v788 = vld [vmem:[#allocation5 + $0x12b0] sm:$0xff]
    %v789 = vld [vmem:[#allocation5 + $0x12b8] sm:$0xff]
    %v790 = vld [vmem:[#allocation5 + $0x12c0] sm:$0xff]
    %v791 = vld [vmem:[#allocation5 + $0x12c8] sm:$0xff]
    %v792 = vld [vmem:[#allocation5 + $0x12d0] sm:$0xff]
    %v793 = vld [vmem:[#allocation5 + $0x12d8] sm:$0xff]
    %v794 = vld [vmem:[#allocation5 + $0x12e0] sm:$0xff]
    %v795 = vld [vmem:[#allocation5 + $0x12e8] sm:$0xff]
    %v796 = vld [vmem:[#allocation5 + $0x12f0] sm:$0xff]
    %v797 = vld [vmem:[#allocation5 + $0x12f8] sm:$0xff]
    %v798 = vld [vmem:[#allocation5 + $0x1300] sm:$0xff]
    %v799 = vld [vmem:[#allocation5 + $0x1308] sm:$0xff]
    %v800 = vld [vmem:[#allocation5 + $0x1310] sm:$0xff]
    %v801 = vld [vmem:[#allocation5 + $0x1318] sm:$0xff]
    %v802 = vld [vmem:[#allocation5 + $0x1320] sm:$0xff]
    %v803 = vld [vmem:[#allocation5 + $0x1328] sm:$0xff]
    %v804 = vld [vmem:[#allocation5 + $0x1330] sm:$0xff]
    %v805 = vld [vmem:[#allocation5 + $0x1338] sm:$0xff]
    %v806 = vld [vmem:[#allocation5 + $0x1340] sm:$0xff]
    %v807 = vld [vmem:[#allocation5 + $0x1348] sm:$0xff]
    %v808 = vld [vmem:[#allocation5 + $0x1350] sm:$0xff]
    %v809 = vld [vmem:[#allocation5 + $0x1358] sm:$0xff]
    %v810 = vld [vmem:[#allocation5 + $0x1360] sm:$0xff]
    %v811 = vld [vmem:[#allocation5 + $0x1368] sm:$0xff]
    %v812 = vld [vmem:[#allocation5 + $0x1370] sm:$0xff]
    %v813 = vld [vmem:[#allocation5 + $0x1378] sm:$0xff]
    %v814 = vld [vmem:[#allocation5 + $0x1380] sm:$0xff]
    %v815 = vld [vmem:[#allocation5 + $0x1388] sm:$0xff]
    %v816 = vld [vmem:[#allocation5 + $0x1390] sm:$0xff]
    %v817 = vld [vmem:[#allocation5 + $0x1398] sm:$0xff]
    %v818 = vld [vmem:[#allocation5 + $0x13a0] sm:$0xff]
    %v819 = vld [vmem:[#allocation5 + $0x13a8] sm:$0xff]
    %v820 = vld [vmem:[#allocation5 + $0x13b0] sm:$0xff]
    %v821 = vld [vmem:[#allocation5 + $0x13b8] sm:$0xff]
    %v822 = vld [vmem:[#allocation5 + $0x13c0] sm:$0xff]
    %v823 = vld [vmem:[#allocation5 + $0x13c8] sm:$0xff]
    %v824 = vld [vmem:[#allocation5 + $0x13d0] sm:$0xff]
    %v825 = vld [vmem:[#allocation5 + $0x13d8] sm:$0xff]
    %v826 = vld [vmem:[#allocation5 + $0x13e0] sm:$0xff]
    %v827 = vld [vmem:[#allocation5 + $0x13e8] sm:$0xff]
    %v828 = vld [vmem:[#allocation5 + $0x13f0] sm:$0xff]
    %v829 = vld [vmem:[#allocation5 + $0x13f8] sm:$0xff]
    %v830 = vld [vmem:[#allocation5 + $0x1400] sm:$0xff]
    %v831 = vld [vmem:[#allocation5 + $0x1408] sm:$0xff]
    %v832 = vld [vmem:[#allocation5 + $0x1410] sm:$0xff]
    %v833 = vld [vmem:[#allocation5 + $0x1418] sm:$0xff]
    %v834 = vld [vmem:[#allocation5 + $0x1420] sm:$0xff]
    %v835 = vld [vmem:[#allocation5 + $0x1428] sm:$0xff]
    %v836 = vld [vmem:[#allocation5 + $0x1430] sm:$0xff]
    %v837 = vld [vmem:[#allocation5 + $0x1438] sm:$0xff]
    %v838 = vld [vmem:[#allocation5 + $0x1440] sm:$0xff]
    %v839 = vld [vmem:[#allocation5 + $0x1448] sm:$0xff]
    %v840 = vld [vmem:[#allocation5 + $0x1450] sm:$0xff]
    %v841 = vld [vmem:[#allocation5 + $0x1458] sm:$0xff]
    %v842 = vld [vmem:[#allocation5 + $0x1460] sm:$0xff]
    %v843 = vld [vmem:[#allocation5 + $0x1468] sm:$0xff]
    %v844 = vld [vmem:[#allocation5 + $0x1470] sm:$0xff]
    %v845 = vld [vmem:[#allocation5 + $0x1478] sm:$0xff]
    %v846 = vld [vmem:[#allocation5 + $0x1480] sm:$0xff]
    %v847 = vld [vmem:[#allocation5 + $0x1488] sm:$0xff]
    %v848 = vld [vmem:[#allocation5 + $0x1490] sm:$0xff]
    %v849 = vld [vmem:[#allocation5 + $0x1498] sm:$0xff]
    %v850 = vld [vmem:[#allocation5 + $0x14a0] sm:$0xff]
    %v851 = vld [vmem:[#allocation5 + $0x14a8] sm:$0xff]
    %v852 = vld [vmem:[#allocation5 + $0x14b0] sm:$0xff]
    %v853 = vld [vmem:[#allocation5 + $0x14b8] sm:$0xff]
    %v854 = vld [vmem:[#allocation5 + $0x14c0] sm:$0xff]
    %v855 = vld [vmem:[#allocation5 + $0x14c8] sm:$0xff]
    %v856 = vld [vmem:[#allocation5 + $0x14d0] sm:$0xff]
    %v857 = vld [vmem:[#allocation5 + $0x14d8] sm:$0xff]
    %v858 = vld [vmem:[#allocation5 + $0x14e0] sm:$0xff]
    %v859 = vld [vmem:[#allocation5 + $0x14e8] sm:$0xff]
    %v860 = vld [vmem:[#allocation5 + $0x14f0] sm:$0xff]
    %v861 = vld [vmem:[#allocation5 + $0x14f8] sm:$0xff]
    %v862 = vld [vmem:[#allocation5 + $0x1500] sm:$0xff]
    %v863 = vld [vmem:[#allocation5 + $0x1508] sm:$0xff]
    %v864 = vld [vmem:[#allocation5 + $0x1510] sm:$0xff]
    %v865 = vld [vmem:[#allocation5 + $0x1518] sm:$0xff]
    %v866 = vld [vmem:[#allocation5 + $0x1520] sm:$0xff]
    %v867 = vld [vmem:[#allocation5 + $0x1528] sm:$0xff]
    %v868 = vld [vmem:[#allocation5 + $0x1530] sm:$0xff]
    %v869 = vld [vmem:[#allocation5 + $0x1538] sm:$0xff]
    %v870 = vld [vmem:[#allocation5 + $0x1540] sm:$0xff]
    %v871 = vld [vmem:[#allocation5 + $0x1548] sm:$0xff]
    %v872 = vld [vmem:[#allocation5 + $0x1550] sm:$0xff]
    %v873 = vld [vmem:[#allocation5 + $0x1558] sm:$0xff]
    %v874 = vld [vmem:[#allocation5 + $0x1560] sm:$0xff]
    %v875 = vld [vmem:[#allocation5 + $0x1568] sm:$0xff]
    %v876 = vld [vmem:[#allocation5 + $0x1570] sm:$0xff]
    %v877 = vld [vmem:[#allocation5 + $0x1578] sm:$0xff]
    %v878 = vld [vmem:[#allocation5 + $0x1580] sm:$0xff]
    %v879 = vld [vmem:[#allocation5 + $0x1588] sm:$0xff]
    %v880 = vld [vmem:[#allocation5 + $0x1590] sm:$0xff]
    %v881 = vld [vmem:[#allocation5 + $0x1598] sm:$0xff]
    %v882 = vld [vmem:[#allocation5 + $0x15a0] sm:$0xff]
    %v883 = vld [vmem:[#allocation5 + $0x15a8] sm:$0xff]
    %v884 = vld [vmem:[#allocation5 + $0x15b0] sm:$0xff]
    %v885 = vld [vmem:[#allocation5 + $0x15b8] sm:$0xff]
    %v886 = vld [vmem:[#allocation5 + $0x15c0] sm:$0xff]
    %v887 = vld [vmem:[#allocation5 + $0x15c8] sm:$0xff]
    %v888 = vld [vmem:[#allocation5 + $0x15d0] sm:$0xff]
    %v889 = vld [vmem:[#allocation5 + $0x15d8] sm:$0xff]
    %v890 = vld [vmem:[#allocation5 + $0x15e0] sm:$0xff]
    %v891 = vld [vmem:[#allocation5 + $0x15e8] sm:$0xff]
    %v892 = vld [vmem:[#allocation5 + $0x15f0] sm:$0xff]
    %v893 = vld [vmem:[#allocation5 + $0x15f8] sm:$0xff]
    %v894 = vld [vmem:[#allocation5 + $0x1600] sm:$0xff]
    %v895 = vld [vmem:[#allocation5 + $0x1608] sm:$0xff]
    %v896 = vld [vmem:[#allocation5 + $0x1610] sm:$0xff]
    %v897 = vld [vmem:[#allocation5 + $0x1618] sm:$0xff]
    %v898 = vld [vmem:[#allocation5 + $0x1620] sm:$0xff]
    %v899 = vld [vmem:[#allocation5 + $0x1628] sm:$0xff]
    %v900 = vld [vmem:[#allocation5 + $0x1630] sm:$0xff]
    %v901 = vld [vmem:[#allocation5 + $0x1638] sm:$0xff]
    %v902 = vld [vmem:[#allocation5 + $0x1640] sm:$0xff]
    %v903 = vld [vmem:[#allocation5 + $0x1648] sm:$0xff]
    %v904 = vld [vmem:[#allocation5 + $0x1650] sm:$0xff]
    %v905 = vld [vmem:[#allocation5 + $0x1658] sm:$0xff]
    %v906 = vld [vmem:[#allocation5 + $0x1660] sm:$0xff]
    %v907 = vld [vmem:[#allocation5 + $0x1668] sm:$0xff]
    %v908 = vld [vmem:[#allocation5 + $0x1670] sm:$0xff]
    %v909 = vld [vmem:[#allocation5 + $0x1678] sm:$0xff]
    %v910 = vld [vmem:[#allocation5 + $0x1680] sm:$0xff]
    %v911 = vld [vmem:[#allocation5 + $0x1688] sm:$0xff]
    %v912 = vld [vmem:[#allocation5 + $0x1690] sm:$0xff]
    %v913 = vld [vmem:[#allocation5 + $0x1698] sm:$0xff]
    %v914 = vld [vmem:[#allocation5 + $0x16a0] sm:$0xff]
    %v915 = vld [vmem:[#allocation5 + $0x16a8] sm:$0xff]
    %v916 = vld [vmem:[#allocation5 + $0x16b0] sm:$0xff]
    %v917 = vld [vmem:[#allocation5 + $0x16b8] sm:$0xff]
    %v918 = vld [vmem:[#allocation5 + $0x16c0] sm:$0xff]
    %v919 = vld [vmem:[#allocation5 + $0x16c8] sm:$0xff]
    %v920 = vld [vmem:[#allocation5 + $0x16d0] sm:$0xff]
    %v921 = vld [vmem:[#allocation5 + $0x16d8] sm:$0xff]
    %v922 = vld [vmem:[#allocation5 + $0x16e0] sm:$0xff]
    %v923 = vld [vmem:[#allocation5 + $0x16e8] sm:$0xff]
    %v924 = vld [vmem:[#allocation5 + $0x16f0] sm:$0xff]
    %v925 = vld [vmem:[#allocation5 + $0x16f8] sm:$0xff]
    %v926 = vld [vmem:[#allocation5 + $0x1700] sm:$0xff]
    %v927 = vld [vmem:[#allocation5 + $0x1708] sm:$0xff]
    %v928 = vld [vmem:[#allocation5 + $0x1710] sm:$0xff]
    %v929 = vld [vmem:[#allocation5 + $0x1718] sm:$0xff]
    %v930 = vld [vmem:[#allocation5 + $0x1720] sm:$0xff]
    %v931 = vld [vmem:[#allocation5 + $0x1728] sm:$0xff]
    %v932 = vld [vmem:[#allocation5 + $0x1730] sm:$0xff]
    %v933 = vld [vmem:[#allocation5 + $0x1738] sm:$0xff]
    %v934 = vld [vmem:[#allocation5 + $0x1740] sm:$0xff]
    %v935 = vld [vmem:[#allocation5 + $0x1748] sm:$0xff]
    %v936 = vld [vmem:[#allocation5 + $0x1750] sm:$0xff]
    %v937 = vld [vmem:[#allocation5 + $0x1758] sm:$0xff]
    %v938 = vld [vmem:[#allocation5 + $0x1760] sm:$0xff]
    %v939 = vld [vmem:[#allocation5 + $0x1768] sm:$0xff]
    %v940 = vld [vmem:[#allocation5 + $0x1770] sm:$0xff]
    %v941 = vld [vmem:[#allocation5 + $0x1778] sm:$0xff]
    %v942 = vld [vmem:[#allocation5 + $0x1780] sm:$0xff]
    %v943 = vld [vmem:[#allocation5 + $0x1788] sm:$0xff]
    %v944 = vld [vmem:[#allocation5 + $0x1790] sm:$0xff]
    %v945 = vld [vmem:[#allocation5 + $0x1798] sm:$0xff]
    %v946 = vld [vmem:[#allocation5 + $0x17a0] sm:$0xff]
    %v947 = vld [vmem:[#allocation5 + $0x17a8] sm:$0xff]
    %v948 = vld [vmem:[#allocation5 + $0x17b0] sm:$0xff]
    %v949 = vld [vmem:[#allocation5 + $0x17b8] sm:$0xff]
    %v950 = vld [vmem:[#allocation5 + $0x17c0] sm:$0xff]
    %v951 = vld [vmem:[#allocation5 + $0x17c8] sm:$0xff]
    %v952 = vld [vmem:[#allocation5 + $0x17d0] sm:$0xff]
    %v953 = vld [vmem:[#allocation5 + $0x17d8] sm:$0xff]
    %v954 = vld [vmem:[#allocation5 + $0x17e0] sm:$0xff]
    %v955 = vld [vmem:[#allocation5 + $0x17e8] sm:$0xff]
    %v956 = vld [vmem:[#allocation5 + $0x17f0] sm:$0xff]
    %v957 = vld [vmem:[#allocation5 + $0x17f8] sm:$0xff]
    %v958 = vld [vmem:[#allocation7] sm:$0xf]
    %v960 = vlaneseq
    %v961 = vshrl.u32 %v960, 7
    %v962 = vsub.s32 0, %v961
    %v963 = vrot.slane %v958, %v962
    %v964 = vlaneseq
    %v965 = vshrl.u32 %v964, 7
    %v966 = vsub.s32 1, %v965
    %v967 = vrot.slane %v958, %v966
    %v968 = vlaneseq
    %v969 = vshrl.u32 %v968, 7
    %v970 = vsub.s32 2, %v969
    %v971 = vrot.slane %v958, %v970
    %v972 = vlaneseq
    %v973 = vshrl.u32 %v972, 7
    %v974 = vsub.s32 3, %v973
    %v975 = vrot.slane %v958, %v974
    %v1004 = vunpack.c.l.b16 %v166
    %v1005 = vunpack.c.h.b16 %v166
    %v1006 = vunpack.c.l.b16 %v167
    %v1007 = vunpack.c.h.b16 %v167
    %v1008 = vunpack.c.l.b16 %v168
    %v1009 = vunpack.c.h.b16 %v168
    %v1010 = vunpack.c.l.b16 %v169
    %v1011 = vunpack.c.h.b16 %v169
    %v1012 = vunpack.c.l.b16 %v170
    %v1013 = vunpack.c.h.b16 %v170
    %v1014 = vunpack.c.l.b16 %v171
    %v1015 = vunpack.c.h.b16 %v171
    %v1016 = vunpack.c.l.b16 %v172
    %v1017 = vunpack.c.h.b16 %v172
    %v1018 = vunpack.c.l.b16 %v173
    %v1019 = vunpack.c.h.b16 %v173
    %v1020 = vunpack.c.l.b16 %v174
    %v1021 = vunpack.c.h.b16 %v174
    %v1022 = vunpack.c.l.b16 %v175
    %v1023 = vunpack.c.h.b16 %v175
    %v1024 = vunpack.c.l.b16 %v176
    %v1025 = vunpack.c.h.b16 %v176
    %v1026 = vunpack.c.l.b16 %v177
    %v1027 = vunpack.c.h.b16 %v177
    %v1028 = vunpack.c.l.b16 %v178
    %v1029 = vunpack.c.h.b16 %v178
    %v1030 = vunpack.c.l.b16 %v179
    %v1031 = vunpack.c.h.b16 %v179
    %v1032 = vunpack.c.l.b16 %v180
    %v1033 = vunpack.c.h.b16 %v180
    %v1034 = vunpack.c.l.b16 %v181
    %v1035 = vunpack.c.h.b16 %v181
    %v1036 = vunpack.c.l.b16 %v182
    %v1037 = vunpack.c.h.b16 %v182
    %v1038 = vunpack.c.l.b16 %v183
    %v1039 = vunpack.c.h.b16 %v183
    %v1040 = vunpack.c.l.b16 %v184
    %v1041 = vunpack.c.h.b16 %v184
    %v1042 = vunpack.c.l.b16 %v185
    %v1043 = vunpack.c.h.b16 %v185
    %v1044 = vunpack.c.l.b16 %v186
    %v1045 = vunpack.c.h.b16 %v186
    %v1046 = vunpack.c.l.b16 %v187
    %v1047 = vunpack.c.h.b16 %v187
    %v1048 = vunpack.c.l.b16 %v188
    %v1049 = vunpack.c.h.b16 %v188
    %v1050 = vunpack.c.l.b16 %v189
    %v1051 = vunpack.c.h.b16 %v189
    %v1052 = vpack.c.b16 %v1028, %v1004
    %v1053 = vpack.c.b16 %v1029, %v1005
    %v1054 = vpack.c.b16 %v1030, %v1006
    %v1055 = vpack.c.b16 %v1031, %v1007
    %v1056 = vpack.c.b16 %v1032, %v1008
    %v1057 = vpack.c.b16 %v1033, %v1009
    %v1058 = vpack.c.b16 %v1034, %v1010
    %v1059 = vpack.c.b16 %v1035, %v1011
    %v1060 = vpack.c.b16 %v1036, %v1012
    %v1061 = vpack.c.b16 %v1037, %v1013
    %v1062 = vpack.c.b16 %v1038, %v1014
    %v1063 = vpack.c.b16 %v1039, %v1015
    %v1064 = vpack.c.b16 %v1040, %v1016
    %v1065 = vpack.c.b16 %v1041, %v1017
    %v1066 = vpack.c.b16 %v1042, %v1018
    %v1067 = vpack.c.b16 %v1043, %v1019
    %v1068 = vpack.c.b16 %v1044, %v1020
    %v1069 = vpack.c.b16 %v1045, %v1021
    %v1070 = vpack.c.b16 %v1046, %v1022
    %v1071 = vpack.c.b16 %v1047, %v1023
    %v1072 = vpack.c.b16 %v1048, %v1024
    %v1073 = vpack.c.b16 %v1049, %v1025
    %v1074 = vpack.c.b16 %v1050, %v1026
    %v1075 = vpack.c.b16 %v1051, %v1027
    %v1868 = vunpack.c.l.b16 %v190
    %v1869 = vunpack.c.h.b16 %v190
    %v1870 = vunpack.c.l.b16 %v191
    %v1871 = vunpack.c.h.b16 %v191
    %v1872 = vunpack.c.l.b16 %v192
    %v1873 = vunpack.c.h.b16 %v192
    %v1874 = vunpack.c.l.b16 %v193
    %v1875 = vunpack.c.h.b16 %v193
    %v1876 = vunpack.c.l.b16 %v194
    %v1877 = vunpack.c.h.b16 %v194
    %v1878 = vunpack.c.l.b16 %v195
    %v1879 = vunpack.c.h.b16 %v195
    %v1880 = vunpack.c.l.b16 %v196
    %v1881 = vunpack.c.h.b16 %v196
    %v1882 = vunpack.c.l.b16 %v197
    %v1883 = vunpack.c.h.b16 %v197
    %v1884 = vunpack.c.l.b16 %v198
    %v1885 = vunpack.c.h.b16 %v198
    %v1886 = vunpack.c.l.b16 %v199
    %v1887 = vunpack.c.h.b16 %v199
    %v1888 = vunpack.c.l.b16 %v200
    %v1889 = vunpack.c.h.b16 %v200
    %v1890 = vunpack.c.l.b16 %v201
    %v1891 = vunpack.c.h.b16 %v201
    %v1892 = vunpack.c.l.b16 %v202
    %v1893 = vunpack.c.h.b16 %v202
    %v1894 = vunpack.c.l.b16 %v203
    %v1895 = vunpack.c.h.b16 %v203
    %v1896 = vunpack.c.l.b16 %v204
    %v1897 = vunpack.c.h.b16 %v204
    %v1898 = vunpack.c.l.b16 %v205
    %v1899 = vunpack.c.h.b16 %v205
    %v1900 = vunpack.c.l.b16 %v206
    %v1901 = vunpack.c.h.b16 %v206
    %v1902 = vunpack.c.l.b16 %v207
    %v1903 = vunpack.c.h.b16 %v207
    %v1904 = vunpack.c.l.b16 %v208
    %v1905 = vunpack.c.h.b16 %v208
    %v1906 = vunpack.c.l.b16 %v209
    %v1907 = vunpack.c.h.b16 %v209
    %v1908 = vunpack.c.l.b16 %v210
    %v1909 = vunpack.c.h.b16 %v210
    %v1910 = vunpack.c.l.b16 %v211
    %v1911 = vunpack.c.h.b16 %v211
    %v1912 = vunpack.c.l.b16 %v212
    %v1913 = vunpack.c.h.b16 %v212
    %v1914 = vunpack.c.l.b16 %v213
    %v1915 = vunpack.c.h.b16 %v213
    %v1916 = vunpack.c.l.b16 %v214
    %v1917 = vunpack.c.h.b16 %v214
    %v1918 = vunpack.c.l.b16 %v215
    %v1919 = vunpack.c.h.b16 %v215
    %v1920 = vunpack.c.l.b16 %v216
    %v1921 = vunpack.c.h.b16 %v216
    %v1922 = vunpack.c.l.b16 %v217
    %v1923 = vunpack.c.h.b16 %v217
    %v1924 = vunpack.c.l.b16 %v218
    %v1925 = vunpack.c.h.b16 %v218
    %v1926 = vunpack.c.l.b16 %v219
    %v1927 = vunpack.c.h.b16 %v219
    %v1928 = vunpack.c.l.b16 %v220
    %v1929 = vunpack.c.h.b16 %v220
    %v1930 = vunpack.c.l.b16 %v221
    %v1931 = vunpack.c.h.b16 %v221
    %v1932 = vunpack.c.l.b16 %v222
    %v1933 = vunpack.c.h.b16 %v222
    %v1934 = vunpack.c.l.b16 %v223
    %v1935 = vunpack.c.h.b16 %v223
    %v1936 = vunpack.c.l.b16 %v224
    %v1937 = vunpack.c.h.b16 %v224
    %v1938 = vunpack.c.l.b16 %v225
    %v1939 = vunpack.c.h.b16 %v225
    %v1940 = vunpack.c.l.b16 %v226
    %v1941 = vunpack.c.h.b16 %v226
    %v1942 = vunpack.c.l.b16 %v227
    %v1943 = vunpack.c.h.b16 %v227
    %v1944 = vunpack.c.l.b16 %v228
    %v1945 = vunpack.c.h.b16 %v228
    %v1946 = vunpack.c.l.b16 %v229
    %v1947 = vunpack.c.h.b16 %v229
    %v1948 = vunpack.c.l.b16 %v230
    %v1949 = vunpack.c.h.b16 %v230
    %v1950 = vunpack.c.l.b16 %v231
    %v1951 = vunpack.c.h.b16 %v231
    %v1952 = vunpack.c.l.b16 %v232
    %v1953 = vunpack.c.h.b16 %v232
    %v1954 = vunpack.c.l.b16 %v233
    %v1955 = vunpack.c.h.b16 %v233
    %v1956 = vunpack.c.l.b16 %v234
    %v1957 = vunpack.c.h.b16 %v234
    %v1958 = vunpack.c.l.b16 %v235
    %v1959 = vunpack.c.h.b16 %v235
    %v1960 = vunpack.c.l.b16 %v236
    %v1961 = vunpack.c.h.b16 %v236
    %v1962 = vunpack.c.l.b16 %v237
    %v1963 = vunpack.c.h.b16 %v237
    %v1964 = vunpack.c.l.b16 %v238
    %v1965 = vunpack.c.h.b16 %v238
    %v1966 = vunpack.c.l.b16 %v239
    %v1967 = vunpack.c.h.b16 %v239
    %v1968 = vunpack.c.l.b16 %v240
    %v1969 = vunpack.c.h.b16 %v240
    %v1970 = vunpack.c.l.b16 %v241
    %v1971 = vunpack.c.h.b16 %v241
    %v1972 = vunpack.c.l.b16 %v242
    %v1973 = vunpack.c.h.b16 %v242
    %v1974 = vunpack.c.l.b16 %v243
    %v1975 = vunpack.c.h.b16 %v243
    %v1976 = vunpack.c.l.b16 %v244
    %v1977 = vunpack.c.h.b16 %v244
    %v1978 = vunpack.c.l.b16 %v245
    %v1979 = vunpack.c.h.b16 %v245
    %v1980 = vunpack.c.l.b16 %v246
    %v1981 = vunpack.c.h.b16 %v246
    %v1982 = vunpack.c.l.b16 %v247
    %v1983 = vunpack.c.h.b16 %v247
    %v1984 = vunpack.c.l.b16 %v248
    %v1985 = vunpack.c.h.b16 %v248
    %v1986 = vunpack.c.l.b16 %v249
    %v1987 = vunpack.c.h.b16 %v249
    %v1988 = vunpack.c.l.b16 %v250
    %v1989 = vunpack.c.h.b16 %v250
    %v1990 = vunpack.c.l.b16 %v251
    %v1991 = vunpack.c.h.b16 %v251
    %v1992 = vunpack.c.l.b16 %v252
    %v1993 = vunpack.c.h.b16 %v252
    %v1994 = vunpack.c.l.b16 %v253
    %v1995 = vunpack.c.h.b16 %v253
    %v1996 = vunpack.c.l.b16 %v254
    %v1997 = vunpack.c.h.b16 %v254
    %v1998 = vunpack.c.l.b16 %v255
    %v1999 = vunpack.c.h.b16 %v255
    %v2000 = vunpack.c.l.b16 %v256
    %v2001 = vunpack.c.h.b16 %v256
    %v2002 = vunpack.c.l.b16 %v257
    %v2003 = vunpack.c.h.b16 %v257
    %v2004 = vunpack.c.l.b16 %v258
    %v2005 = vunpack.c.h.b16 %v258
    %v2006 = vunpack.c.l.b16 %v259
    %v2007 = vunpack.c.h.b16 %v259
    %v2008 = vunpack.c.l.b16 %v260
    %v2009 = vunpack.c.h.b16 %v260
    %v2010 = vunpack.c.l.b16 %v261
    %v2011 = vunpack.c.h.b16 %v261
    %v2012 = vunpack.c.l.b16 %v262
    %v2013 = vunpack.c.h.b16 %v262
    %v2014 = vunpack.c.l.b16 %v263
    %v2015 = vunpack.c.h.b16 %v263
    %v2016 = vunpack.c.l.b16 %v264
    %v2017 = vunpack.c.h.b16 %v264
    %v2018 = vunpack.c.l.b16 %v265
    %v2019 = vunpack.c.h.b16 %v265
    %v2020 = vunpack.c.l.b16 %v266
    %v2021 = vunpack.c.h.b16 %v266
    %v2022 = vunpack.c.l.b16 %v267
    %v2023 = vunpack.c.h.b16 %v267
    %v2024 = vunpack.c.l.b16 %v268
    %v2025 = vunpack.c.h.b16 %v268
    %v2026 = vunpack.c.l.b16 %v269
    %v2027 = vunpack.c.h.b16 %v269
    %v2028 = vunpack.c.l.b16 %v270
    %v2029 = vunpack.c.h.b16 %v270
    %v2030 = vunpack.c.l.b16 %v271
    %v2031 = vunpack.c.h.b16 %v271
    %v2032 = vunpack.c.l.b16 %v272
    %v2033 = vunpack.c.h.b16 %v272
    %v2034 = vunpack.c.l.b16 %v273
    %v2035 = vunpack.c.h.b16 %v273
    %v2036 = vunpack.c.l.b16 %v274
    %v2037 = vunpack.c.h.b16 %v274
    %v2038 = vunpack.c.l.b16 %v275
    %v2039 = vunpack.c.h.b16 %v275
    %v2040 = vunpack.c.l.b16 %v276
    %v2041 = vunpack.c.h.b16 %v276
    %v2042 = vunpack.c.l.b16 %v277
    %v2043 = vunpack.c.h.b16 %v277
    %v2044 = vunpack.c.l.b16 %v278
    %v2045 = vunpack.c.h.b16 %v278
    %v2046 = vunpack.c.l.b16 %v279
    %v2047 = vunpack.c.h.b16 %v279
    %v2048 = vunpack.c.l.b16 %v280
    %v2049 = vunpack.c.h.b16 %v280
    %v2050 = vunpack.c.l.b16 %v281
    %v2051 = vunpack.c.h.b16 %v281
    %v2052 = vunpack.c.l.b16 %v282
    %v2053 = vunpack.c.h.b16 %v282
    %v2054 = vunpack.c.l.b16 %v283
    %v2055 = vunpack.c.h.b16 %v283
    %v2056 = vunpack.c.l.b16 %v284
    %v2057 = vunpack.c.h.b16 %v284
    %v2058 = vunpack.c.l.b16 %v285
    %v2059 = vunpack.c.h.b16 %v285
    %v2060 = vunpack.c.l.b16 %v286
    %v2061 = vunpack.c.h.b16 %v286
    %v2062 = vunpack.c.l.b16 %v287
    %v2063 = vunpack.c.h.b16 %v287
    %v2064 = vunpack.c.l.b16 %v288
    %v2065 = vunpack.c.h.b16 %v288
    %v2066 = vunpack.c.l.b16 %v289
    %v2067 = vunpack.c.h.b16 %v289
    %v2068 = vunpack.c.l.b16 %v290
    %v2069 = vunpack.c.h.b16 %v290
    %v2070 = vunpack.c.l.b16 %v291
    %v2071 = vunpack.c.h.b16 %v291
    %v2072 = vunpack.c.l.b16 %v292
    %v2073 = vunpack.c.h.b16 %v292
    %v2074 = vunpack.c.l.b16 %v293
    %v2075 = vunpack.c.h.b16 %v293
    %v2076 = vunpack.c.l.b16 %v294
    %v2077 = vunpack.c.h.b16 %v294
    %v2078 = vunpack.c.l.b16 %v295
    %v2079 = vunpack.c.h.b16 %v295
    %v2080 = vunpack.c.l.b16 %v296
    %v2081 = vunpack.c.h.b16 %v296
    %v2082 = vunpack.c.l.b16 %v297
    %v2083 = vunpack.c.h.b16 %v297
    %v2084 = vunpack.c.l.b16 %v298
    %v2085 = vunpack.c.h.b16 %v298
    %v2086 = vunpack.c.l.b16 %v299
    %v2087 = vunpack.c.h.b16 %v299
    %v2088 = vunpack.c.l.b16 %v300
    %v2089 = vunpack.c.h.b16 %v300
    %v2090 = vunpack.c.l.b16 %v301
    %v2091 = vunpack.c.h.b16 %v301
    %v2092 = vunpack.c.l.b16 %v302
    %v2093 = vunpack.c.h.b16 %v302
    %v2094 = vunpack.c.l.b16 %v303
    %v2095 = vunpack.c.h.b16 %v303
    %v2096 = vunpack.c.l.b16 %v304
    %v2097 = vunpack.c.h.b16 %v304
    %v2098 = vunpack.c.l.b16 %v305
    %v2099 = vunpack.c.h.b16 %v305
    %v2100 = vunpack.c.l.b16 %v306
    %v2101 = vunpack.c.h.b16 %v306
    %v2102 = vunpack.c.l.b16 %v307
    %v2103 = vunpack.c.h.b16 %v307
    %v2104 = vunpack.c.l.b16 %v308
    %v2105 = vunpack.c.h.b16 %v308
    %v2106 = vunpack.c.l.b16 %v309
    %v2107 = vunpack.c.h.b16 %v309
    %v2108 = vunpack.c.l.b16 %v310
    %v2109 = vunpack.c.h.b16 %v310
    %v2110 = vunpack.c.l.b16 %v311
    %v2111 = vunpack.c.h.b16 %v311
    %v2112 = vunpack.c.l.b16 %v312
    %v2113 = vunpack.c.h.b16 %v312
    %v2114 = vunpack.c.l.b16 %v313
    %v2115 = vunpack.c.h.b16 %v313
    %v2116 = vunpack.c.l.b16 %v314
    %v2117 = vunpack.c.h.b16 %v314
    %v2118 = vunpack.c.l.b16 %v315
    %v2119 = vunpack.c.h.b16 %v315
    %v2120 = vunpack.c.l.b16 %v316
    %v2121 = vunpack.c.h.b16 %v316
    %v2122 = vunpack.c.l.b16 %v317
    %v2123 = vunpack.c.h.b16 %v317
    %v2124 = vunpack.c.l.b16 %v318
    %v2125 = vunpack.c.h.b16 %v318
    %v2126 = vunpack.c.l.b16 %v319
    %v2127 = vunpack.c.h.b16 %v319
    %v2128 = vunpack.c.l.b16 %v320
    %v2129 = vunpack.c.h.b16 %v320
    %v2130 = vunpack.c.l.b16 %v321
    %v2131 = vunpack.c.h.b16 %v321
    %v2132 = vunpack.c.l.b16 %v322
    %v2133 = vunpack.c.h.b16 %v322
    %v2134 = vunpack.c.l.b16 %v323
    %v2135 = vunpack.c.h.b16 %v323
    %v2136 = vunpack.c.l.b16 %v324
    %v2137 = vunpack.c.h.b16 %v324
    %v2138 = vunpack.c.l.b16 %v325
    %v2139 = vunpack.c.h.b16 %v325
    %v2140 = vunpack.c.l.b16 %v326
    %v2141 = vunpack.c.h.b16 %v326
    %v2142 = vunpack.c.l.b16 %v327
    %v2143 = vunpack.c.h.b16 %v327
    %v2144 = vunpack.c.l.b16 %v328
    %v2145 = vunpack.c.h.b16 %v328
    %v2146 = vunpack.c.l.b16 %v329
    %v2147 = vunpack.c.h.b16 %v329
    %v2148 = vunpack.c.l.b16 %v330
    %v2149 = vunpack.c.h.b16 %v330
    %v2150 = vunpack.c.l.b16 %v331
    %v2151 = vunpack.c.h.b16 %v331
    %v2152 = vunpack.c.l.b16 %v332
    %v2153 = vunpack.c.h.b16 %v332
    %v2154 = vunpack.c.l.b16 %v333
    %v2155 = vunpack.c.h.b16 %v333
    %v2156 = vunpack.c.l.b16 %v334
    %v2157 = vunpack.c.h.b16 %v334
    %v2158 = vunpack.c.l.b16 %v335
    %v2159 = vunpack.c.h.b16 %v335
    %v2160 = vunpack.c.l.b16 %v336
    %v2161 = vunpack.c.h.b16 %v336
    %v2162 = vunpack.c.l.b16 %v337
    %v2163 = vunpack.c.h.b16 %v337
    %v2164 = vunpack.c.l.b16 %v338
    %v2165 = vunpack.c.h.b16 %v338
    %v2166 = vunpack.c.l.b16 %v339
    %v2167 = vunpack.c.h.b16 %v339
    %v2168 = vunpack.c.l.b16 %v340
    %v2169 = vunpack.c.h.b16 %v340
    %v2170 = vunpack.c.l.b16 %v341
    %v2171 = vunpack.c.h.b16 %v341
    %v2172 = vunpack.c.l.b16 %v342
    %v2173 = vunpack.c.h.b16 %v342
    %v2174 = vunpack.c.l.b16 %v343
    %v2175 = vunpack.c.h.b16 %v343
    %v2176 = vunpack.c.l.b16 %v344
    %v2177 = vunpack.c.h.b16 %v344
    %v2178 = vunpack.c.l.b16 %v345
    %v2179 = vunpack.c.h.b16 %v345
    %v2180 = vunpack.c.l.b16 %v346
    %v2181 = vunpack.c.h.b16 %v346
    %v2182 = vunpack.c.l.b16 %v347
    %v2183 = vunpack.c.h.b16 %v347
    %v2184 = vunpack.c.l.b16 %v348
    %v2185 = vunpack.c.h.b16 %v348
    %v2186 = vunpack.c.l.b16 %v349
    %v2187 = vunpack.c.h.b16 %v349
    %v2188 = vunpack.c.l.b16 %v350
    %v2189 = vunpack.c.h.b16 %v350
    %v2190 = vunpack.c.l.b16 %v351
    %v2191 = vunpack.c.h.b16 %v351
    %v2192 = vunpack.c.l.b16 %v352
    %v2193 = vunpack.c.h.b16 %v352
    %v2194 = vunpack.c.l.b16 %v353
    %v2195 = vunpack.c.h.b16 %v353
    %v2196 = vunpack.c.l.b16 %v354
    %v2197 = vunpack.c.h.b16 %v354
    %v2198 = vunpack.c.l.b16 %v355
    %v2199 = vunpack.c.h.b16 %v355
    %v2200 = vunpack.c.l.b16 %v356
    %v2201 = vunpack.c.h.b16 %v356
    %v2202 = vunpack.c.l.b16 %v357
    %v2203 = vunpack.c.h.b16 %v357
    %v2204 = vunpack.c.l.b16 %v358
    %v2205 = vunpack.c.h.b16 %v358
    %v2206 = vunpack.c.l.b16 %v359
    %v2207 = vunpack.c.h.b16 %v359
    %v2208 = vunpack.c.l.b16 %v360
    %v2209 = vunpack.c.h.b16 %v360
    %v2210 = vunpack.c.l.b16 %v361
    %v2211 = vunpack.c.h.b16 %v361
    %v2212 = vunpack.c.l.b16 %v362
    %v2213 = vunpack.c.h.b16 %v362
    %v2214 = vunpack.c.l.b16 %v363
    %v2215 = vunpack.c.h.b16 %v363
    %v2216 = vunpack.c.l.b16 %v364
    %v2217 = vunpack.c.h.b16 %v364
    %v2218 = vunpack.c.l.b16 %v365
    %v2219 = vunpack.c.h.b16 %v365
    %v2220 = vunpack.c.l.b16 %v366
    %v2221 = vunpack.c.h.b16 %v366
    %v2222 = vunpack.c.l.b16 %v367
    %v2223 = vunpack.c.h.b16 %v367
    %v2224 = vunpack.c.l.b16 %v368
    %v2225 = vunpack.c.h.b16 %v368
    %v2226 = vunpack.c.l.b16 %v369
    %v2227 = vunpack.c.h.b16 %v369
    %v2228 = vunpack.c.l.b16 %v370
    %v2229 = vunpack.c.h.b16 %v370
    %v2230 = vunpack.c.l.b16 %v371
    %v2231 = vunpack.c.h.b16 %v371
    %v2232 = vunpack.c.l.b16 %v372
    %v2233 = vunpack.c.h.b16 %v372
    %v2234 = vunpack.c.l.b16 %v373
    %v2235 = vunpack.c.h.b16 %v373
    %v2236 = vunpack.c.l.b16 %v374
    %v2237 = vunpack.c.h.b16 %v374
    %v2238 = vunpack.c.l.b16 %v375
    %v2239 = vunpack.c.h.b16 %v375
    %v2240 = vunpack.c.l.b16 %v376
    %v2241 = vunpack.c.h.b16 %v376
    %v2242 = vunpack.c.l.b16 %v377
    %v2243 = vunpack.c.h.b16 %v377
    %v2244 = vunpack.c.l.b16 %v378
    %v2245 = vunpack.c.h.b16 %v378
    %v2246 = vunpack.c.l.b16 %v379
    %v2247 = vunpack.c.h.b16 %v379
    %v2248 = vunpack.c.l.b16 %v380
    %v2249 = vunpack.c.h.b16 %v380
    %v2250 = vunpack.c.l.b16 %v381
    %v2251 = vunpack.c.h.b16 %v381
    %v2252 = vunpack.c.l.b16 %v382
    %v2253 = vunpack.c.h.b16 %v382
    %v2254 = vunpack.c.l.b16 %v383
    %v2255 = vunpack.c.h.b16 %v383
    %v2256 = vunpack.c.l.b16 %v384
    %v2257 = vunpack.c.h.b16 %v384
    %v2258 = vunpack.c.l.b16 %v385
    %v2259 = vunpack.c.h.b16 %v385
    %v2260 = vunpack.c.l.b16 %v386
    %v2261 = vunpack.c.h.b16 %v386
    %v2262 = vunpack.c.l.b16 %v387
    %v2263 = vunpack.c.h.b16 %v387
    %v2264 = vunpack.c.l.b16 %v388
    %v2265 = vunpack.c.h.b16 %v388
    %v2266 = vunpack.c.l.b16 %v389
    %v2267 = vunpack.c.h.b16 %v389
    %v2268 = vunpack.c.l.b16 %v390
    %v2269 = vunpack.c.h.b16 %v390
    %v2270 = vunpack.c.l.b16 %v391
    %v2271 = vunpack.c.h.b16 %v391
    %v2272 = vunpack.c.l.b16 %v392
    %v2273 = vunpack.c.h.b16 %v392
    %v2274 = vunpack.c.l.b16 %v393
    %v2275 = vunpack.c.h.b16 %v393
    %v2276 = vunpack.c.l.b16 %v394
    %v2277 = vunpack.c.h.b16 %v394
    %v2278 = vunpack.c.l.b16 %v395
    %v2279 = vunpack.c.h.b16 %v395
    %v2280 = vunpack.c.l.b16 %v396
    %v2281 = vunpack.c.h.b16 %v396
    %v2282 = vunpack.c.l.b16 %v397
    %v2283 = vunpack.c.h.b16 %v397
    %v2284 = vunpack.c.l.b16 %v398
    %v2285 = vunpack.c.h.b16 %v398
    %v2286 = vunpack.c.l.b16 %v399
    %v2287 = vunpack.c.h.b16 %v399
    %v2288 = vunpack.c.l.b16 %v400
    %v2289 = vunpack.c.h.b16 %v400
    %v2290 = vunpack.c.l.b16 %v401
    %v2291 = vunpack.c.h.b16 %v401
    %v2292 = vunpack.c.l.b16 %v402
    %v2293 = vunpack.c.h.b16 %v402
    %v2294 = vunpack.c.l.b16 %v403
    %v2295 = vunpack.c.h.b16 %v403
    %v2296 = vunpack.c.l.b16 %v404
    %v2297 = vunpack.c.h.b16 %v404
    %v2298 = vunpack.c.l.b16 %v405
    %v2299 = vunpack.c.h.b16 %v405
    %v2300 = vunpack.c.l.b16 %v406
    %v2301 = vunpack.c.h.b16 %v406
    %v2302 = vunpack.c.l.b16 %v407
    %v2303 = vunpack.c.h.b16 %v407
    %v2304 = vunpack.c.l.b16 %v408
    %v2305 = vunpack.c.h.b16 %v408
    %v2306 = vunpack.c.l.b16 %v409
    %v2307 = vunpack.c.h.b16 %v409
    %v2308 = vunpack.c.l.b16 %v410
    %v2309 = vunpack.c.h.b16 %v410
    %v2310 = vunpack.c.l.b16 %v411
    %v2311 = vunpack.c.h.b16 %v411
    %v2312 = vunpack.c.l.b16 %v412
    %v2313 = vunpack.c.h.b16 %v412
    %v2314 = vunpack.c.l.b16 %v413
    %v2315 = vunpack.c.h.b16 %v413
    %v2316 = vunpack.c.l.b16 %v414
    %v2317 = vunpack.c.h.b16 %v414
    %v2318 = vunpack.c.l.b16 %v415
    %v2319 = vunpack.c.h.b16 %v415
    %v2320 = vunpack.c.l.b16 %v416
    %v2321 = vunpack.c.h.b16 %v416
    %v2322 = vunpack.c.l.b16 %v417
    %v2323 = vunpack.c.h.b16 %v417
    %v2324 = vunpack.c.l.b16 %v418
    %v2325 = vunpack.c.h.b16 %v418
    %v2326 = vunpack.c.l.b16 %v419
    %v2327 = vunpack.c.h.b16 %v419
    %v2328 = vunpack.c.l.b16 %v420
    %v2329 = vunpack.c.h.b16 %v420
    %v2330 = vunpack.c.l.b16 %v421
    %v2331 = vunpack.c.h.b16 %v421
    %v2332 = vunpack.c.l.b16 %v422
    %v2333 = vunpack.c.h.b16 %v422
    %v2334 = vunpack.c.l.b16 %v423
    %v2335 = vunpack.c.h.b16 %v423
    %v2336 = vunpack.c.l.b16 %v424
    %v2337 = vunpack.c.h.b16 %v424
    %v2338 = vunpack.c.l.b16 %v425
    %v2339 = vunpack.c.h.b16 %v425
    %v2340 = vunpack.c.l.b16 %v426
    %v2341 = vunpack.c.h.b16 %v426
    %v2342 = vunpack.c.l.b16 %v427
    %v2343 = vunpack.c.h.b16 %v427
    %v2344 = vunpack.c.l.b16 %v428
    %v2345 = vunpack.c.h.b16 %v428
    %v2346 = vunpack.c.l.b16 %v429
    %v2347 = vunpack.c.h.b16 %v429
    %v2348 = vunpack.c.l.b16 %v430
    %v2349 = vunpack.c.h.b16 %v430
    %v2350 = vunpack.c.l.b16 %v431
    %v2351 = vunpack.c.h.b16 %v431
    %v2352 = vunpack.c.l.b16 %v432
    %v2353 = vunpack.c.h.b16 %v432
    %v2354 = vunpack.c.l.b16 %v433
    %v2355 = vunpack.c.h.b16 %v433
    %v2356 = vunpack.c.l.b16 %v434
    %v2357 = vunpack.c.h.b16 %v434
    %v2358 = vunpack.c.l.b16 %v435
    %v2359 = vunpack.c.h.b16 %v435
    %v2360 = vunpack.c.l.b16 %v436
    %v2361 = vunpack.c.h.b16 %v436
    %v2362 = vunpack.c.l.b16 %v437
    %v2363 = vunpack.c.h.b16 %v437
    %v2364 = vunpack.c.l.b16 %v438
    %v2365 = vunpack.c.h.b16 %v438
    %v2366 = vunpack.c.l.b16 %v439
    %v2367 = vunpack.c.h.b16 %v439
    %v2368 = vunpack.c.l.b16 %v440
    %v2369 = vunpack.c.h.b16 %v440
    %v2370 = vunpack.c.l.b16 %v441
    %v2371 = vunpack.c.h.b16 %v441
    %v2372 = vunpack.c.l.b16 %v442
    %v2373 = vunpack.c.h.b16 %v442
    %v2374 = vunpack.c.l.b16 %v443
    %v2375 = vunpack.c.h.b16 %v443
    %v2376 = vunpack.c.l.b16 %v444
    %v2377 = vunpack.c.h.b16 %v444
    %v2378 = vunpack.c.l.b16 %v445
    %v2379 = vunpack.c.h.b16 %v445
    %v2380 = vunpack.c.l.b16 %v446
    %v2381 = vunpack.c.h.b16 %v446
    %v2382 = vunpack.c.l.b16 %v447
    %v2383 = vunpack.c.h.b16 %v447
    %v2384 = vunpack.c.l.b16 %v448
    %v2385 = vunpack.c.h.b16 %v448
    %v2386 = vunpack.c.l.b16 %v449
    %v2387 = vunpack.c.h.b16 %v449
    %v2388 = vunpack.c.l.b16 %v450
    %v2389 = vunpack.c.h.b16 %v450
    %v2390 = vunpack.c.l.b16 %v451
    %v2391 = vunpack.c.h.b16 %v451
    %v2392 = vunpack.c.l.b16 %v452
    %v2393 = vunpack.c.h.b16 %v452
    %v2394 = vunpack.c.l.b16 %v453
    %v2395 = vunpack.c.h.b16 %v453
    %v2396 = vunpack.c.l.b16 %v454
    %v2397 = vunpack.c.h.b16 %v454
    %v2398 = vunpack.c.l.b16 %v455
    %v2399 = vunpack.c.h.b16 %v455
    %v2400 = vunpack.c.l.b16 %v456
    %v2401 = vunpack.c.h.b16 %v456
    %v2402 = vunpack.c.l.b16 %v457
    %v2403 = vunpack.c.h.b16 %v457
    %v2404 = vunpack.c.l.b16 %v458
    %v2405 = vunpack.c.h.b16 %v458
    %v2406 = vunpack.c.l.b16 %v459
    %v2407 = vunpack.c.h.b16 %v459
    %v2408 = vunpack.c.l.b16 %v460
    %v2409 = vunpack.c.h.b16 %v460
    %v2410 = vunpack.c.l.b16 %v461
    %v2411 = vunpack.c.h.b16 %v461
    %v2412 = vunpack.c.l.b16 %v462
    %v2413 = vunpack.c.h.b16 %v462
    %v2414 = vunpack.c.l.b16 %v463
    %v2415 = vunpack.c.h.b16 %v463
    %v2416 = vunpack.c.l.b16 %v464
    %v2417 = vunpack.c.h.b16 %v464
    %v2418 = vunpack.c.l.b16 %v465
    %v2419 = vunpack.c.h.b16 %v465
    %v2420 = vunpack.c.l.b16 %v466
    %v2421 = vunpack.c.h.b16 %v466
    %v2422 = vunpack.c.l.b16 %v467
    %v2423 = vunpack.c.h.b16 %v467
    %v2424 = vunpack.c.l.b16 %v468
    %v2425 = vunpack.c.h.b16 %v468
    %v2426 = vunpack.c.l.b16 %v469
    %v2427 = vunpack.c.h.b16 %v469
    %v2428 = vunpack.c.l.b16 %v470
    %v2429 = vunpack.c.h.b16 %v470
    %v2430 = vunpack.c.l.b16 %v471
    %v2431 = vunpack.c.h.b16 %v471
    %v2432 = vunpack.c.l.b16 %v472
    %v2433 = vunpack.c.h.b16 %v472
    %v2434 = vunpack.c.l.b16 %v473
    %v2435 = vunpack.c.h.b16 %v473
    %v2436 = vunpack.c.l.b16 %v474
    %v2437 = vunpack.c.h.b16 %v474
    %v2438 = vunpack.c.l.b16 %v475
    %v2439 = vunpack.c.h.b16 %v475
    %v2440 = vunpack.c.l.b16 %v476
    %v2441 = vunpack.c.h.b16 %v476
    %v2442 = vunpack.c.l.b16 %v477
    %v2443 = vunpack.c.h.b16 %v477
    %v2444 = vunpack.c.l.b16 %v478
    %v2445 = vunpack.c.h.b16 %v478
    %v2446 = vunpack.c.l.b16 %v479
    %v2447 = vunpack.c.h.b16 %v479
    %v2448 = vunpack.c.l.b16 %v480
    %v2449 = vunpack.c.h.b16 %v480
    %v2450 = vunpack.c.l.b16 %v481
    %v2451 = vunpack.c.h.b16 %v481
    %v2452 = vunpack.c.l.b16 %v482
    %v2453 = vunpack.c.h.b16 %v482
    %v2454 = vunpack.c.l.b16 %v483
    %v2455 = vunpack.c.h.b16 %v483
    %v2456 = vunpack.c.l.b16 %v484
    %v2457 = vunpack.c.h.b16 %v484
    %v2458 = vunpack.c.l.b16 %v485
    %v2459 = vunpack.c.h.b16 %v485
    %v2460 = vunpack.c.l.b16 %v486
    %v2461 = vunpack.c.h.b16 %v486
    %v2462 = vunpack.c.l.b16 %v487
    %v2463 = vunpack.c.h.b16 %v487
    %v2464 = vunpack.c.l.b16 %v488
    %v2465 = vunpack.c.h.b16 %v488
    %v2466 = vunpack.c.l.b16 %v489
    %v2467 = vunpack.c.h.b16 %v489
    %v2468 = vunpack.c.l.b16 %v490
    %v2469 = vunpack.c.h.b16 %v490
    %v2470 = vunpack.c.l.b16 %v491
    %v2471 = vunpack.c.h.b16 %v491
    %v2472 = vunpack.c.l.b16 %v492
    %v2473 = vunpack.c.h.b16 %v492
    %v2474 = vunpack.c.l.b16 %v493
    %v2475 = vunpack.c.h.b16 %v493
    %v2476 = vunpack.c.l.b16 %v494
    %v2477 = vunpack.c.h.b16 %v494
    %v2478 = vunpack.c.l.b16 %v495
    %v2479 = vunpack.c.h.b16 %v495
    %v2480 = vunpack.c.l.b16 %v496
    %v2481 = vunpack.c.h.b16 %v496
    %v2482 = vunpack.c.l.b16 %v497
    %v2483 = vunpack.c.h.b16 %v497
    %v2484 = vunpack.c.l.b16 %v498
    %v2485 = vunpack.c.h.b16 %v498
    %v2486 = vunpack.c.l.b16 %v499
    %v2487 = vunpack.c.h.b16 %v499
    %v2488 = vunpack.c.l.b16 %v500
    %v2489 = vunpack.c.h.b16 %v500
    %v2490 = vunpack.c.l.b16 %v501
    %v2491 = vunpack.c.h.b16 %v501
    %v2492 = vunpack.c.l.b16 %v502
    %v2493 = vunpack.c.h.b16 %v502
    %v2494 = vunpack.c.l.b16 %v503
    %v2495 = vunpack.c.h.b16 %v503
    %v2496 = vunpack.c.l.b16 %v504
    %v2497 = vunpack.c.h.b16 %v504
    %v2498 = vunpack.c.l.b16 %v505
    %v2499 = vunpack.c.h.b16 %v505
    %v2500 = vunpack.c.l.b16 %v506
    %v2501 = vunpack.c.h.b16 %v506
    %v2502 = vunpack.c.l.b16 %v507
    %v2503 = vunpack.c.h.b16 %v507
    %v2504 = vunpack.c.l.b16 %v508
    %v2505 = vunpack.c.h.b16 %v508
    %v2506 = vunpack.c.l.b16 %v509
    %v2507 = vunpack.c.h.b16 %v509
    %v2508 = vunpack.c.l.b16 %v510
    %v2509 = vunpack.c.h.b16 %v510
    %v2510 = vunpack.c.l.b16 %v511
    %v2511 = vunpack.c.h.b16 %v511
    %v2512 = vunpack.c.l.b16 %v512
    %v2513 = vunpack.c.h.b16 %v512
    %v2514 = vunpack.c.l.b16 %v513
    %v2515 = vunpack.c.h.b16 %v513
    %v2516 = vunpack.c.l.b16 %v514
    %v2517 = vunpack.c.h.b16 %v514
    %v2518 = vunpack.c.l.b16 %v515
    %v2519 = vunpack.c.h.b16 %v515
    %v2520 = vunpack.c.l.b16 %v516
    %v2521 = vunpack.c.h.b16 %v516
    %v2522 = vunpack.c.l.b16 %v517
    %v2523 = vunpack.c.h.b16 %v517
    %v2524 = vunpack.c.l.b16 %v518
    %v2525 = vunpack.c.h.b16 %v518
    %v2526 = vunpack.c.l.b16 %v519
    %v2527 = vunpack.c.h.b16 %v519
    %v2528 = vunpack.c.l.b16 %v520
    %v2529 = vunpack.c.h.b16 %v520
    %v2530 = vunpack.c.l.b16 %v521
    %v2531 = vunpack.c.h.b16 %v521
    %v2532 = vunpack.c.l.b16 %v522
    %v2533 = vunpack.c.h.b16 %v522
    %v2534 = vunpack.c.l.b16 %v523
    %v2535 = vunpack.c.h.b16 %v523
    %v2536 = vunpack.c.l.b16 %v524
    %v2537 = vunpack.c.h.b16 %v524
    %v2538 = vunpack.c.l.b16 %v525
    %v2539 = vunpack.c.h.b16 %v525
    %v2540 = vunpack.c.l.b16 %v526
    %v2541 = vunpack.c.h.b16 %v526
    %v2542 = vunpack.c.l.b16 %v527
    %v2543 = vunpack.c.h.b16 %v527
    %v2544 = vunpack.c.l.b16 %v528
    %v2545 = vunpack.c.h.b16 %v528
    %v2546 = vunpack.c.l.b16 %v529
    %v2547 = vunpack.c.h.b16 %v529
    %v2548 = vunpack.c.l.b16 %v530
    %v2549 = vunpack.c.h.b16 %v530
    %v2550 = vunpack.c.l.b16 %v531
    %v2551 = vunpack.c.h.b16 %v531
    %v2552 = vunpack.c.l.b16 %v532
    %v2553 = vunpack.c.h.b16 %v532
    %v2554 = vunpack.c.l.b16 %v533
    %v2555 = vunpack.c.h.b16 %v533
    %v2556 = vunpack.c.l.b16 %v534
    %v2557 = vunpack.c.h.b16 %v534
    %v2558 = vunpack.c.l.b16 %v535
    %v2559 = vunpack.c.h.b16 %v535
    %v2560 = vunpack.c.l.b16 %v536
    %v2561 = vunpack.c.h.b16 %v536
    %v2562 = vunpack.c.l.b16 %v537
    %v2563 = vunpack.c.h.b16 %v537
    %v2564 = vunpack.c.l.b16 %v538
    %v2565 = vunpack.c.h.b16 %v538
    %v2566 = vunpack.c.l.b16 %v539
    %v2567 = vunpack.c.h.b16 %v539
    %v2568 = vunpack.c.l.b16 %v540
    %v2569 = vunpack.c.h.b16 %v540
    %v2570 = vunpack.c.l.b16 %v541
    %v2571 = vunpack.c.h.b16 %v541
    %v2572 = vunpack.c.l.b16 %v542
    %v2573 = vunpack.c.h.b16 %v542
    %v2574 = vunpack.c.l.b16 %v543
    %v2575 = vunpack.c.h.b16 %v543
    %v2576 = vunpack.c.l.b16 %v544
    %v2577 = vunpack.c.h.b16 %v544
    %v2578 = vunpack.c.l.b16 %v545
    %v2579 = vunpack.c.h.b16 %v545
    %v2580 = vunpack.c.l.b16 %v546
    %v2581 = vunpack.c.h.b16 %v546
    %v2582 = vunpack.c.l.b16 %v547
    %v2583 = vunpack.c.h.b16 %v547
    %v2584 = vunpack.c.l.b16 %v548
    %v2585 = vunpack.c.h.b16 %v548
    %v2586 = vunpack.c.l.b16 %v549
    %v2587 = vunpack.c.h.b16 %v549
    %v2588 = vunpack.c.l.b16 %v550
    %v2589 = vunpack.c.h.b16 %v550
    %v2590 = vunpack.c.l.b16 %v551
    %v2591 = vunpack.c.h.b16 %v551
    %v2592 = vunpack.c.l.b16 %v552
    %v2593 = vunpack.c.h.b16 %v552
    %v2594 = vunpack.c.l.b16 %v553
    %v2595 = vunpack.c.h.b16 %v553
    %v2596 = vunpack.c.l.b16 %v554
    %v2597 = vunpack.c.h.b16 %v554
    %v2598 = vunpack.c.l.b16 %v555
    %v2599 = vunpack.c.h.b16 %v555
    %v2600 = vunpack.c.l.b16 %v556
    %v2601 = vunpack.c.h.b16 %v556
    %v2602 = vunpack.c.l.b16 %v557
    %v2603 = vunpack.c.h.b16 %v557
    %v2604 = vunpack.c.l.b16 %v558
    %v2605 = vunpack.c.h.b16 %v558
    %v2606 = vunpack.c.l.b16 %v559
    %v2607 = vunpack.c.h.b16 %v559
    %v2608 = vunpack.c.l.b16 %v560
    %v2609 = vunpack.c.h.b16 %v560
    %v2610 = vunpack.c.l.b16 %v561
    %v2611 = vunpack.c.h.b16 %v561
    %v2612 = vunpack.c.l.b16 %v562
    %v2613 = vunpack.c.h.b16 %v562
    %v2614 = vunpack.c.l.b16 %v563
    %v2615 = vunpack.c.h.b16 %v563
    %v2616 = vunpack.c.l.b16 %v564
    %v2617 = vunpack.c.h.b16 %v564
    %v2618 = vunpack.c.l.b16 %v565
    %v2619 = vunpack.c.h.b16 %v565
    %v2620 = vunpack.c.l.b16 %v566
    %v2621 = vunpack.c.h.b16 %v566
    %v2622 = vunpack.c.l.b16 %v567
    %v2623 = vunpack.c.h.b16 %v567
    %v2624 = vunpack.c.l.b16 %v568
    %v2625 = vunpack.c.h.b16 %v568
    %v2626 = vunpack.c.l.b16 %v569
    %v2627 = vunpack.c.h.b16 %v569
    %v2628 = vunpack.c.l.b16 %v570
    %v2629 = vunpack.c.h.b16 %v570
    %v2630 = vunpack.c.l.b16 %v571
    %v2631 = vunpack.c.h.b16 %v571
    %v2632 = vunpack.c.l.b16 %v572
    %v2633 = vunpack.c.h.b16 %v572
    %v2634 = vunpack.c.l.b16 %v573
    %v2635 = vunpack.c.h.b16 %v573
    %v2636 = vunpack.c.l.b16 %v574
    %v2637 = vunpack.c.h.b16 %v574
    %v2638 = vunpack.c.l.b16 %v575
    %v2639 = vunpack.c.h.b16 %v575
    %v2640 = vunpack.c.l.b16 %v576
    %v2641 = vunpack.c.h.b16 %v576
    %v2642 = vunpack.c.l.b16 %v577
    %v2643 = vunpack.c.h.b16 %v577
    %v2644 = vunpack.c.l.b16 %v578
    %v2645 = vunpack.c.h.b16 %v578
    %v2646 = vunpack.c.l.b16 %v579
    %v2647 = vunpack.c.h.b16 %v579
    %v2648 = vunpack.c.l.b16 %v580
    %v2649 = vunpack.c.h.b16 %v580
    %v2650 = vunpack.c.l.b16 %v581
    %v2651 = vunpack.c.h.b16 %v581
    %v2652 = vunpack.c.l.b16 %v582
    %v2653 = vunpack.c.h.b16 %v582
    %v2654 = vunpack.c.l.b16 %v583
    %v2655 = vunpack.c.h.b16 %v583
    %v2656 = vunpack.c.l.b16 %v584
    %v2657 = vunpack.c.h.b16 %v584
    %v2658 = vunpack.c.l.b16 %v585
    %v2659 = vunpack.c.h.b16 %v585
    %v2660 = vunpack.c.l.b16 %v586
    %v2661 = vunpack.c.h.b16 %v586
    %v2662 = vunpack.c.l.b16 %v587
    %v2663 = vunpack.c.h.b16 %v587
    %v2664 = vunpack.c.l.b16 %v588
    %v2665 = vunpack.c.h.b16 %v588
    %v2666 = vunpack.c.l.b16 %v589
    %v2667 = vunpack.c.h.b16 %v589
    %v2668 = vunpack.c.l.b16 %v590
    %v2669 = vunpack.c.h.b16 %v590
    %v2670 = vunpack.c.l.b16 %v591
    %v2671 = vunpack.c.h.b16 %v591
    %v2672 = vunpack.c.l.b16 %v592
    %v2673 = vunpack.c.h.b16 %v592
    %v2674 = vunpack.c.l.b16 %v593
    %v2675 = vunpack.c.h.b16 %v593
    %v2676 = vunpack.c.l.b16 %v594
    %v2677 = vunpack.c.h.b16 %v594
    %v2678 = vunpack.c.l.b16 %v595
    %v2679 = vunpack.c.h.b16 %v595
    %v2680 = vunpack.c.l.b16 %v596
    %v2681 = vunpack.c.h.b16 %v596
    %v2682 = vunpack.c.l.b16 %v597
    %v2683 = vunpack.c.h.b16 %v597
    %v2684 = vunpack.c.l.b16 %v598
    %v2685 = vunpack.c.h.b16 %v598
    %v2686 = vunpack.c.l.b16 %v599
    %v2687 = vunpack.c.h.b16 %v599
    %v2688 = vunpack.c.l.b16 %v600
    %v2689 = vunpack.c.h.b16 %v600
    %v2690 = vunpack.c.l.b16 %v601
    %v2691 = vunpack.c.h.b16 %v601
    %v2692 = vunpack.c.l.b16 %v602
    %v2693 = vunpack.c.h.b16 %v602
    %v2694 = vunpack.c.l.b16 %v603
    %v2695 = vunpack.c.h.b16 %v603
    %v2696 = vunpack.c.l.b16 %v604
    %v2697 = vunpack.c.h.b16 %v604
    %v2698 = vunpack.c.l.b16 %v605
    %v2699 = vunpack.c.h.b16 %v605
    %v2700 = vunpack.c.l.b16 %v606
    %v2701 = vunpack.c.h.b16 %v606
    %v2702 = vunpack.c.l.b16 %v607
    %v2703 = vunpack.c.h.b16 %v607
    %v2704 = vunpack.c.l.b16 %v608
    %v2705 = vunpack.c.h.b16 %v608
    %v2706 = vunpack.c.l.b16 %v609
    %v2707 = vunpack.c.h.b16 %v609
    %v2708 = vunpack.c.l.b16 %v610
    %v2709 = vunpack.c.h.b16 %v610
    %v2710 = vunpack.c.l.b16 %v611
    %v2711 = vunpack.c.h.b16 %v611
    %v2712 = vunpack.c.l.b16 %v612
    %v2713 = vunpack.c.h.b16 %v612
    %v2714 = vunpack.c.l.b16 %v613
    %v2715 = vunpack.c.h.b16 %v613
    %v2716 = vunpack.c.l.b16 %v614
    %v2717 = vunpack.c.h.b16 %v614
    %v2718 = vunpack.c.l.b16 %v615
    %v2719 = vunpack.c.h.b16 %v615
    %v2720 = vunpack.c.l.b16 %v616
    %v2721 = vunpack.c.h.b16 %v616
    %v2722 = vunpack.c.l.b16 %v617
    %v2723 = vunpack.c.h.b16 %v617
    %v2724 = vunpack.c.l.b16 %v618
    %v2725 = vunpack.c.h.b16 %v618
    %v2726 = vunpack.c.l.b16 %v619
    %v2727 = vunpack.c.h.b16 %v619
    %v2728 = vunpack.c.l.b16 %v620
    %v2729 = vunpack.c.h.b16 %v620
    %v2730 = vunpack.c.l.b16 %v621
    %v2731 = vunpack.c.h.b16 %v621
    %v2732 = vunpack.c.l.b16 %v622
    %v2733 = vunpack.c.h.b16 %v622
    %v2734 = vunpack.c.l.b16 %v623
    %v2735 = vunpack.c.h.b16 %v623
    %v2736 = vunpack.c.l.b16 %v624
    %v2737 = vunpack.c.h.b16 %v624
    %v2738 = vunpack.c.l.b16 %v625
    %v2739 = vunpack.c.h.b16 %v625
    %v2740 = vunpack.c.l.b16 %v626
    %v2741 = vunpack.c.h.b16 %v626
    %v2742 = vunpack.c.l.b16 %v627
    %v2743 = vunpack.c.h.b16 %v627
    %v2744 = vunpack.c.l.b16 %v628
    %v2745 = vunpack.c.h.b16 %v628
    %v2746 = vunpack.c.l.b16 %v629
    %v2747 = vunpack.c.h.b16 %v629
    %v2748 = vunpack.c.l.b16 %v630
    %v2749 = vunpack.c.h.b16 %v630
    %v2750 = vunpack.c.l.b16 %v631
    %v2751 = vunpack.c.h.b16 %v631
    %v2752 = vunpack.c.l.b16 %v632
    %v2753 = vunpack.c.h.b16 %v632
    %v2754 = vunpack.c.l.b16 %v633
    %v2755 = vunpack.c.h.b16 %v633
    %v2756 = vunpack.c.l.b16 %v634
    %v2757 = vunpack.c.h.b16 %v634
    %v2758 = vunpack.c.l.b16 %v635
    %v2759 = vunpack.c.h.b16 %v635
    %v2760 = vunpack.c.l.b16 %v636
    %v2761 = vunpack.c.h.b16 %v636
    %v2762 = vunpack.c.l.b16 %v637
    %v2763 = vunpack.c.h.b16 %v637
    %v2764 = vunpack.c.l.b16 %v638
    %v2765 = vunpack.c.h.b16 %v638
    %v2766 = vunpack.c.l.b16 %v639
    %v2767 = vunpack.c.h.b16 %v639
    %v2768 = vunpack.c.l.b16 %v640
    %v2769 = vunpack.c.h.b16 %v640
    %v2770 = vunpack.c.l.b16 %v641
    %v2771 = vunpack.c.h.b16 %v641
    %v2772 = vunpack.c.l.b16 %v642
    %v2773 = vunpack.c.h.b16 %v642
    %v2774 = vunpack.c.l.b16 %v643
    %v2775 = vunpack.c.h.b16 %v643
    %v2776 = vunpack.c.l.b16 %v644
    %v2777 = vunpack.c.h.b16 %v644
    %v2778 = vunpack.c.l.b16 %v645
    %v2779 = vunpack.c.h.b16 %v645
    %v2780 = vunpack.c.l.b16 %v646
    %v2781 = vunpack.c.h.b16 %v646
    %v2782 = vunpack.c.l.b16 %v647
    %v2783 = vunpack.c.h.b16 %v647
    %v2784 = vunpack.c.l.b16 %v648
    %v2785 = vunpack.c.h.b16 %v648
    %v2786 = vunpack.c.l.b16 %v649
    %v2787 = vunpack.c.h.b16 %v649
    %v2788 = vunpack.c.l.b16 %v650
    %v2789 = vunpack.c.h.b16 %v650
    %v2790 = vunpack.c.l.b16 %v651
    %v2791 = vunpack.c.h.b16 %v651
    %v2792 = vunpack.c.l.b16 %v652
    %v2793 = vunpack.c.h.b16 %v652
    %v2794 = vunpack.c.l.b16 %v653
    %v2795 = vunpack.c.h.b16 %v653
    %v2796 = vunpack.c.l.b16 %v654
    %v2797 = vunpack.c.h.b16 %v654
    %v2798 = vunpack.c.l.b16 %v655
    %v2799 = vunpack.c.h.b16 %v655
    %v2800 = vunpack.c.l.b16 %v656
    %v2801 = vunpack.c.h.b16 %v656
    %v2802 = vunpack.c.l.b16 %v657
    %v2803 = vunpack.c.h.b16 %v657
    %v2804 = vunpack.c.l.b16 %v658
    %v2805 = vunpack.c.h.b16 %v658
    %v2806 = vunpack.c.l.b16 %v659
    %v2807 = vunpack.c.h.b16 %v659
    %v2808 = vunpack.c.l.b16 %v660
    %v2809 = vunpack.c.h.b16 %v660
    %v2810 = vunpack.c.l.b16 %v661
    %v2811 = vunpack.c.h.b16 %v661
    %v2812 = vunpack.c.l.b16 %v662
    %v2813 = vunpack.c.h.b16 %v662
    %v2814 = vunpack.c.l.b16 %v663
    %v2815 = vunpack.c.h.b16 %v663
    %v2816 = vunpack.c.l.b16 %v664
    %v2817 = vunpack.c.h.b16 %v664
    %v2818 = vunpack.c.l.b16 %v665
    %v2819 = vunpack.c.h.b16 %v665
    %v2820 = vunpack.c.l.b16 %v666
    %v2821 = vunpack.c.h.b16 %v666
    %v2822 = vunpack.c.l.b16 %v667
    %v2823 = vunpack.c.h.b16 %v667
    %v2824 = vunpack.c.l.b16 %v668
    %v2825 = vunpack.c.h.b16 %v668
    %v2826 = vunpack.c.l.b16 %v669
    %v2827 = vunpack.c.h.b16 %v669
    %v2828 = vunpack.c.l.b16 %v670
    %v2829 = vunpack.c.h.b16 %v670
    %v2830 = vunpack.c.l.b16 %v671
    %v2831 = vunpack.c.h.b16 %v671
    %v2832 = vunpack.c.l.b16 %v672
    %v2833 = vunpack.c.h.b16 %v672
    %v2834 = vunpack.c.l.b16 %v673
    %v2835 = vunpack.c.h.b16 %v673
    %v2836 = vunpack.c.l.b16 %v674
    %v2837 = vunpack.c.h.b16 %v674
    %v2838 = vunpack.c.l.b16 %v675
    %v2839 = vunpack.c.h.b16 %v675
    %v2840 = vunpack.c.l.b16 %v676
    %v2841 = vunpack.c.h.b16 %v676
    %v2842 = vunpack.c.l.b16 %v677
    %v2843 = vunpack.c.h.b16 %v677
    %v2844 = vunpack.c.l.b16 %v678
    %v2845 = vunpack.c.h.b16 %v678
    %v2846 = vunpack.c.l.b16 %v679
    %v2847 = vunpack.c.h.b16 %v679
    %v2848 = vunpack.c.l.b16 %v680
    %v2849 = vunpack.c.h.b16 %v680
    %v2850 = vunpack.c.l.b16 %v681
    %v2851 = vunpack.c.h.b16 %v681
    %v2852 = vunpack.c.l.b16 %v682
    %v2853 = vunpack.c.h.b16 %v682
    %v2854 = vunpack.c.l.b16 %v683
    %v2855 = vunpack.c.h.b16 %v683
    %v2856 = vunpack.c.l.b16 %v684
    %v2857 = vunpack.c.h.b16 %v684
    %v2858 = vunpack.c.l.b16 %v685
    %v2859 = vunpack.c.h.b16 %v685
    %v2860 = vunpack.c.l.b16 %v686
    %v2861 = vunpack.c.h.b16 %v686
    %v2862 = vunpack.c.l.b16 %v687
    %v2863 = vunpack.c.h.b16 %v687
    %v2864 = vunpack.c.l.b16 %v688
    %v2865 = vunpack.c.h.b16 %v688
    %v2866 = vunpack.c.l.b16 %v689
    %v2867 = vunpack.c.h.b16 %v689
    %v2868 = vunpack.c.l.b16 %v690
    %v2869 = vunpack.c.h.b16 %v690
    %v2870 = vunpack.c.l.b16 %v691
    %v2871 = vunpack.c.h.b16 %v691
    %v2872 = vunpack.c.l.b16 %v692
    %v2873 = vunpack.c.h.b16 %v692
    %v2874 = vunpack.c.l.b16 %v693
    %v2875 = vunpack.c.h.b16 %v693
    %v2876 = vunpack.c.l.b16 %v694
    %v2877 = vunpack.c.h.b16 %v694
    %v2878 = vunpack.c.l.b16 %v695
    %v2879 = vunpack.c.h.b16 %v695
    %v2880 = vunpack.c.l.b16 %v696
    %v2881 = vunpack.c.h.b16 %v696
    %v2882 = vunpack.c.l.b16 %v697
    %v2883 = vunpack.c.h.b16 %v697
    %v2884 = vunpack.c.l.b16 %v698
    %v2885 = vunpack.c.h.b16 %v698
    %v2886 = vunpack.c.l.b16 %v699
    %v2887 = vunpack.c.h.b16 %v699
    %v2888 = vunpack.c.l.b16 %v700
    %v2889 = vunpack.c.h.b16 %v700
    %v2890 = vunpack.c.l.b16 %v701
    %v2891 = vunpack.c.h.b16 %v701
    %v2892 = vunpack.c.l.b16 %v702
    %v2893 = vunpack.c.h.b16 %v702
    %v2894 = vunpack.c.l.b16 %v703
    %v2895 = vunpack.c.h.b16 %v703
    %v2896 = vunpack.c.l.b16 %v704
    %v2897 = vunpack.c.h.b16 %v704
    %v2898 = vunpack.c.l.b16 %v705
    %v2899 = vunpack.c.h.b16 %v705
    %v2900 = vunpack.c.l.b16 %v706
    %v2901 = vunpack.c.h.b16 %v706
    %v2902 = vunpack.c.l.b16 %v707
    %v2903 = vunpack.c.h.b16 %v707
    %v2904 = vunpack.c.l.b16 %v708
    %v2905 = vunpack.c.h.b16 %v708
    %v2906 = vunpack.c.l.b16 %v709
    %v2907 = vunpack.c.h.b16 %v709
    %v2908 = vunpack.c.l.b16 %v710
    %v2909 = vunpack.c.h.b16 %v710
    %v2910 = vunpack.c.l.b16 %v711
    %v2911 = vunpack.c.h.b16 %v711
    %v2912 = vunpack.c.l.b16 %v712
    %v2913 = vunpack.c.h.b16 %v712
    %v2914 = vunpack.c.l.b16 %v713
    %v2915 = vunpack.c.h.b16 %v713
    %v2916 = vunpack.c.l.b16 %v714
    %v2917 = vunpack.c.h.b16 %v714
    %v2918 = vunpack.c.l.b16 %v715
    %v2919 = vunpack.c.h.b16 %v715
    %v2920 = vunpack.c.l.b16 %v716
    %v2921 = vunpack.c.h.b16 %v716
    %v2922 = vunpack.c.l.b16 %v717
    %v2923 = vunpack.c.h.b16 %v717
    %v2924 = vunpack.c.l.b16 %v718
    %v2925 = vunpack.c.h.b16 %v718
    %v2926 = vunpack.c.l.b16 %v719
    %v2927 = vunpack.c.h.b16 %v719
    %v2928 = vunpack.c.l.b16 %v720
    %v2929 = vunpack.c.h.b16 %v720
    %v2930 = vunpack.c.l.b16 %v721
    %v2931 = vunpack.c.h.b16 %v721
    %v2932 = vunpack.c.l.b16 %v722
    %v2933 = vunpack.c.h.b16 %v722
    %v2934 = vunpack.c.l.b16 %v723
    %v2935 = vunpack.c.h.b16 %v723
    %v2936 = vunpack.c.l.b16 %v724
    %v2937 = vunpack.c.h.b16 %v724
    %v2938 = vunpack.c.l.b16 %v725
    %v2939 = vunpack.c.h.b16 %v725
    %v2940 = vunpack.c.l.b16 %v726
    %v2941 = vunpack.c.h.b16 %v726
    %v2942 = vunpack.c.l.b16 %v727
    %v2943 = vunpack.c.h.b16 %v727
    %v2944 = vunpack.c.l.b16 %v728
    %v2945 = vunpack.c.h.b16 %v728
    %v2946 = vunpack.c.l.b16 %v729
    %v2947 = vunpack.c.h.b16 %v729
    %v2948 = vunpack.c.l.b16 %v730
    %v2949 = vunpack.c.h.b16 %v730
    %v2950 = vunpack.c.l.b16 %v731
    %v2951 = vunpack.c.h.b16 %v731
    %v2952 = vunpack.c.l.b16 %v732
    %v2953 = vunpack.c.h.b16 %v732
    %v2954 = vunpack.c.l.b16 %v733
    %v2955 = vunpack.c.h.b16 %v733
    %v2956 = vunpack.c.l.b16 %v734
    %v2957 = vunpack.c.h.b16 %v734
    %v2958 = vunpack.c.l.b16 %v735
    %v2959 = vunpack.c.h.b16 %v735
    %v2960 = vunpack.c.l.b16 %v736
    %v2961 = vunpack.c.h.b16 %v736
    %v2962 = vunpack.c.l.b16 %v737
    %v2963 = vunpack.c.h.b16 %v737
    %v2964 = vunpack.c.l.b16 %v738
    %v2965 = vunpack.c.h.b16 %v738
    %v2966 = vunpack.c.l.b16 %v739
    %v2967 = vunpack.c.h.b16 %v739
    %v2968 = vunpack.c.l.b16 %v740
    %v2969 = vunpack.c.h.b16 %v740
    %v2970 = vunpack.c.l.b16 %v741
    %v2971 = vunpack.c.h.b16 %v741
    %v2972 = vunpack.c.l.b16 %v742
    %v2973 = vunpack.c.h.b16 %v742
    %v2974 = vunpack.c.l.b16 %v743
    %v2975 = vunpack.c.h.b16 %v743
    %v2976 = vunpack.c.l.b16 %v744
    %v2977 = vunpack.c.h.b16 %v744
    %v2978 = vunpack.c.l.b16 %v745
    %v2979 = vunpack.c.h.b16 %v745
    %v2980 = vunpack.c.l.b16 %v746
    %v2981 = vunpack.c.h.b16 %v746
    %v2982 = vunpack.c.l.b16 %v747
    %v2983 = vunpack.c.h.b16 %v747
    %v2984 = vunpack.c.l.b16 %v748
    %v2985 = vunpack.c.h.b16 %v748
    %v2986 = vunpack.c.l.b16 %v749
    %v2987 = vunpack.c.h.b16 %v749
    %v2988 = vunpack.c.l.b16 %v750
    %v2989 = vunpack.c.h.b16 %v750
    %v2990 = vunpack.c.l.b16 %v751
    %v2991 = vunpack.c.h.b16 %v751
    %v2992 = vunpack.c.l.b16 %v752
    %v2993 = vunpack.c.h.b16 %v752
    %v2994 = vunpack.c.l.b16 %v753
    %v2995 = vunpack.c.h.b16 %v753
    %v2996 = vunpack.c.l.b16 %v754
    %v2997 = vunpack.c.h.b16 %v754
    %v2998 = vunpack.c.l.b16 %v755
    %v2999 = vunpack.c.h.b16 %v755
    %v3000 = vunpack.c.l.b16 %v756
    %v3001 = vunpack.c.h.b16 %v756
    %v3002 = vunpack.c.l.b16 %v757
    %v3003 = vunpack.c.h.b16 %v757
    %v3004 = vunpack.c.l.b16 %v758
    %v3005 = vunpack.c.h.b16 %v758
    %v3006 = vunpack.c.l.b16 %v759
    %v3007 = vunpack.c.h.b16 %v759
    %v3008 = vunpack.c.l.b16 %v760
    %v3009 = vunpack.c.h.b16 %v760
    %v3010 = vunpack.c.l.b16 %v761
    %v3011 = vunpack.c.h.b16 %v761
    %v3012 = vunpack.c.l.b16 %v762
    %v3013 = vunpack.c.h.b16 %v762
    %v3014 = vunpack.c.l.b16 %v763
    %v3015 = vunpack.c.h.b16 %v763
    %v3016 = vunpack.c.l.b16 %v764
    %v3017 = vunpack.c.h.b16 %v764
    %v3018 = vunpack.c.l.b16 %v765
    %v3019 = vunpack.c.h.b16 %v765
    %v3020 = vunpack.c.l.b16 %v766
    %v3021 = vunpack.c.h.b16 %v766
    %v3022 = vunpack.c.l.b16 %v767
    %v3023 = vunpack.c.h.b16 %v767
    %v3024 = vunpack.c.l.b16 %v768
    %v3025 = vunpack.c.h.b16 %v768
    %v3026 = vunpack.c.l.b16 %v769
    %v3027 = vunpack.c.h.b16 %v769
    %v3028 = vunpack.c.l.b16 %v770
    %v3029 = vunpack.c.h.b16 %v770
    %v3030 = vunpack.c.l.b16 %v771
    %v3031 = vunpack.c.h.b16 %v771
    %v3032 = vunpack.c.l.b16 %v772
    %v3033 = vunpack.c.h.b16 %v772
    %v3034 = vunpack.c.l.b16 %v773
    %v3035 = vunpack.c.h.b16 %v773
    %v3036 = vunpack.c.l.b16 %v774
    %v3037 = vunpack.c.h.b16 %v774
    %v3038 = vunpack.c.l.b16 %v775
    %v3039 = vunpack.c.h.b16 %v775
    %v3040 = vunpack.c.l.b16 %v776
    %v3041 = vunpack.c.h.b16 %v776
    %v3042 = vunpack.c.l.b16 %v777
    %v3043 = vunpack.c.h.b16 %v777
    %v3044 = vunpack.c.l.b16 %v778
    %v3045 = vunpack.c.h.b16 %v778
    %v3046 = vunpack.c.l.b16 %v779
    %v3047 = vunpack.c.h.b16 %v779
    %v3048 = vunpack.c.l.b16 %v780
    %v3049 = vunpack.c.h.b16 %v780
    %v3050 = vunpack.c.l.b16 %v781
    %v3051 = vunpack.c.h.b16 %v781
    %v3052 = vunpack.c.l.b16 %v782
    %v3053 = vunpack.c.h.b16 %v782
    %v3054 = vunpack.c.l.b16 %v783
    %v3055 = vunpack.c.h.b16 %v783
    %v3056 = vunpack.c.l.b16 %v784
    %v3057 = vunpack.c.h.b16 %v784
    %v3058 = vunpack.c.l.b16 %v785
    %v3059 = vunpack.c.h.b16 %v785
    %v3060 = vunpack.c.l.b16 %v786
    %v3061 = vunpack.c.h.b16 %v786
    %v3062 = vunpack.c.l.b16 %v787
    %v3063 = vunpack.c.h.b16 %v787
    %v3064 = vunpack.c.l.b16 %v788
    %v3065 = vunpack.c.h.b16 %v788
    %v3066 = vunpack.c.l.b16 %v789
    %v3067 = vunpack.c.h.b16 %v789
    %v3068 = vunpack.c.l.b16 %v790
    %v3069 = vunpack.c.h.b16 %v790
    %v3070 = vunpack.c.l.b16 %v791
    %v3071 = vunpack.c.h.b16 %v791
    %v3072 = vunpack.c.l.b16 %v792
    %v3073 = vunpack.c.h.b16 %v792
    %v3074 = vunpack.c.l.b16 %v793
    %v3075 = vunpack.c.h.b16 %v793
    %v3076 = vunpack.c.l.b16 %v794
    %v3077 = vunpack.c.h.b16 %v794
    %v3078 = vunpack.c.l.b16 %v795
    %v3079 = vunpack.c.h.b16 %v795
    %v3080 = vunpack.c.l.b16 %v796
    %v3081 = vunpack.c.h.b16 %v796
    %v3082 = vunpack.c.l.b16 %v797
    %v3083 = vunpack.c.h.b16 %v797
    %v3084 = vunpack.c.l.b16 %v798
    %v3085 = vunpack.c.h.b16 %v798
    %v3086 = vunpack.c.l.b16 %v799
    %v3087 = vunpack.c.h.b16 %v799
    %v3088 = vunpack.c.l.b16 %v800
    %v3089 = vunpack.c.h.b16 %v800
    %v3090 = vunpack.c.l.b16 %v801
    %v3091 = vunpack.c.h.b16 %v801
    %v3092 = vunpack.c.l.b16 %v802
    %v3093 = vunpack.c.h.b16 %v802
    %v3094 = vunpack.c.l.b16 %v803
    %v3095 = vunpack.c.h.b16 %v803
    %v3096 = vunpack.c.l.b16 %v804
    %v3097 = vunpack.c.h.b16 %v804
    %v3098 = vunpack.c.l.b16 %v805
    %v3099 = vunpack.c.h.b16 %v805
    %v3100 = vunpack.c.l.b16 %v806
    %v3101 = vunpack.c.h.b16 %v806
    %v3102 = vunpack.c.l.b16 %v807
    %v3103 = vunpack.c.h.b16 %v807
    %v3104 = vunpack.c.l.b16 %v808
    %v3105 = vunpack.c.h.b16 %v808
    %v3106 = vunpack.c.l.b16 %v809
    %v3107 = vunpack.c.h.b16 %v809
    %v3108 = vunpack.c.l.b16 %v810
    %v3109 = vunpack.c.h.b16 %v810
    %v3110 = vunpack.c.l.b16 %v811
    %v3111 = vunpack.c.h.b16 %v811
    %v3112 = vunpack.c.l.b16 %v812
    %v3113 = vunpack.c.h.b16 %v812
    %v3114 = vunpack.c.l.b16 %v813
    %v3115 = vunpack.c.h.b16 %v813
    %v3116 = vunpack.c.l.b16 %v814
    %v3117 = vunpack.c.h.b16 %v814
    %v3118 = vunpack.c.l.b16 %v815
    %v3119 = vunpack.c.h.b16 %v815
    %v3120 = vunpack.c.l.b16 %v816
    %v3121 = vunpack.c.h.b16 %v816
    %v3122 = vunpack.c.l.b16 %v817
    %v3123 = vunpack.c.h.b16 %v817
    %v3124 = vunpack.c.l.b16 %v818
    %v3125 = vunpack.c.h.b16 %v818
    %v3126 = vunpack.c.l.b16 %v819
    %v3127 = vunpack.c.h.b16 %v819
    %v3128 = vunpack.c.l.b16 %v820
    %v3129 = vunpack.c.h.b16 %v820
    %v3130 = vunpack.c.l.b16 %v821
    %v3131 = vunpack.c.h.b16 %v821
    %v3132 = vunpack.c.l.b16 %v822
    %v3133 = vunpack.c.h.b16 %v822
    %v3134 = vunpack.c.l.b16 %v823
    %v3135 = vunpack.c.h.b16 %v823
    %v3136 = vunpack.c.l.b16 %v824
    %v3137 = vunpack.c.h.b16 %v824
    %v3138 = vunpack.c.l.b16 %v825
    %v3139 = vunpack.c.h.b16 %v825
    %v3140 = vunpack.c.l.b16 %v826
    %v3141 = vunpack.c.h.b16 %v826
    %v3142 = vunpack.c.l.b16 %v827
    %v3143 = vunpack.c.h.b16 %v827
    %v3144 = vunpack.c.l.b16 %v828
    %v3145 = vunpack.c.h.b16 %v828
    %v3146 = vunpack.c.l.b16 %v829
    %v3147 = vunpack.c.h.b16 %v829
    %v3148 = vunpack.c.l.b16 %v830
    %v3149 = vunpack.c.h.b16 %v830
    %v3150 = vunpack.c.l.b16 %v831
    %v3151 = vunpack.c.h.b16 %v831
    %v3152 = vunpack.c.l.b16 %v832
    %v3153 = vunpack.c.h.b16 %v832
    %v3154 = vunpack.c.l.b16 %v833
    %v3155 = vunpack.c.h.b16 %v833
    %v3156 = vunpack.c.l.b16 %v834
    %v3157 = vunpack.c.h.b16 %v834
    %v3158 = vunpack.c.l.b16 %v835
    %v3159 = vunpack.c.h.b16 %v835
    %v3160 = vunpack.c.l.b16 %v836
    %v3161 = vunpack.c.h.b16 %v836
    %v3162 = vunpack.c.l.b16 %v837
    %v3163 = vunpack.c.h.b16 %v837
    %v3164 = vunpack.c.l.b16 %v838
    %v3165 = vunpack.c.h.b16 %v838
    %v3166 = vunpack.c.l.b16 %v839
    %v3167 = vunpack.c.h.b16 %v839
    %v3168 = vunpack.c.l.b16 %v840
    %v3169 = vunpack.c.h.b16 %v840
    %v3170 = vunpack.c.l.b16 %v841
    %v3171 = vunpack.c.h.b16 %v841
    %v3172 = vunpack.c.l.b16 %v842
    %v3173 = vunpack.c.h.b16 %v842
    %v3174 = vunpack.c.l.b16 %v843
    %v3175 = vunpack.c.h.b16 %v843
    %v3176 = vunpack.c.l.b16 %v844
    %v3177 = vunpack.c.h.b16 %v844
    %v3178 = vunpack.c.l.b16 %v845
    %v3179 = vunpack.c.h.b16 %v845
    %v3180 = vunpack.c.l.b16 %v846
    %v3181 = vunpack.c.h.b16 %v846
    %v3182 = vunpack.c.l.b16 %v847
    %v3183 = vunpack.c.h.b16 %v847
    %v3184 = vunpack.c.l.b16 %v848
    %v3185 = vunpack.c.h.b16 %v848
    %v3186 = vunpack.c.l.b16 %v849
    %v3187 = vunpack.c.h.b16 %v849
    %v3188 = vunpack.c.l.b16 %v850
    %v3189 = vunpack.c.h.b16 %v850
    %v3190 = vunpack.c.l.b16 %v851
    %v3191 = vunpack.c.h.b16 %v851
    %v3192 = vunpack.c.l.b16 %v852
    %v3193 = vunpack.c.h.b16 %v852
    %v3194 = vunpack.c.l.b16 %v853
    %v3195 = vunpack.c.h.b16 %v853
    %v3196 = vunpack.c.l.b16 %v854
    %v3197 = vunpack.c.h.b16 %v854
    %v3198 = vunpack.c.l.b16 %v855
    %v3199 = vunpack.c.h.b16 %v855
    %v3200 = vunpack.c.l.b16 %v856
    %v3201 = vunpack.c.h.b16 %v856
    %v3202 = vunpack.c.l.b16 %v857
    %v3203 = vunpack.c.h.b16 %v857
    %v3204 = vunpack.c.l.b16 %v858
    %v3205 = vunpack.c.h.b16 %v858
    %v3206 = vunpack.c.l.b16 %v859
    %v3207 = vunpack.c.h.b16 %v859
    %v3208 = vunpack.c.l.b16 %v860
    %v3209 = vunpack.c.h.b16 %v860
    %v3210 = vunpack.c.l.b16 %v861
    %v3211 = vunpack.c.h.b16 %v861
    %v3212 = vunpack.c.l.b16 %v862
    %v3213 = vunpack.c.h.b16 %v862
    %v3214 = vunpack.c.l.b16 %v863
    %v3215 = vunpack.c.h.b16 %v863
    %v3216 = vunpack.c.l.b16 %v864
    %v3217 = vunpack.c.h.b16 %v864
    %v3218 = vunpack.c.l.b16 %v865
    %v3219 = vunpack.c.h.b16 %v865
    %v3220 = vunpack.c.l.b16 %v866
    %v3221 = vunpack.c.h.b16 %v866
    %v3222 = vunpack.c.l.b16 %v867
    %v3223 = vunpack.c.h.b16 %v867
    %v3224 = vunpack.c.l.b16 %v868
    %v3225 = vunpack.c.h.b16 %v868
    %v3226 = vunpack.c.l.b16 %v869
    %v3227 = vunpack.c.h.b16 %v869
    %v3228 = vunpack.c.l.b16 %v870
    %v3229 = vunpack.c.h.b16 %v870
    %v3230 = vunpack.c.l.b16 %v871
    %v3231 = vunpack.c.h.b16 %v871
    %v3232 = vunpack.c.l.b16 %v872
    %v3233 = vunpack.c.h.b16 %v872
    %v3234 = vunpack.c.l.b16 %v873
    %v3235 = vunpack.c.h.b16 %v873
    %v3236 = vunpack.c.l.b16 %v874
    %v3237 = vunpack.c.h.b16 %v874
    %v3238 = vunpack.c.l.b16 %v875
    %v3239 = vunpack.c.h.b16 %v875
    %v3240 = vunpack.c.l.b16 %v876
    %v3241 = vunpack.c.h.b16 %v876
    %v3242 = vunpack.c.l.b16 %v877
    %v3243 = vunpack.c.h.b16 %v877
    %v3244 = vunpack.c.l.b16 %v878
    %v3245 = vunpack.c.h.b16 %v878
    %v3246 = vunpack.c.l.b16 %v879
    %v3247 = vunpack.c.h.b16 %v879
    %v3248 = vunpack.c.l.b16 %v880
    %v3249 = vunpack.c.h.b16 %v880
    %v3250 = vunpack.c.l.b16 %v881
    %v3251 = vunpack.c.h.b16 %v881
    %v3252 = vunpack.c.l.b16 %v882
    %v3253 = vunpack.c.h.b16 %v882
    %v3254 = vunpack.c.l.b16 %v883
    %v3255 = vunpack.c.h.b16 %v883
    %v3256 = vunpack.c.l.b16 %v884
    %v3257 = vunpack.c.h.b16 %v884
    %v3258 = vunpack.c.l.b16 %v885
    %v3259 = vunpack.c.h.b16 %v885
    %v3260 = vunpack.c.l.b16 %v886
    %v3261 = vunpack.c.h.b16 %v886
    %v3262 = vunpack.c.l.b16 %v887
    %v3263 = vunpack.c.h.b16 %v887
    %v3264 = vunpack.c.l.b16 %v888
    %v3265 = vunpack.c.h.b16 %v888
    %v3266 = vunpack.c.l.b16 %v889
    %v3267 = vunpack.c.h.b16 %v889
    %v3268 = vunpack.c.l.b16 %v890
    %v3269 = vunpack.c.h.b16 %v890
    %v3270 = vunpack.c.l.b16 %v891
    %v3271 = vunpack.c.h.b16 %v891
    %v3272 = vunpack.c.l.b16 %v892
    %v3273 = vunpack.c.h.b16 %v892
    %v3274 = vunpack.c.l.b16 %v893
    %v3275 = vunpack.c.h.b16 %v893
    %v3276 = vunpack.c.l.b16 %v894
    %v3277 = vunpack.c.h.b16 %v894
    %v3278 = vunpack.c.l.b16 %v895
    %v3279 = vunpack.c.h.b16 %v895
    %v3280 = vunpack.c.l.b16 %v896
    %v3281 = vunpack.c.h.b16 %v896
    %v3282 = vunpack.c.l.b16 %v897
    %v3283 = vunpack.c.h.b16 %v897
    %v3284 = vunpack.c.l.b16 %v898
    %v3285 = vunpack.c.h.b16 %v898
    %v3286 = vunpack.c.l.b16 %v899
    %v3287 = vunpack.c.h.b16 %v899
    %v3288 = vunpack.c.l.b16 %v900
    %v3289 = vunpack.c.h.b16 %v900
    %v3290 = vunpack.c.l.b16 %v901
    %v3291 = vunpack.c.h.b16 %v901
    %v3292 = vunpack.c.l.b16 %v902
    %v3293 = vunpack.c.h.b16 %v902
    %v3294 = vunpack.c.l.b16 %v903
    %v3295 = vunpack.c.h.b16 %v903
    %v3296 = vunpack.c.l.b16 %v904
    %v3297 = vunpack.c.h.b16 %v904
    %v3298 = vunpack.c.l.b16 %v905
    %v3299 = vunpack.c.h.b16 %v905
    %v3300 = vunpack.c.l.b16 %v906
    %v3301 = vunpack.c.h.b16 %v906
    %v3302 = vunpack.c.l.b16 %v907
    %v3303 = vunpack.c.h.b16 %v907
    %v3304 = vunpack.c.l.b16 %v908
    %v3305 = vunpack.c.h.b16 %v908
    %v3306 = vunpack.c.l.b16 %v909
    %v3307 = vunpack.c.h.b16 %v909
    %v3308 = vunpack.c.l.b16 %v910
    %v3309 = vunpack.c.h.b16 %v910
    %v3310 = vunpack.c.l.b16 %v911
    %v3311 = vunpack.c.h.b16 %v911
    %v3312 = vunpack.c.l.b16 %v912
    %v3313 = vunpack.c.h.b16 %v912
    %v3314 = vunpack.c.l.b16 %v913
    %v3315 = vunpack.c.h.b16 %v913
    %v3316 = vunpack.c.l.b16 %v914
    %v3317 = vunpack.c.h.b16 %v914
    %v3318 = vunpack.c.l.b16 %v915
    %v3319 = vunpack.c.h.b16 %v915
    %v3320 = vunpack.c.l.b16 %v916
    %v3321 = vunpack.c.h.b16 %v916
    %v3322 = vunpack.c.l.b16 %v917
    %v3323 = vunpack.c.h.b16 %v917
    %v3324 = vunpack.c.l.b16 %v918
    %v3325 = vunpack.c.h.b16 %v918
    %v3326 = vunpack.c.l.b16 %v919
    %v3327 = vunpack.c.h.b16 %v919
    %v3328 = vunpack.c.l.b16 %v920
    %v3329 = vunpack.c.h.b16 %v920
    %v3330 = vunpack.c.l.b16 %v921
    %v3331 = vunpack.c.h.b16 %v921
    %v3332 = vunpack.c.l.b16 %v922
    %v3333 = vunpack.c.h.b16 %v922
    %v3334 = vunpack.c.l.b16 %v923
    %v3335 = vunpack.c.h.b16 %v923
    %v3336 = vunpack.c.l.b16 %v924
    %v3337 = vunpack.c.h.b16 %v924
    %v3338 = vunpack.c.l.b16 %v925
    %v3339 = vunpack.c.h.b16 %v925
    %v3340 = vunpack.c.l.b16 %v926
    %v3341 = vunpack.c.h.b16 %v926
    %v3342 = vunpack.c.l.b16 %v927
    %v3343 = vunpack.c.h.b16 %v927
    %v3344 = vunpack.c.l.b16 %v928
    %v3345 = vunpack.c.h.b16 %v928
    %v3346 = vunpack.c.l.b16 %v929
    %v3347 = vunpack.c.h.b16 %v929
    %v3348 = vunpack.c.l.b16 %v930
    %v3349 = vunpack.c.h.b16 %v930
    %v3350 = vunpack.c.l.b16 %v931
    %v3351 = vunpack.c.h.b16 %v931
    %v3352 = vunpack.c.l.b16 %v932
    %v3353 = vunpack.c.h.b16 %v932
    %v3354 = vunpack.c.l.b16 %v933
    %v3355 = vunpack.c.h.b16 %v933
    %v3356 = vunpack.c.l.b16 %v934
    %v3357 = vunpack.c.h.b16 %v934
    %v3358 = vunpack.c.l.b16 %v935
    %v3359 = vunpack.c.h.b16 %v935
    %v3360 = vunpack.c.l.b16 %v936
    %v3361 = vunpack.c.h.b16 %v936
    %v3362 = vunpack.c.l.b16 %v937
    %v3363 = vunpack.c.h.b16 %v937
    %v3364 = vunpack.c.l.b16 %v938
    %v3365 = vunpack.c.h.b16 %v938
    %v3366 = vunpack.c.l.b16 %v939
    %v3367 = vunpack.c.h.b16 %v939
    %v3368 = vunpack.c.l.b16 %v940
    %v3369 = vunpack.c.h.b16 %v940
    %v3370 = vunpack.c.l.b16 %v941
    %v3371 = vunpack.c.h.b16 %v941
    %v3372 = vunpack.c.l.b16 %v942
    %v3373 = vunpack.c.h.b16 %v942
    %v3374 = vunpack.c.l.b16 %v943
    %v3375 = vunpack.c.h.b16 %v943
    %v3376 = vunpack.c.l.b16 %v944
    %v3377 = vunpack.c.h.b16 %v944
    %v3378 = vunpack.c.l.b16 %v945
    %v3379 = vunpack.c.h.b16 %v945
    %v3380 = vunpack.c.l.b16 %v946
    %v3381 = vunpack.c.h.b16 %v946
    %v3382 = vunpack.c.l.b16 %v947
    %v3383 = vunpack.c.h.b16 %v947
    %v3384 = vunpack.c.l.b16 %v948
    %v3385 = vunpack.c.h.b16 %v948
    %v3386 = vunpack.c.l.b16 %v949
    %v3387 = vunpack.c.h.b16 %v949
    %v3388 = vunpack.c.l.b16 %v950
    %v3389 = vunpack.c.h.b16 %v950
    %v3390 = vunpack.c.l.b16 %v951
    %v3391 = vunpack.c.h.b16 %v951
    %v3392 = vunpack.c.l.b16 %v952
    %v3393 = vunpack.c.h.b16 %v952
    %v3394 = vunpack.c.l.b16 %v953
    %v3395 = vunpack.c.h.b16 %v953
    %v3396 = vunpack.c.l.b16 %v954
    %v3397 = vunpack.c.h.b16 %v954
    %v3398 = vunpack.c.l.b16 %v955
    %v3399 = vunpack.c.h.b16 %v955
    %v3400 = vunpack.c.l.b16 %v956
    %v3401 = vunpack.c.h.b16 %v956
    %v3402 = vunpack.c.l.b16 %v957
    %v3403 = vunpack.c.h.b16 %v957
    %v3404 = vpack.c.b16 %v1872, %v1868
    %v3405 = vpack.c.b16 %v1873, %v1869
    %v3406 = vpack.c.b16 %v1874, %v1870
    %v3407 = vpack.c.b16 %v1875, %v1871
    %v3408 = vpack.c.b16 %v1880, %v1876
    %v3409 = vpack.c.b16 %v1881, %v1877
    %v3410 = vpack.c.b16 %v1882, %v1878
    %v3411 = vpack.c.b16 %v1883, %v1879
    %v3412 = vpack.c.b16 %v1888, %v1884
    %v3413 = vpack.c.b16 %v1889, %v1885
    %v3414 = vpack.c.b16 %v1890, %v1886
    %v3415 = vpack.c.b16 %v1891, %v1887
    %v3416 = vpack.c.b16 %v1896, %v1892
    %v3417 = vpack.c.b16 %v1897, %v1893
    %v3418 = vpack.c.b16 %v1898, %v1894
    %v3419 = vpack.c.b16 %v1899, %v1895
    %v3420 = vpack.c.b16 %v1904, %v1900
    %v3421 = vpack.c.b16 %v1905, %v1901
    %v3422 = vpack.c.b16 %v1906, %v1902
    %v3423 = vpack.c.b16 %v1907, %v1903
    %v3424 = vpack.c.b16 %v1912, %v1908
    %v3425 = vpack.c.b16 %v1913, %v1909
    %v3426 = vpack.c.b16 %v1914, %v1910
    %v3427 = vpack.c.b16 %v1915, %v1911
    %v3428 = vpack.c.b16 %v1920, %v1916
    %v3429 = vpack.c.b16 %v1921, %v1917
    %v3430 = vpack.c.b16 %v1922, %v1918
    %v3431 = vpack.c.b16 %v1923, %v1919
    %v3432 = vpack.c.b16 %v1928, %v1924
    %v3433 = vpack.c.b16 %v1929, %v1925
    %v3434 = vpack.c.b16 %v1930, %v1926
    %v3435 = vpack.c.b16 %v1931, %v1927
    %v3436 = vpack.c.b16 %v1936, %v1932
    %v3437 = vpack.c.b16 %v1937, %v1933
    %v3438 = vpack.c.b16 %v1938, %v1934
    %v3439 = vpack.c.b16 %v1939, %v1935
    %v3440 = vpack.c.b16 %v1944, %v1940
    %v3441 = vpack.c.b16 %v1945, %v1941
    %v3442 = vpack.c.b16 %v1946, %v1942
    %v3443 = vpack.c.b16 %v1947, %v1943
    %v3444 = vpack.c.b16 %v1952, %v1948
    %v3445 = vpack.c.b16 %v1953, %v1949
    %v3446 = vpack.c.b16 %v1954, %v1950
    %v3447 = vpack.c.b16 %v1955, %v1951
    %v3448 = vpack.c.b16 %v1960, %v1956
    %v3449 = vpack.c.b16 %v1961, %v1957
    %v3450 = vpack.c.b16 %v1962, %v1958
    %v3451 = vpack.c.b16 %v1963, %v1959
    %v3452 = vpack.c.b16 %v1968, %v1964
    %v3453 = vpack.c.b16 %v1969, %v1965
    %v3454 = vpack.c.b16 %v1970, %v1966
    %v3455 = vpack.c.b16 %v1971, %v1967
    %v3456 = vpack.c.b16 %v1976, %v1972
    %v3457 = vpack.c.b16 %v1977, %v1973
    %v3458 = vpack.c.b16 %v1978, %v1974
    %v3459 = vpack.c.b16 %v1979, %v1975
    %v3460 = vpack.c.b16 %v1984, %v1980
    %v3461 = vpack.c.b16 %v1985, %v1981
    %v3462 = vpack.c.b16 %v1986, %v1982
    %v3463 = vpack.c.b16 %v1987, %v1983
    %v3464 = vpack.c.b16 %v1992, %v1988
    %v3465 = vpack.c.b16 %v1993, %v1989
    %v3466 = vpack.c.b16 %v1994, %v1990
    %v3467 = vpack.c.b16 %v1995, %v1991
    %v3468 = vpack.c.b16 %v2000, %v1996
    %v3469 = vpack.c.b16 %v2001, %v1997
    %v3470 = vpack.c.b16 %v2002, %v1998
    %v3471 = vpack.c.b16 %v2003, %v1999
    %v3472 = vpack.c.b16 %v2008, %v2004
    %v3473 = vpack.c.b16 %v2009, %v2005
    %v3474 = vpack.c.b16 %v2010, %v2006
    %v3475 = vpack.c.b16 %v2011, %v2007
    %v3476 = vpack.c.b16 %v2016, %v2012
    %v3477 = vpack.c.b16 %v2017, %v2013
    %v3478 = vpack.c.b16 %v2018, %v2014
    %v3479 = vpack.c.b16 %v2019, %v2015
    %v3480 = vpack.c.b16 %v2024, %v2020
    %v3481 = vpack.c.b16 %v2025, %v2021
    %v3482 = vpack.c.b16 %v2026, %v2022
    %v3483 = vpack.c.b16 %v2027, %v2023
    %v3484 = vpack.c.b16 %v2032, %v2028
    %v3485 = vpack.c.b16 %v2033, %v2029
    %v3486 = vpack.c.b16 %v2034, %v2030
    %v3487 = vpack.c.b16 %v2035, %v2031
    %v3488 = vpack.c.b16 %v2040, %v2036
    %v3489 = vpack.c.b16 %v2041, %v2037
    %v3490 = vpack.c.b16 %v2042, %v2038
    %v3491 = vpack.c.b16 %v2043, %v2039
    %v3492 = vpack.c.b16 %v2048, %v2044
    %v3493 = vpack.c.b16 %v2049, %v2045
    %v3494 = vpack.c.b16 %v2050, %v2046
    %v3495 = vpack.c.b16 %v2051, %v2047
    %v3496 = vpack.c.b16 %v2056, %v2052
    %v3497 = vpack.c.b16 %v2057, %v2053
    %v3498 = vpack.c.b16 %v2058, %v2054
    %v3499 = vpack.c.b16 %v2059, %v2055
    %v3500 = vpack.c.b16 %v2064, %v2060
    %v3501 = vpack.c.b16 %v2065, %v2061
    %v3502 = vpack.c.b16 %v2066, %v2062
    %v3503 = vpack.c.b16 %v2067, %v2063
    %v3504 = vpack.c.b16 %v2072, %v2068
    %v3505 = vpack.c.b16 %v2073, %v2069
    %v3506 = vpack.c.b16 %v2074, %v2070
    %v3507 = vpack.c.b16 %v2075, %v2071
    %v3508 = vpack.c.b16 %v2080, %v2076
    %v3509 = vpack.c.b16 %v2081, %v2077
    %v3510 = vpack.c.b16 %v2082, %v2078
    %v3511 = vpack.c.b16 %v2083, %v2079
    %v3512 = vpack.c.b16 %v2088, %v2084
    %v3513 = vpack.c.b16 %v2089, %v2085
    %v3514 = vpack.c.b16 %v2090, %v2086
    %v3515 = vpack.c.b16 %v2091, %v2087
    %v3516 = vpack.c.b16 %v2096, %v2092
    %v3517 = vpack.c.b16 %v2097, %v2093
    %v3518 = vpack.c.b16 %v2098, %v2094
    %v3519 = vpack.c.b16 %v2099, %v2095
    %v3520 = vpack.c.b16 %v2104, %v2100
    %v3521 = vpack.c.b16 %v2105, %v2101
    %v3522 = vpack.c.b16 %v2106, %v2102
    %v3523 = vpack.c.b16 %v2107, %v2103
    %v3524 = vpack.c.b16 %v2112, %v2108
    %v3525 = vpack.c.b16 %v2113, %v2109
    %v3526 = vpack.c.b16 %v2114, %v2110
    %v3527 = vpack.c.b16 %v2115, %v2111
    %v3528 = vpack.c.b16 %v2120, %v2116
    %v3529 = vpack.c.b16 %v2121, %v2117
    %v3530 = vpack.c.b16 %v2122, %v2118
    %v3531 = vpack.c.b16 %v2123, %v2119
    %v3532 = vpack.c.b16 %v2128, %v2124
    %v3533 = vpack.c.b16 %v2129, %v2125
    %v3534 = vpack.c.b16 %v2130, %v2126
    %v3535 = vpack.c.b16 %v2131, %v2127
    %v3536 = vpack.c.b16 %v2136, %v2132
    %v3537 = vpack.c.b16 %v2137, %v2133
    %v3538 = vpack.c.b16 %v2138, %v2134
    %v3539 = vpack.c.b16 %v2139, %v2135
    %v3540 = vpack.c.b16 %v2144, %v2140
    %v3541 = vpack.c.b16 %v2145, %v2141
    %v3542 = vpack.c.b16 %v2146, %v2142
    %v3543 = vpack.c.b16 %v2147, %v2143
    %v3544 = vpack.c.b16 %v2152, %v2148
    %v3545 = vpack.c.b16 %v2153, %v2149
    %v3546 = vpack.c.b16 %v2154, %v2150
    %v3547 = vpack.c.b16 %v2155, %v2151
    %v3548 = vpack.c.b16 %v2160, %v2156
    %v3549 = vpack.c.b16 %v2161, %v2157
    %v3550 = vpack.c.b16 %v2162, %v2158
    %v3551 = vpack.c.b16 %v2163, %v2159
    %v3552 = vpack.c.b16 %v2168, %v2164
    %v3553 = vpack.c.b16 %v2169, %v2165
    %v3554 = vpack.c.b16 %v2170, %v2166
    %v3555 = vpack.c.b16 %v2171, %v2167
    %v3556 = vpack.c.b16 %v2176, %v2172
    %v3557 = vpack.c.b16 %v2177, %v2173
    %v3558 = vpack.c.b16 %v2178, %v2174
    %v3559 = vpack.c.b16 %v2179, %v2175
    %v3560 = vpack.c.b16 %v2184, %v2180
    %v3561 = vpack.c.b16 %v2185, %v2181
    %v3562 = vpack.c.b16 %v2186, %v2182
    %v3563 = vpack.c.b16 %v2187, %v2183
    %v3564 = vpack.c.b16 %v2192, %v2188
    %v3565 = vpack.c.b16 %v2193, %v2189
    %v3566 = vpack.c.b16 %v2194, %v2190
    %v3567 = vpack.c.b16 %v2195, %v2191
    %v3568 = vpack.c.b16 %v2200, %v2196
    %v3569 = vpack.c.b16 %v2201, %v2197
    %v3570 = vpack.c.b16 %v2202, %v2198
    %v3571 = vpack.c.b16 %v2203, %v2199
    %v3572 = vpack.c.b16 %v2208, %v2204
    %v3573 = vpack.c.b16 %v2209, %v2205
    %v3574 = vpack.c.b16 %v2210, %v2206
    %v3575 = vpack.c.b16 %v2211, %v2207
    %v3576 = vpack.c.b16 %v2216, %v2212
    %v3577 = vpack.c.b16 %v2217, %v2213
    %v3578 = vpack.c.b16 %v2218, %v2214
    %v3579 = vpack.c.b16 %v2219, %v2215
    %v3580 = vpack.c.b16 %v2224, %v2220
    %v3581 = vpack.c.b16 %v2225, %v2221
    %v3582 = vpack.c.b16 %v2226, %v2222
    %v3583 = vpack.c.b16 %v2227, %v2223
    %v3584 = vpack.c.b16 %v2232, %v2228
    %v3585 = vpack.c.b16 %v2233, %v2229
    %v3586 = vpack.c.b16 %v2234, %v2230
    %v3587 = vpack.c.b16 %v2235, %v2231
    %v3588 = vpack.c.b16 %v2240, %v2236
    %v3589 = vpack.c.b16 %v2241, %v2237
    %v3590 = vpack.c.b16 %v2242, %v2238
    %v3591 = vpack.c.b16 %v2243, %v2239
    %v3592 = vpack.c.b16 %v2248, %v2244
    %v3593 = vpack.c.b16 %v2249, %v2245
    %v3594 = vpack.c.b16 %v2250, %v2246
    %v3595 = vpack.c.b16 %v2251, %v2247
    %v3596 = vpack.c.b16 %v2256, %v2252
    %v3597 = vpack.c.b16 %v2257, %v2253
    %v3598 = vpack.c.b16 %v2258, %v2254
    %v3599 = vpack.c.b16 %v2259, %v2255
    %v3600 = vpack.c.b16 %v2264, %v2260
    %v3601 = vpack.c.b16 %v2265, %v2261
    %v3602 = vpack.c.b16 %v2266, %v2262
    %v3603 = vpack.c.b16 %v2267, %v2263
    %v3604 = vpack.c.b16 %v2272, %v2268
    %v3605 = vpack.c.b16 %v2273, %v2269
    %v3606 = vpack.c.b16 %v2274, %v2270
    %v3607 = vpack.c.b16 %v2275, %v2271
    %v3608 = vpack.c.b16 %v2280, %v2276
    %v3609 = vpack.c.b16 %v2281, %v2277
    %v3610 = vpack.c.b16 %v2282, %v2278
    %v3611 = vpack.c.b16 %v2283, %v2279
    %v3612 = vpack.c.b16 %v2288, %v2284
    %v3613 = vpack.c.b16 %v2289, %v2285
    %v3614 = vpack.c.b16 %v2290, %v2286
    %v3615 = vpack.c.b16 %v2291, %v2287
    %v3616 = vpack.c.b16 %v2296, %v2292
    %v3617 = vpack.c.b16 %v2297, %v2293
    %v3618 = vpack.c.b16 %v2298, %v2294
    %v3619 = vpack.c.b16 %v2299, %v2295
    %v3620 = vpack.c.b16 %v2304, %v2300
    %v3621 = vpack.c.b16 %v2305, %v2301
    %v3622 = vpack.c.b16 %v2306, %v2302
    %v3623 = vpack.c.b16 %v2307, %v2303
    %v3624 = vpack.c.b16 %v2312, %v2308
    %v3625 = vpack.c.b16 %v2313, %v2309
    %v3626 = vpack.c.b16 %v2314, %v2310
    %v3627 = vpack.c.b16 %v2315, %v2311
    %v3628 = vpack.c.b16 %v2320, %v2316
    %v3629 = vpack.c.b16 %v2321, %v2317
    %v3630 = vpack.c.b16 %v2322, %v2318
    %v3631 = vpack.c.b16 %v2323, %v2319
    %v3632 = vpack.c.b16 %v2328, %v2324
    %v3633 = vpack.c.b16 %v2329, %v2325
    %v3634 = vpack.c.b16 %v2330, %v2326
    %v3635 = vpack.c.b16 %v2331, %v2327
    %v3636 = vpack.c.b16 %v2336, %v2332
    %v3637 = vpack.c.b16 %v2337, %v2333
    %v3638 = vpack.c.b16 %v2338, %v2334
    %v3639 = vpack.c.b16 %v2339, %v2335
    %v3640 = vpack.c.b16 %v2344, %v2340
    %v3641 = vpack.c.b16 %v2345, %v2341
    %v3642 = vpack.c.b16 %v2346, %v2342
    %v3643 = vpack.c.b16 %v2347, %v2343
    %v3644 = vpack.c.b16 %v2352, %v2348
    %v3645 = vpack.c.b16 %v2353, %v2349
    %v3646 = vpack.c.b16 %v2354, %v2350
    %v3647 = vpack.c.b16 %v2355, %v2351
    %v3648 = vpack.c.b16 %v2360, %v2356
    %v3649 = vpack.c.b16 %v2361, %v2357
    %v3650 = vpack.c.b16 %v2362, %v2358
    %v3651 = vpack.c.b16 %v2363, %v2359
    %v3652 = vpack.c.b16 %v2368, %v2364
    %v3653 = vpack.c.b16 %v2369, %v2365
    %v3654 = vpack.c.b16 %v2370, %v2366
    %v3655 = vpack.c.b16 %v2371, %v2367
    %v3656 = vpack.c.b16 %v2376, %v2372
    %v3657 = vpack.c.b16 %v2377, %v2373
    %v3658 = vpack.c.b16 %v2378, %v2374
    %v3659 = vpack.c.b16 %v2379, %v2375
    %v3660 = vpack.c.b16 %v2384, %v2380
    %v3661 = vpack.c.b16 %v2385, %v2381
    %v3662 = vpack.c.b16 %v2386, %v2382
    %v3663 = vpack.c.b16 %v2387, %v2383
    %v3664 = vpack.c.b16 %v2392, %v2388
    %v3665 = vpack.c.b16 %v2393, %v2389
    %v3666 = vpack.c.b16 %v2394, %v2390
    %v3667 = vpack.c.b16 %v2395, %v2391
    %v3668 = vpack.c.b16 %v2400, %v2396
    %v3669 = vpack.c.b16 %v2401, %v2397
    %v3670 = vpack.c.b16 %v2402, %v2398
    %v3671 = vpack.c.b16 %v2403, %v2399
    %v3672 = vpack.c.b16 %v2408, %v2404
    %v3673 = vpack.c.b16 %v2409, %v2405
    %v3674 = vpack.c.b16 %v2410, %v2406
    %v3675 = vpack.c.b16 %v2411, %v2407
    %v3676 = vpack.c.b16 %v2416, %v2412
    %v3677 = vpack.c.b16 %v2417, %v2413
    %v3678 = vpack.c.b16 %v2418, %v2414
    %v3679 = vpack.c.b16 %v2419, %v2415
    %v3680 = vpack.c.b16 %v2424, %v2420
    %v3681 = vpack.c.b16 %v2425, %v2421
    %v3682 = vpack.c.b16 %v2426, %v2422
    %v3683 = vpack.c.b16 %v2427, %v2423
    %v3684 = vpack.c.b16 %v2432, %v2428
    %v3685 = vpack.c.b16 %v2433, %v2429
    %v3686 = vpack.c.b16 %v2434, %v2430
    %v3687 = vpack.c.b16 %v2435, %v2431
    %v3688 = vpack.c.b16 %v2440, %v2436
    %v3689 = vpack.c.b16 %v2441, %v2437
    %v3690 = vpack.c.b16 %v2442, %v2438
    %v3691 = vpack.c.b16 %v2443, %v2439
    %v3692 = vpack.c.b16 %v2448, %v2444
    %v3693 = vpack.c.b16 %v2449, %v2445
    %v3694 = vpack.c.b16 %v2450, %v2446
    %v3695 = vpack.c.b16 %v2451, %v2447
    %v3696 = vpack.c.b16 %v2456, %v2452
    %v3697 = vpack.c.b16 %v2457, %v2453
    %v3698 = vpack.c.b16 %v2458, %v2454
    %v3699 = vpack.c.b16 %v2459, %v2455
    %v3700 = vpack.c.b16 %v2464, %v2460
    %v3701 = vpack.c.b16 %v2465, %v2461
    %v3702 = vpack.c.b16 %v2466, %v2462
    %v3703 = vpack.c.b16 %v2467, %v2463
    %v3704 = vpack.c.b16 %v2472, %v2468
    %v3705 = vpack.c.b16 %v2473, %v2469
    %v3706 = vpack.c.b16 %v2474, %v2470
    %v3707 = vpack.c.b16 %v2475, %v2471
    %v3708 = vpack.c.b16 %v2480, %v2476
    %v3709 = vpack.c.b16 %v2481, %v2477
    %v3710 = vpack.c.b16 %v2482, %v2478
    %v3711 = vpack.c.b16 %v2483, %v2479
    %v3712 = vpack.c.b16 %v2488, %v2484
    %v3713 = vpack.c.b16 %v2489, %v2485
    %v3714 = vpack.c.b16 %v2490, %v2486
    %v3715 = vpack.c.b16 %v2491, %v2487
    %v3716 = vpack.c.b16 %v2496, %v2492
    %v3717 = vpack.c.b16 %v2497, %v2493
    %v3718 = vpack.c.b16 %v2498, %v2494
    %v3719 = vpack.c.b16 %v2499, %v2495
    %v3720 = vpack.c.b16 %v2504, %v2500
    %v3721 = vpack.c.b16 %v2505, %v2501
    %v3722 = vpack.c.b16 %v2506, %v2502
    %v3723 = vpack.c.b16 %v2507, %v2503
    %v3724 = vpack.c.b16 %v2512, %v2508
    %v3725 = vpack.c.b16 %v2513, %v2509
    %v3726 = vpack.c.b16 %v2514, %v2510
    %v3727 = vpack.c.b16 %v2515, %v2511
    %v3728 = vpack.c.b16 %v2520, %v2516
    %v3729 = vpack.c.b16 %v2521, %v2517
    %v3730 = vpack.c.b16 %v2522, %v2518
    %v3731 = vpack.c.b16 %v2523, %v2519
    %v3732 = vpack.c.b16 %v2528, %v2524
    %v3733 = vpack.c.b16 %v2529, %v2525
    %v3734 = vpack.c.b16 %v2530, %v2526
    %v3735 = vpack.c.b16 %v2531, %v2527
    %v3736 = vpack.c.b16 %v2536, %v2532
    %v3737 = vpack.c.b16 %v2537, %v2533
    %v3738 = vpack.c.b16 %v2538, %v2534
    %v3739 = vpack.c.b16 %v2539, %v2535
    %v3740 = vpack.c.b16 %v2544, %v2540
    %v3741 = vpack.c.b16 %v2545, %v2541
    %v3742 = vpack.c.b16 %v2546, %v2542
    %v3743 = vpack.c.b16 %v2547, %v2543
    %v3744 = vpack.c.b16 %v2552, %v2548
    %v3745 = vpack.c.b16 %v2553, %v2549
    %v3746 = vpack.c.b16 %v2554, %v2550
    %v3747 = vpack.c.b16 %v2555, %v2551
    %v3748 = vpack.c.b16 %v2560, %v2556
    %v3749 = vpack.c.b16 %v2561, %v2557
    %v3750 = vpack.c.b16 %v2562, %v2558
    %v3751 = vpack.c.b16 %v2563, %v2559
    %v3752 = vpack.c.b16 %v2568, %v2564
    %v3753 = vpack.c.b16 %v2569, %v2565
    %v3754 = vpack.c.b16 %v2570, %v2566
    %v3755 = vpack.c.b16 %v2571, %v2567
    %v3756 = vpack.c.b16 %v2576, %v2572
    %v3757 = vpack.c.b16 %v2577, %v2573
    %v3758 = vpack.c.b16 %v2578, %v2574
    %v3759 = vpack.c.b16 %v2579, %v2575
    %v3760 = vpack.c.b16 %v2584, %v2580
    %v3761 = vpack.c.b16 %v2585, %v2581
    %v3762 = vpack.c.b16 %v2586, %v2582
    %v3763 = vpack.c.b16 %v2587, %v2583
    %v3764 = vpack.c.b16 %v2592, %v2588
    %v3765 = vpack.c.b16 %v2593, %v2589
    %v3766 = vpack.c.b16 %v2594, %v2590
    %v3767 = vpack.c.b16 %v2595, %v2591
    %v3768 = vpack.c.b16 %v2600, %v2596
    %v3769 = vpack.c.b16 %v2601, %v2597
    %v3770 = vpack.c.b16 %v2602, %v2598
    %v3771 = vpack.c.b16 %v2603, %v2599
    %v3772 = vpack.c.b16 %v2608, %v2604
    %v3773 = vpack.c.b16 %v2609, %v2605
    %v3774 = vpack.c.b16 %v2610, %v2606
    %v3775 = vpack.c.b16 %v2611, %v2607
    %v3776 = vpack.c.b16 %v2616, %v2612
    %v3777 = vpack.c.b16 %v2617, %v2613
    %v3778 = vpack.c.b16 %v2618, %v2614
    %v3779 = vpack.c.b16 %v2619, %v2615
    %v3780 = vpack.c.b16 %v2624, %v2620
    %v3781 = vpack.c.b16 %v2625, %v2621
    %v3782 = vpack.c.b16 %v2626, %v2622
    %v3783 = vpack.c.b16 %v2627, %v2623
    %v3784 = vpack.c.b16 %v2632, %v2628
    %v3785 = vpack.c.b16 %v2633, %v2629
    %v3786 = vpack.c.b16 %v2634, %v2630
    %v3787 = vpack.c.b16 %v2635, %v2631
    %v3788 = vpack.c.b16 %v2640, %v2636
    %v3789 = vpack.c.b16 %v2641, %v2637
    %v3790 = vpack.c.b16 %v2642, %v2638
    %v3791 = vpack.c.b16 %v2643, %v2639
    %v3792 = vpack.c.b16 %v2648, %v2644
    %v3793 = vpack.c.b16 %v2649, %v2645
    %v3794 = vpack.c.b16 %v2650, %v2646
    %v3795 = vpack.c.b16 %v2651, %v2647
    %v3796 = vpack.c.b16 %v2656, %v2652
    %v3797 = vpack.c.b16 %v2657, %v2653
    %v3798 = vpack.c.b16 %v2658, %v2654
    %v3799 = vpack.c.b16 %v2659, %v2655
    %v3800 = vpack.c.b16 %v2664, %v2660
    %v3801 = vpack.c.b16 %v2665, %v2661
    %v3802 = vpack.c.b16 %v2666, %v2662
    %v3803 = vpack.c.b16 %v2667, %v2663
    %v3804 = vpack.c.b16 %v2672, %v2668
    %v3805 = vpack.c.b16 %v2673, %v2669
    %v3806 = vpack.c.b16 %v2674, %v2670
    %v3807 = vpack.c.b16 %v2675, %v2671
    %v3808 = vpack.c.b16 %v2680, %v2676
    %v3809 = vpack.c.b16 %v2681, %v2677
    %v3810 = vpack.c.b16 %v2682, %v2678
    %v3811 = vpack.c.b16 %v2683, %v2679
    %v3812 = vpack.c.b16 %v2688, %v2684
    %v3813 = vpack.c.b16 %v2689, %v2685
    %v3814 = vpack.c.b16 %v2690, %v2686
    %v3815 = vpack.c.b16 %v2691, %v2687
    %v3816 = vpack.c.b16 %v2696, %v2692
    %v3817 = vpack.c.b16 %v2697, %v2693
    %v3818 = vpack.c.b16 %v2698, %v2694
    %v3819 = vpack.c.b16 %v2699, %v2695
    %v3820 = vpack.c.b16 %v2704, %v2700
    %v3821 = vpack.c.b16 %v2705, %v2701
    %v3822 = vpack.c.b16 %v2706, %v2702
    %v3823 = vpack.c.b16 %v2707, %v2703
    %v3824 = vpack.c.b16 %v2712, %v2708
    %v3825 = vpack.c.b16 %v2713, %v2709
    %v3826 = vpack.c.b16 %v2714, %v2710
    %v3827 = vpack.c.b16 %v2715, %v2711
    %v3828 = vpack.c.b16 %v2720, %v2716
    %v3829 = vpack.c.b16 %v2721, %v2717
    %v3830 = vpack.c.b16 %v2722, %v2718
    %v3831 = vpack.c.b16 %v2723, %v2719
    %v3832 = vpack.c.b16 %v2728, %v2724
    %v3833 = vpack.c.b16 %v2729, %v2725
    %v3834 = vpack.c.b16 %v2730, %v2726
    %v3835 = vpack.c.b16 %v2731, %v2727
    %v3836 = vpack.c.b16 %v2736, %v2732
    %v3837 = vpack.c.b16 %v2737, %v2733
    %v3838 = vpack.c.b16 %v2738, %v2734
    %v3839 = vpack.c.b16 %v2739, %v2735
    %v3840 = vpack.c.b16 %v2744, %v2740
    %v3841 = vpack.c.b16 %v2745, %v2741
    %v3842 = vpack.c.b16 %v2746, %v2742
    %v3843 = vpack.c.b16 %v2747, %v2743
    %v3844 = vpack.c.b16 %v2752, %v2748
    %v3845 = vpack.c.b16 %v2753, %v2749
    %v3846 = vpack.c.b16 %v2754, %v2750
    %v3847 = vpack.c.b16 %v2755, %v2751
    %v3848 = vpack.c.b16 %v2760, %v2756
    %v3849 = vpack.c.b16 %v2761, %v2757
    %v3850 = vpack.c.b16 %v2762, %v2758
    %v3851 = vpack.c.b16 %v2763, %v2759
    %v3852 = vpack.c.b16 %v2768, %v2764
    %v3853 = vpack.c.b16 %v2769, %v2765
    %v3854 = vpack.c.b16 %v2770, %v2766
    %v3855 = vpack.c.b16 %v2771, %v2767
    %v3856 = vpack.c.b16 %v2776, %v2772
    %v3857 = vpack.c.b16 %v2777, %v2773
    %v3858 = vpack.c.b16 %v2778, %v2774
    %v3859 = vpack.c.b16 %v2779, %v2775
    %v3860 = vpack.c.b16 %v2784, %v2780
    %v3861 = vpack.c.b16 %v2785, %v2781
    %v3862 = vpack.c.b16 %v2786, %v2782
    %v3863 = vpack.c.b16 %v2787, %v2783
    %v3864 = vpack.c.b16 %v2792, %v2788
    %v3865 = vpack.c.b16 %v2793, %v2789
    %v3866 = vpack.c.b16 %v2794, %v2790
    %v3867 = vpack.c.b16 %v2795, %v2791
    %v3868 = vpack.c.b16 %v2800, %v2796
    %v3869 = vpack.c.b16 %v2801, %v2797
    %v3870 = vpack.c.b16 %v2802, %v2798
    %v3871 = vpack.c.b16 %v2803, %v2799
    %v3872 = vpack.c.b16 %v2808, %v2804
    %v3873 = vpack.c.b16 %v2809, %v2805
    %v3874 = vpack.c.b16 %v2810, %v2806
    %v3875 = vpack.c.b16 %v2811, %v2807
    %v3876 = vpack.c.b16 %v2816, %v2812
    %v3877 = vpack.c.b16 %v2817, %v2813
    %v3878 = vpack.c.b16 %v2818, %v2814
    %v3879 = vpack.c.b16 %v2819, %v2815
    %v3880 = vpack.c.b16 %v2824, %v2820
    %v3881 = vpack.c.b16 %v2825, %v2821
    %v3882 = vpack.c.b16 %v2826, %v2822
    %v3883 = vpack.c.b16 %v2827, %v2823
    %v3884 = vpack.c.b16 %v2832, %v2828
    %v3885 = vpack.c.b16 %v2833, %v2829
    %v3886 = vpack.c.b16 %v2834, %v2830
    %v3887 = vpack.c.b16 %v2835, %v2831
    %v3888 = vpack.c.b16 %v2840, %v2836
    %v3889 = vpack.c.b16 %v2841, %v2837
    %v3890 = vpack.c.b16 %v2842, %v2838
    %v3891 = vpack.c.b16 %v2843, %v2839
    %v3892 = vpack.c.b16 %v2848, %v2844
    %v3893 = vpack.c.b16 %v2849, %v2845
    %v3894 = vpack.c.b16 %v2850, %v2846
    %v3895 = vpack.c.b16 %v2851, %v2847
    %v3896 = vpack.c.b16 %v2856, %v2852
    %v3897 = vpack.c.b16 %v2857, %v2853
    %v3898 = vpack.c.b16 %v2858, %v2854
    %v3899 = vpack.c.b16 %v2859, %v2855
    %v3900 = vpack.c.b16 %v2864, %v2860
    %v3901 = vpack.c.b16 %v2865, %v2861
    %v3902 = vpack.c.b16 %v2866, %v2862
    %v3903 = vpack.c.b16 %v2867, %v2863
    %v3904 = vpack.c.b16 %v2872, %v2868
    %v3905 = vpack.c.b16 %v2873, %v2869
    %v3906 = vpack.c.b16 %v2874, %v2870
    %v3907 = vpack.c.b16 %v2875, %v2871
    %v3908 = vpack.c.b16 %v2880, %v2876
    %v3909 = vpack.c.b16 %v2881, %v2877
    %v3910 = vpack.c.b16 %v2882, %v2878
    %v3911 = vpack.c.b16 %v2883, %v2879
    %v3912 = vpack.c.b16 %v2888, %v2884
    %v3913 = vpack.c.b16 %v2889, %v2885
    %v3914 = vpack.c.b16 %v2890, %v2886
    %v3915 = vpack.c.b16 %v2891, %v2887
    %v3916 = vpack.c.b16 %v2896, %v2892
    %v3917 = vpack.c.b16 %v2897, %v2893
    %v3918 = vpack.c.b16 %v2898, %v2894
    %v3919 = vpack.c.b16 %v2899, %v2895
    %v3920 = vpack.c.b16 %v2904, %v2900
    %v3921 = vpack.c.b16 %v2905, %v2901
    %v3922 = vpack.c.b16 %v2906, %v2902
    %v3923 = vpack.c.b16 %v2907, %v2903
    %v3924 = vpack.c.b16 %v2912, %v2908
    %v3925 = vpack.c.b16 %v2913, %v2909
    %v3926 = vpack.c.b16 %v2914, %v2910
    %v3927 = vpack.c.b16 %v2915, %v2911
    %v3928 = vpack.c.b16 %v2920, %v2916
    %v3929 = vpack.c.b16 %v2921, %v2917
    %v3930 = vpack.c.b16 %v2922, %v2918
    %v3931 = vpack.c.b16 %v2923, %v2919
    %v3932 = vpack.c.b16 %v2928, %v2924
    %v3933 = vpack.c.b16 %v2929, %v2925
    %v3934 = vpack.c.b16 %v2930, %v2926
    %v3935 = vpack.c.b16 %v2931, %v2927
    %v3936 = vpack.c.b16 %v2936, %v2932
    %v3937 = vpack.c.b16 %v2937, %v2933
    %v3938 = vpack.c.b16 %v2938, %v2934
    %v3939 = vpack.c.b16 %v2939, %v2935
    %v3940 = vpack.c.b16 %v2944, %v2940
    %v3941 = vpack.c.b16 %v2945, %v2941
    %v3942 = vpack.c.b16 %v2946, %v2942
    %v3943 = vpack.c.b16 %v2947, %v2943
    %v3944 = vpack.c.b16 %v2952, %v2948
    %v3945 = vpack.c.b16 %v2953, %v2949
    %v3946 = vpack.c.b16 %v2954, %v2950
    %v3947 = vpack.c.b16 %v2955, %v2951
    %v3948 = vpack.c.b16 %v2960, %v2956
    %v3949 = vpack.c.b16 %v2961, %v2957
    %v3950 = vpack.c.b16 %v2962, %v2958
    %v3951 = vpack.c.b16 %v2963, %v2959
    %v3952 = vpack.c.b16 %v2968, %v2964
    %v3953 = vpack.c.b16 %v2969, %v2965
    %v3954 = vpack.c.b16 %v2970, %v2966
    %v3955 = vpack.c.b16 %v2971, %v2967
    %v3956 = vpack.c.b16 %v2976, %v2972
    %v3957 = vpack.c.b16 %v2977, %v2973
    %v3958 = vpack.c.b16 %v2978, %v2974
    %v3959 = vpack.c.b16 %v2979, %v2975
    %v3960 = vpack.c.b16 %v2984, %v2980
    %v3961 = vpack.c.b16 %v2985, %v2981
    %v3962 = vpack.c.b16 %v2986, %v2982
    %v3963 = vpack.c.b16 %v2987, %v2983
    %v3964 = vpack.c.b16 %v2992, %v2988
    %v3965 = vpack.c.b16 %v2993, %v2989
    %v3966 = vpack.c.b16 %v2994, %v2990
    %v3967 = vpack.c.b16 %v2995, %v2991
    %v3968 = vpack.c.b16 %v3000, %v2996
    %v3969 = vpack.c.b16 %v3001, %v2997
    %v3970 = vpack.c.b16 %v3002, %v2998
    %v3971 = vpack.c.b16 %v3003, %v2999
    %v3972 = vpack.c.b16 %v3008, %v3004
    %v3973 = vpack.c.b16 %v3009, %v3005
    %v3974 = vpack.c.b16 %v3010, %v3006
    %v3975 = vpack.c.b16 %v3011, %v3007
    %v3976 = vpack.c.b16 %v3016, %v3012
    %v3977 = vpack.c.b16 %v3017, %v3013
    %v3978 = vpack.c.b16 %v3018, %v3014
    %v3979 = vpack.c.b16 %v3019, %v3015
    %v3980 = vpack.c.b16 %v3024, %v3020
    %v3981 = vpack.c.b16 %v3025, %v3021
    %v3982 = vpack.c.b16 %v3026, %v3022
    %v3983 = vpack.c.b16 %v3027, %v3023
    %v3984 = vpack.c.b16 %v3032, %v3028
    %v3985 = vpack.c.b16 %v3033, %v3029
    %v3986 = vpack.c.b16 %v3034, %v3030
    %v3987 = vpack.c.b16 %v3035, %v3031
    %v3988 = vpack.c.b16 %v3040, %v3036
    %v3989 = vpack.c.b16 %v3041, %v3037
    %v3990 = vpack.c.b16 %v3042, %v3038
    %v3991 = vpack.c.b16 %v3043, %v3039
    %v3992 = vpack.c.b16 %v3048, %v3044
    %v3993 = vpack.c.b16 %v3049, %v3045
    %v3994 = vpack.c.b16 %v3050, %v3046
    %v3995 = vpack.c.b16 %v3051, %v3047
    %v3996 = vpack.c.b16 %v3056, %v3052
    %v3997 = vpack.c.b16 %v3057, %v3053
    %v3998 = vpack.c.b16 %v3058, %v3054
    %v3999 = vpack.c.b16 %v3059, %v3055
    %v4000 = vpack.c.b16 %v3064, %v3060
    %v4001 = vpack.c.b16 %v3065, %v3061
    %v4002 = vpack.c.b16 %v3066, %v3062
    %v4003 = vpack.c.b16 %v3067, %v3063
    %v4004 = vpack.c.b16 %v3072, %v3068
    %v4005 = vpack.c.b16 %v3073, %v3069
    %v4006 = vpack.c.b16 %v3074, %v3070
    %v4007 = vpack.c.b16 %v3075, %v3071
    %v4008 = vpack.c.b16 %v3080, %v3076
    %v4009 = vpack.c.b16 %v3081, %v3077
    %v4010 = vpack.c.b16 %v3082, %v3078
    %v4011 = vpack.c.b16 %v3083, %v3079
    %v4012 = vpack.c.b16 %v3088, %v3084
    %v4013 = vpack.c.b16 %v3089, %v3085
    %v4014 = vpack.c.b16 %v3090, %v3086
    %v4015 = vpack.c.b16 %v3091, %v3087
    %v4016 = vpack.c.b16 %v3096, %v3092
    %v4017 = vpack.c.b16 %v3097, %v3093
    %v4018 = vpack.c.b16 %v3098, %v3094
    %v4019 = vpack.c.b16 %v3099, %v3095
    %v4020 = vpack.c.b16 %v3104, %v3100
    %v4021 = vpack.c.b16 %v3105, %v3101
    %v4022 = vpack.c.b16 %v3106, %v3102
    %v4023 = vpack.c.b16 %v3107, %v3103
    %v4024 = vpack.c.b16 %v3112, %v3108
    %v4025 = vpack.c.b16 %v3113, %v3109
    %v4026 = vpack.c.b16 %v3114, %v3110
    %v4027 = vpack.c.b16 %v3115, %v3111
    %v4028 = vpack.c.b16 %v3120, %v3116
    %v4029 = vpack.c.b16 %v3121, %v3117
    %v4030 = vpack.c.b16 %v3122, %v3118
    %v4031 = vpack.c.b16 %v3123, %v3119
    %v4032 = vpack.c.b16 %v3128, %v3124
    %v4033 = vpack.c.b16 %v3129, %v3125
    %v4034 = vpack.c.b16 %v3130, %v3126
    %v4035 = vpack.c.b16 %v3131, %v3127
    %v4036 = vpack.c.b16 %v3136, %v3132
    %v4037 = vpack.c.b16 %v3137, %v3133
    %v4038 = vpack.c.b16 %v3138, %v3134
    %v4039 = vpack.c.b16 %v3139, %v3135
    %v4040 = vpack.c.b16 %v3144, %v3140
    %v4041 = vpack.c.b16 %v3145, %v3141
    %v4042 = vpack.c.b16 %v3146, %v3142
    %v4043 = vpack.c.b16 %v3147, %v3143
    %v4044 = vpack.c.b16 %v3152, %v3148
    %v4045 = vpack.c.b16 %v3153, %v3149
    %v4046 = vpack.c.b16 %v3154, %v3150
    %v4047 = vpack.c.b16 %v3155, %v3151
    %v4048 = vpack.c.b16 %v3160, %v3156
    %v4049 = vpack.c.b16 %v3161, %v3157
    %v4050 = vpack.c.b16 %v3162, %v3158
    %v4051 = vpack.c.b16 %v3163, %v3159
    %v4052 = vpack.c.b16 %v3168, %v3164
    %v4053 = vpack.c.b16 %v3169, %v3165
    %v4054 = vpack.c.b16 %v3170, %v3166
    %v4055 = vpack.c.b16 %v3171, %v3167
    %v4056 = vpack.c.b16 %v3176, %v3172
    %v4057 = vpack.c.b16 %v3177, %v3173
    %v4058 = vpack.c.b16 %v3178, %v3174
    %v4059 = vpack.c.b16 %v3179, %v3175
    %v4060 = vpack.c.b16 %v3184, %v3180
    %v4061 = vpack.c.b16 %v3185, %v3181
    %v4062 = vpack.c.b16 %v3186, %v3182
    %v4063 = vpack.c.b16 %v3187, %v3183
    %v4064 = vpack.c.b16 %v3192, %v3188
    %v4065 = vpack.c.b16 %v3193, %v3189
    %v4066 = vpack.c.b16 %v3194, %v3190
    %v4067 = vpack.c.b16 %v3195, %v3191
    %v4068 = vpack.c.b16 %v3200, %v3196
    %v4069 = vpack.c.b16 %v3201, %v3197
    %v4070 = vpack.c.b16 %v3202, %v3198
    %v4071 = vpack.c.b16 %v3203, %v3199
    %v4072 = vpack.c.b16 %v3208, %v3204
    %v4073 = vpack.c.b16 %v3209, %v3205
    %v4074 = vpack.c.b16 %v3210, %v3206
    %v4075 = vpack.c.b16 %v3211, %v3207
    %v4076 = vpack.c.b16 %v3216, %v3212
    %v4077 = vpack.c.b16 %v3217, %v3213
    %v4078 = vpack.c.b16 %v3218, %v3214
    %v4079 = vpack.c.b16 %v3219, %v3215
    %v4080 = vpack.c.b16 %v3224, %v3220
    %v4081 = vpack.c.b16 %v3225, %v3221
    %v4082 = vpack.c.b16 %v3226, %v3222
    %v4083 = vpack.c.b16 %v3227, %v3223
    %v4084 = vpack.c.b16 %v3232, %v3228
    %v4085 = vpack.c.b16 %v3233, %v3229
    %v4086 = vpack.c.b16 %v3234, %v3230
    %v4087 = vpack.c.b16 %v3235, %v3231
    %v4088 = vpack.c.b16 %v3240, %v3236
    %v4089 = vpack.c.b16 %v3241, %v3237
    %v4090 = vpack.c.b16 %v3242, %v3238
    %v4091 = vpack.c.b16 %v3243, %v3239
    %v4092 = vpack.c.b16 %v3248, %v3244
    %v4093 = vpack.c.b16 %v3249, %v3245
    %v4094 = vpack.c.b16 %v3250, %v3246
    %v4095 = vpack.c.b16 %v3251, %v3247
    %v4096 = vpack.c.b16 %v3256, %v3252
    %v4097 = vpack.c.b16 %v3257, %v3253
    %v4098 = vpack.c.b16 %v3258, %v3254
    %v4099 = vpack.c.b16 %v3259, %v3255
    %v4100 = vpack.c.b16 %v3264, %v3260
    %v4101 = vpack.c.b16 %v3265, %v3261
    %v4102 = vpack.c.b16 %v3266, %v3262
    %v4103 = vpack.c.b16 %v3267, %v3263
    %v4104 = vpack.c.b16 %v3272, %v3268
    %v4105 = vpack.c.b16 %v3273, %v3269
    %v4106 = vpack.c.b16 %v3274, %v3270
    %v4107 = vpack.c.b16 %v3275, %v3271
    %v4108 = vpack.c.b16 %v3280, %v3276
    %v4109 = vpack.c.b16 %v3281, %v3277
    %v4110 = vpack.c.b16 %v3282, %v3278
    %v4111 = vpack.c.b16 %v3283, %v3279
    %v4112 = vpack.c.b16 %v3288, %v3284
    %v4113 = vpack.c.b16 %v3289, %v3285
    %v4114 = vpack.c.b16 %v3290, %v3286
    %v4115 = vpack.c.b16 %v3291, %v3287
    %v4116 = vpack.c.b16 %v3296, %v3292
    %v4117 = vpack.c.b16 %v3297, %v3293
    %v4118 = vpack.c.b16 %v3298, %v3294
    %v4119 = vpack.c.b16 %v3299, %v3295
    %v4120 = vpack.c.b16 %v3304, %v3300
    %v4121 = vpack.c.b16 %v3305, %v3301
    %v4122 = vpack.c.b16 %v3306, %v3302
    %v4123 = vpack.c.b16 %v3307, %v3303
    %v4124 = vpack.c.b16 %v3312, %v3308
    %v4125 = vpack.c.b16 %v3313, %v3309
    %v4126 = vpack.c.b16 %v3314, %v3310
    %v4127 = vpack.c.b16 %v3315, %v3311
    %v4128 = vpack.c.b16 %v3320, %v3316
    %v4129 = vpack.c.b16 %v3321, %v3317
    %v4130 = vpack.c.b16 %v3322, %v3318
    %v4131 = vpack.c.b16 %v3323, %v3319
    %v4132 = vpack.c.b16 %v3328, %v3324
    %v4133 = vpack.c.b16 %v3329, %v3325
    %v4134 = vpack.c.b16 %v3330, %v3326
    %v4135 = vpack.c.b16 %v3331, %v3327
    %v4136 = vpack.c.b16 %v3336, %v3332
    %v4137 = vpack.c.b16 %v3337, %v3333
    %v4138 = vpack.c.b16 %v3338, %v3334
    %v4139 = vpack.c.b16 %v3339, %v3335
    %v4140 = vpack.c.b16 %v3344, %v3340
    %v4141 = vpack.c.b16 %v3345, %v3341
    %v4142 = vpack.c.b16 %v3346, %v3342
    %v4143 = vpack.c.b16 %v3347, %v3343
    %v4144 = vpack.c.b16 %v3352, %v3348
    %v4145 = vpack.c.b16 %v3353, %v3349
    %v4146 = vpack.c.b16 %v3354, %v3350
    %v4147 = vpack.c.b16 %v3355, %v3351
    %v4148 = vpack.c.b16 %v3360, %v3356
    %v4149 = vpack.c.b16 %v3361, %v3357
    %v4150 = vpack.c.b16 %v3362, %v3358
    %v4151 = vpack.c.b16 %v3363, %v3359
    %v4152 = vpack.c.b16 %v3368, %v3364
    %v4153 = vpack.c.b16 %v3369, %v3365
    %v4154 = vpack.c.b16 %v3370, %v3366
    %v4155 = vpack.c.b16 %v3371, %v3367
    %v4156 = vpack.c.b16 %v3376, %v3372
    %v4157 = vpack.c.b16 %v3377, %v3373
    %v4158 = vpack.c.b16 %v3378, %v3374
    %v4159 = vpack.c.b16 %v3379, %v3375
    %v4160 = vpack.c.b16 %v3384, %v3380
    %v4161 = vpack.c.b16 %v3385, %v3381
    %v4162 = vpack.c.b16 %v3386, %v3382
    %v4163 = vpack.c.b16 %v3387, %v3383
    %v4164 = vpack.c.b16 %v3392, %v3388
    %v4165 = vpack.c.b16 %v3393, %v3389
    %v4166 = vpack.c.b16 %v3394, %v3390
    %v4167 = vpack.c.b16 %v3395, %v3391
    %v4168 = vpack.c.b16 %v3400, %v3396
    %v4169 = vpack.c.b16 %v3401, %v3397
    %v4170 = vpack.c.b16 %v3402, %v3398
    %v4171 = vpack.c.b16 %v3403, %v3399
    %4940 = vmatprep.subr.bf16.mxu0 %v3433
    %4941 = vmatpush1.bf16.msra.mxu0 %v3432
    %4942 = vmatprep.subr.bf16.mxu0 %v3429
    %4943 = vmatpush1.bf16.msra.mxu0 %v3428
    %4944 = vmatprep.subr.bf16.mxu0 %v3425
    %4945 = vmatpush1.bf16.msra.mxu0 %v3424
    %4946 = vmatprep.subr.bf16.mxu0 %v3421
    %4947 = vmatpush1.bf16.msra.mxu0 %v3420
    %4948 = vmatprep.subr.bf16.mxu0 %v3417
    %4949 = vmatpush1.bf16.msra.mxu0 %v3416
    %4950 = vmatprep.subr.bf16.mxu0 %v3413
    %4951 = vmatpush1.bf16.msra.mxu0 %v3412
    %4952 = vmatprep.subr.bf16.mxu0 %v3409
    %4953 = vmatpush1.bf16.msra.mxu0 %v3408
    %4954 = vmatprep.subr.bf16.mxu0 %v3405
    %4955 = vmatpush1.bf16.msra.mxu0 %v3404
    %4956 = vmatprep.subr.bf16.mxu0 %v3465
    %4957 = vmatpush2.bf16.msra.mxu0 %v3464
    %4958 = vmatprep.subr.bf16.mxu0 %v3461
    %4959 = vmatpush2.bf16.msra.mxu0 %v3460
    %4960 = vmatprep.subr.bf16.mxu0 %v3457
    %4961 = vmatpush2.bf16.msra.mxu0 %v3456
    %4962 = vmatprep.subr.bf16.mxu0 %v3453
    %4963 = vmatpush2.bf16.msra.mxu0 %v3452
    %4964 = vmatprep.subr.bf16.mxu0 %v3449
    %4965 = vmatpush2.bf16.msra.mxu0 %v3448
    %4966 = vmatprep.subr.bf16.mxu0 %v3445
    %4967 = vmatpush2.bf16.msra.mxu0 %v3444
    %4968 = vmatprep.subr.bf16.mxu0 %v3441
    %4969 = vmatpush2.bf16.msra.mxu0 %v3440
    %4970 = vmatprep.subr.bf16.mxu0 %v3437
    %4971 = vmatpush2.bf16.msra.mxu0 %v3436
    %4972 = vmatprep.mubr.bf16.mxu0 %v1053
    %4973 = vmatmul.mubr.bf16.gmra.mxu0 %v1052
    %v4974 = vpop.f32.mrf.mxu0
    %v4975 = vadd.f32 %v963, %v4974
    %v4976 = vpop.f32.mrf.mxu0
    %v4977 = vadd.f32 %v967, %v4976
    %v4978 = vpop.f32.mrf.mxu0
    %v4979 = vadd.f32 %v963, %v4978
    %v4980 = vpop.f32.mrf.mxu0
    %v4981 = vadd.f32 %v967, %v4980
    %4982 = vdwg.mxu0
    %4983 = vmatprep.subr.bf16.mxu0 %v3497
    %4984 = vmatpush1.bf16.msra.mxu0 %v3496
    %4985 = vmatprep.subr.bf16.mxu0 %v3493
    %4986 = vmatpush1.bf16.msra.mxu0 %v3492
    %4987 = vmatprep.subr.bf16.mxu0 %v3489
    %4988 = vmatpush1.bf16.msra.mxu0 %v3488
    %4989 = vmatprep.subr.bf16.mxu0 %v3485
    %4990 = vmatpush1.bf16.msra.mxu0 %v3484
    %4991 = vmatprep.subr.bf16.mxu0 %v3481
    %4992 = vmatpush1.bf16.msra.mxu0 %v3480
    %4993 = vmatprep.subr.bf16.mxu0 %v3477
    %4994 = vmatpush1.bf16.msra.mxu0 %v3476
    %4995 = vmatprep.subr.bf16.mxu0 %v3473
    %4996 = vmatpush1.bf16.msra.mxu0 %v3472
    %4997 = vmatprep.subr.bf16.mxu0 %v3469
    %4998 = vmatpush1.bf16.msra.mxu0 %v3468
    %4999 = vmatprep.subr.bf16.mxu0 %v3529
    %5000 = vmatpush2.bf16.msra.mxu0 %v3528
    %5001 = vmatprep.subr.bf16.mxu0 %v3525
    %5002 = vmatpush2.bf16.msra.mxu0 %v3524
    %5003 = vmatprep.subr.bf16.mxu0 %v3521
    %5004 = vmatpush2.bf16.msra.mxu0 %v3520
    %5005 = vmatprep.subr.bf16.mxu0 %v3517
    %5006 = vmatpush2.bf16.msra.mxu0 %v3516
    %5007 = vmatprep.subr.bf16.mxu0 %v3513
    %5008 = vmatpush2.bf16.msra.mxu0 %v3512
    %5009 = vmatprep.subr.bf16.mxu0 %v3509
    %5010 = vmatpush2.bf16.msra.mxu0 %v3508
    %5011 = vmatprep.subr.bf16.mxu0 %v3505
    %5012 = vmatpush2.bf16.msra.mxu0 %v3504
    %5013 = vmatprep.subr.bf16.mxu0 %v3501
    %5014 = vmatpush2.bf16.msra.mxu0 %v3500
    %5015 = vmatprep.mubr.bf16.mxu0 %v1055
    %5016 = vmatmul.mubr.bf16.gmra.mxu0 %v1054
    %v5017 = vpop.f32.mrf.mxu0
    %v5018 = vadd.f32 %v4975, %v5017
    %v5019 = vpop.f32.mrf.mxu0
    %v5020 = vadd.f32 %v4977, %v5019
    %v5021 = vpop.f32.mrf.mxu0
    %v5022 = vadd.f32 %v4979, %v5021
    %v5023 = vpop.f32.mrf.mxu0
    %v5024 = vadd.f32 %v4981, %v5023
    %5025 = vdwg.mxu0
    %5026 = vmatprep.subr.bf16.mxu0 %v3561
    %5027 = vmatpush1.bf16.msra.mxu0 %v3560
    %5028 = vmatprep.subr.bf16.mxu0 %v3557
    %5029 = vmatpush1.bf16.msra.mxu0 %v3556
    %5030 = vmatprep.subr.bf16.mxu0 %v3553
    %5031 = vmatpush1.bf16.msra.mxu0 %v3552
    %5032 = vmatprep.subr.bf16.mxu0 %v3549
    %5033 = vmatpush1.bf16.msra.mxu0 %v3548
    %5034 = vmatprep.subr.bf16.mxu0 %v3545
    %5035 = vmatpush1.bf16.msra.mxu0 %v3544
    %5036 = vmatprep.subr.bf16.mxu0 %v3541
    %5037 = vmatpush1.bf16.msra.mxu0 %v3540
    %5038 = vmatprep.subr.bf16.mxu0 %v3537
    %5039 = vmatpush1.bf16.msra.mxu0 %v3536
    %5040 = vmatprep.subr.bf16.mxu0 %v3533
    %5041 = vmatpush1.bf16.msra.mxu0 %v3532
    %5042 = vmatprep.subr.bf16.mxu0 %v3593
    %5043 = vmatpush2.bf16.msra.mxu0 %v3592
    %5044 = vmatprep.subr.bf16.mxu0 %v3589
    %5045 = vmatpush2.bf16.msra.mxu0 %v3588
    %5046 = vmatprep.subr.bf16.mxu0 %v3585
    %5047 = vmatpush2.bf16.msra.mxu0 %v3584
    %5048 = vmatprep.subr.bf16.mxu0 %v3581
    %5049 = vmatpush2.bf16.msra.mxu0 %v3580
    %5050 = vmatprep.subr.bf16.mxu0 %v3577
    %5051 = vmatpush2.bf16.msra.mxu0 %v3576
    %5052 = vmatprep.subr.bf16.mxu0 %v3573
    %5053 = vmatpush2.bf16.msra.mxu0 %v3572
    %5054 = vmatprep.subr.bf16.mxu0 %v3569
    %5055 = vmatpush2.bf16.msra.mxu0 %v3568
    %5056 = vmatprep.subr.bf16.mxu0 %v3565
    %5057 = vmatpush2.bf16.msra.mxu0 %v3564
    %5058 = vmatprep.mubr.bf16.mxu0 %v1057
    %5059 = vmatmul.mubr.bf16.gmra.mxu0 %v1056
    %v5060 = vpop.f32.mrf.mxu0
    %v5061 = vadd.f32 %v5018, %v5060
    %v5062 = vpop.f32.mrf.mxu0
    %v5063 = vadd.f32 %v5020, %v5062
    %v5064 = vpop.f32.mrf.mxu0
    %v5065 = vadd.f32 %v5022, %v5064
    %v5066 = vpop.f32.mrf.mxu0
    %v5067 = vadd.f32 %v5024, %v5066
    %5068 = vdwg.mxu0
    %5069 = vmatprep.subr.bf16.mxu0 %v3625
    %5070 = vmatpush1.bf16.msra.mxu0 %v3624
    %5071 = vmatprep.subr.bf16.mxu0 %v3621
    %5072 = vmatpush1.bf16.msra.mxu0 %v3620
    %5073 = vmatprep.subr.bf16.mxu0 %v3617
    %5074 = vmatpush1.bf16.msra.mxu0 %v3616
    %5075 = vmatprep.subr.bf16.mxu0 %v3613
    %5076 = vmatpush1.bf16.msra.mxu0 %v3612
    %5077 = vmatprep.subr.bf16.mxu0 %v3609
    %5078 = vmatpush1.bf16.msra.mxu0 %v3608
    %5079 = vmatprep.subr.bf16.mxu0 %v3605
    %5080 = vmatpush1.bf16.msra.mxu0 %v3604
    %5081 = vmatprep.subr.bf16.mxu0 %v3601
    %5082 = vmatpush1.bf16.msra.mxu0 %v3600
    %5083 = vmatprep.subr.bf16.mxu0 %v3597
    %5084 = vmatpush1.bf16.msra.mxu0 %v3596
    %5085 = vmatprep.subr.bf16.mxu0 %v3657
    %5086 = vmatpush2.bf16.msra.mxu0 %v3656
    %5087 = vmatprep.subr.bf16.mxu0 %v3653
    %5088 = vmatpush2.bf16.msra.mxu0 %v3652
    %5089 = vmatprep.subr.bf16.mxu0 %v3649
    %5090 = vmatpush2.bf16.msra.mxu0 %v3648
    %5091 = vmatprep.subr.bf16.mxu0 %v3645
    %5092 = vmatpush2.bf16.msra.mxu0 %v3644
    %5093 = vmatprep.subr.bf16.mxu0 %v3641
    %5094 = vmatpush2.bf16.msra.mxu0 %v3640
    %5095 = vmatprep.subr.bf16.mxu0 %v3637
    %5096 = vmatpush2.bf16.msra.mxu0 %v3636
    %5097 = vmatprep.subr.bf16.mxu0 %v3633
    %5098 = vmatpush2.bf16.msra.mxu0 %v3632
    %5099 = vmatprep.subr.bf16.mxu0 %v3629
    %5100 = vmatpush2.bf16.msra.mxu0 %v3628
    %5101 = vmatprep.mubr.bf16.mxu0 %v1059
    %5102 = vmatmul.mubr.bf16.gmra.mxu0 %v1058
    %v5103 = vpop.f32.mrf.mxu0
    %v5104 = vadd.f32 %v5061, %v5103
    %v5105 = vpop.f32.mrf.mxu0
    %v5106 = vadd.f32 %v5063, %v5105
    %v5107 = vpop.f32.mrf.mxu0
    %v5108 = vadd.f32 %v5065, %v5107
    %v5109 = vpop.f32.mrf.mxu0
    %v5110 = vadd.f32 %v5067, %v5109
    %5111 = vdwg.mxu0
    %5112 = vmatprep.subr.bf16.mxu0 %v3689
    %5113 = vmatpush1.bf16.msra.mxu0 %v3688
    %5114 = vmatprep.subr.bf16.mxu0 %v3685
    %5115 = vmatpush1.bf16.msra.mxu0 %v3684
    %5116 = vmatprep.subr.bf16.mxu0 %v3681
    %5117 = vmatpush1.bf16.msra.mxu0 %v3680
    %5118 = vmatprep.subr.bf16.mxu0 %v3677
    %5119 = vmatpush1.bf16.msra.mxu0 %v3676
    %5120 = vmatprep.subr.bf16.mxu0 %v3673
    %5121 = vmatpush1.bf16.msra.mxu0 %v3672
    %5122 = vmatprep.subr.bf16.mxu0 %v3669
    %5123 = vmatpush1.bf16.msra.mxu0 %v3668
    %5124 = vmatprep.subr.bf16.mxu0 %v3665
    %5125 = vmatpush1.bf16.msra.mxu0 %v3664
    %5126 = vmatprep.subr.bf16.mxu0 %v3661
    %5127 = vmatpush1.bf16.msra.mxu0 %v3660
    %5128 = vmatprep.subr.bf16.mxu0 %v3721
    %5129 = vmatpush2.bf16.msra.mxu0 %v3720
    %5130 = vmatprep.subr.bf16.mxu0 %v3717
    %5131 = vmatpush2.bf16.msra.mxu0 %v3716
    %5132 = vmatprep.subr.bf16.mxu0 %v3713
    %5133 = vmatpush2.bf16.msra.mxu0 %v3712
    %5134 = vmatprep.subr.bf16.mxu0 %v3709
    %5135 = vmatpush2.bf16.msra.mxu0 %v3708
    %5136 = vmatprep.subr.bf16.mxu0 %v3705
    %5137 = vmatpush2.bf16.msra.mxu0 %v3704
    %5138 = vmatprep.subr.bf16.mxu0 %v3701
    %5139 = vmatpush2.bf16.msra.mxu0 %v3700
    %5140 = vmatprep.subr.bf16.mxu0 %v3697
    %5141 = vmatpush2.bf16.msra.mxu0 %v3696
    %5142 = vmatprep.subr.bf16.mxu0 %v3693
    %5143 = vmatpush2.bf16.msra.mxu0 %v3692
    %5144 = vmatprep.mubr.bf16.mxu0 %v1061
    %5145 = vmatmul.mubr.bf16.gmra.mxu0 %v1060
    %v5146 = vpop.f32.mrf.mxu0
    %v5147 = vadd.f32 %v5104, %v5146
    %v5148 = vpop.f32.mrf.mxu0
    %v5149 = vadd.f32 %v5106, %v5148
    %v5150 = vpop.f32.mrf.mxu0
    %v5151 = vadd.f32 %v5108, %v5150
    %v5152 = vpop.f32.mrf.mxu0
    %v5153 = vadd.f32 %v5110, %v5152
    %5154 = vdwg.mxu0
    %5155 = vmatprep.subr.bf16.mxu0 %v3753
    %5156 = vmatpush1.bf16.msra.mxu0 %v3752
    %5157 = vmatprep.subr.bf16.mxu0 %v3749
    %5158 = vmatpush1.bf16.msra.mxu0 %v3748
    %5159 = vmatprep.subr.bf16.mxu0 %v3745
    %5160 = vmatpush1.bf16.msra.mxu0 %v3744
    %5161 = vmatprep.subr.bf16.mxu0 %v3741
    %5162 = vmatpush1.bf16.msra.mxu0 %v3740
    %5163 = vmatprep.subr.bf16.mxu0 %v3737
    %5164 = vmatpush1.bf16.msra.mxu0 %v3736
    %5165 = vmatprep.subr.bf16.mxu0 %v3733
    %5166 = vmatpush1.bf16.msra.mxu0 %v3732
    %5167 = vmatprep.subr.bf16.mxu0 %v3729
    %5168 = vmatpush1.bf16.msra.mxu0 %v3728
    %5169 = vmatprep.subr.bf16.mxu0 %v3725
    %5170 = vmatpush1.bf16.msra.mxu0 %v3724
    %5171 = vmatprep.subr.bf16.mxu0 %v3785
    %5172 = vmatpush2.bf16.msra.mxu0 %v3784
    %5173 = vmatprep.subr.bf16.mxu0 %v3781
    %5174 = vmatpush2.bf16.msra.mxu0 %v3780
    %5175 = vmatprep.subr.bf16.mxu0 %v3777
    %5176 = vmatpush2.bf16.msra.mxu0 %v3776
    %5177 = vmatprep.subr.bf16.mxu0 %v3773
    %5178 = vmatpush2.bf16.msra.mxu0 %v3772
    %5179 = vmatprep.subr.bf16.mxu0 %v3769
    %5180 = vmatpush2.bf16.msra.mxu0 %v3768
    %5181 = vmatprep.subr.bf16.mxu0 %v3765
    %5182 = vmatpush2.bf16.msra.mxu0 %v3764
    %5183 = vmatprep.subr.bf16.mxu0 %v3761
    %5184 = vmatpush2.bf16.msra.mxu0 %v3760
    %5185 = vmatprep.subr.bf16.mxu0 %v3757
    %5186 = vmatpush2.bf16.msra.mxu0 %v3756
    %5187 = vmatprep.mubr.bf16.mxu0 %v1063
    %5188 = vmatmul.mubr.bf16.gmra.mxu0 %v1062
    %v5189 = vpop.f32.mrf.mxu0
    %v5190 = vadd.f32 %v5147, %v5189
    %v5191 = vpop.f32.mrf.mxu0
    %v5192 = vadd.f32 %v5149, %v5191
    %v5193 = vpop.f32.mrf.mxu0
    %v5194 = vadd.f32 %v5151, %v5193
    %v5195 = vpop.f32.mrf.mxu0
    %v5196 = vadd.f32 %v5153, %v5195
    %5197 = vdwg.mxu0
    %5198 = vmatprep.subr.bf16.mxu0 %v3817
    %5199 = vmatpush1.bf16.msra.mxu0 %v3816
    %5200 = vmatprep.subr.bf16.mxu0 %v3813
    %5201 = vmatpush1.bf16.msra.mxu0 %v3812
    %5202 = vmatprep.subr.bf16.mxu0 %v3809
    %5203 = vmatpush1.bf16.msra.mxu0 %v3808
    %5204 = vmatprep.subr.bf16.mxu0 %v3805
    %5205 = vmatpush1.bf16.msra.mxu0 %v3804
    %5206 = vmatprep.subr.bf16.mxu0 %v3801
    %5207 = vmatpush1.bf16.msra.mxu0 %v3800
    %5208 = vmatprep.subr.bf16.mxu0 %v3797
    %5209 = vmatpush1.bf16.msra.mxu0 %v3796
    %5210 = vmatprep.subr.bf16.mxu0 %v3793
    %5211 = vmatpush1.bf16.msra.mxu0 %v3792
    %5212 = vmatprep.subr.bf16.mxu0 %v3789
    %5213 = vmatpush1.bf16.msra.mxu0 %v3788
    %5214 = vmatprep.subr.bf16.mxu0 %v3849
    %5215 = vmatpush2.bf16.msra.mxu0 %v3848
    %5216 = vmatprep.subr.bf16.mxu0 %v3845
    %5217 = vmatpush2.bf16.msra.mxu0 %v3844
    %5218 = vmatprep.subr.bf16.mxu0 %v3841
    %5219 = vmatpush2.bf16.msra.mxu0 %v3840
    %5220 = vmatprep.subr.bf16.mxu0 %v3837
    %5221 = vmatpush2.bf16.msra.mxu0 %v3836
    %5222 = vmatprep.subr.bf16.mxu0 %v3833
    %5223 = vmatpush2.bf16.msra.mxu0 %v3832
    %5224 = vmatprep.subr.bf16.mxu0 %v3829
    %5225 = vmatpush2.bf16.msra.mxu0 %v3828
    %5226 = vmatprep.subr.bf16.mxu0 %v3825
    %5227 = vmatpush2.bf16.msra.mxu0 %v3824
    %5228 = vmatprep.subr.bf16.mxu0 %v3821
    %5229 = vmatpush2.bf16.msra.mxu0 %v3820
    %5230 = vmatprep.mubr.bf16.mxu0 %v1065
    %5231 = vmatmul.mubr.bf16.gmra.mxu0 %v1064
    %v5232 = vpop.f32.mrf.mxu0
    %v5233 = vadd.f32 %v5190, %v5232
    %v5234 = vpop.f32.mrf.mxu0
    %v5235 = vadd.f32 %v5192, %v5234
    %v5236 = vpop.f32.mrf.mxu0
    %v5237 = vadd.f32 %v5194, %v5236
    %v5238 = vpop.f32.mrf.mxu0
    %v5239 = vadd.f32 %v5196, %v5238
    %5240 = vdwg.mxu0
    %5241 = vmatprep.subr.bf16.mxu0 %v3881
    %5242 = vmatpush1.bf16.msra.mxu0 %v3880
    %5243 = vmatprep.subr.bf16.mxu0 %v3877
    %5244 = vmatpush1.bf16.msra.mxu0 %v3876
    %5245 = vmatprep.subr.bf16.mxu0 %v3873
    %5246 = vmatpush1.bf16.msra.mxu0 %v3872
    %5247 = vmatprep.subr.bf16.mxu0 %v3869
    %5248 = vmatpush1.bf16.msra.mxu0 %v3868
    %5249 = vmatprep.subr.bf16.mxu0 %v3865
    %5250 = vmatpush1.bf16.msra.mxu0 %v3864
    %5251 = vmatprep.subr.bf16.mxu0 %v3861
    %5252 = vmatpush1.bf16.msra.mxu0 %v3860
    %5253 = vmatprep.subr.bf16.mxu0 %v3857
    %5254 = vmatpush1.bf16.msra.mxu0 %v3856
    %5255 = vmatprep.subr.bf16.mxu0 %v3853
    %5256 = vmatpush1.bf16.msra.mxu0 %v3852
    %5257 = vmatprep.subr.bf16.mxu0 %v3913
    %5258 = vmatpush2.bf16.msra.mxu0 %v3912
    %5259 = vmatprep.subr.bf16.mxu0 %v3909
    %5260 = vmatpush2.bf16.msra.mxu0 %v3908
    %5261 = vmatprep.subr.bf16.mxu0 %v3905
    %5262 = vmatpush2.bf16.msra.mxu0 %v3904
    %5263 = vmatprep.subr.bf16.mxu0 %v3901
    %5264 = vmatpush2.bf16.msra.mxu0 %v3900
    %5265 = vmatprep.subr.bf16.mxu0 %v3897
    %5266 = vmatpush2.bf16.msra.mxu0 %v3896
    %5267 = vmatprep.subr.bf16.mxu0 %v3893
    %5268 = vmatpush2.bf16.msra.mxu0 %v3892
    %5269 = vmatprep.subr.bf16.mxu0 %v3889
    %5270 = vmatpush2.bf16.msra.mxu0 %v3888
    %5271 = vmatprep.subr.bf16.mxu0 %v3885
    %5272 = vmatpush2.bf16.msra.mxu0 %v3884
    %5273 = vmatprep.mubr.bf16.mxu0 %v1067
    %5274 = vmatmul.mubr.bf16.gmra.mxu0 %v1066
    %v5275 = vpop.f32.mrf.mxu0
    %v5276 = vadd.f32 %v5233, %v5275
    %v5277 = vpop.f32.mrf.mxu0
    %v5278 = vadd.f32 %v5235, %v5277
    %v5279 = vpop.f32.mrf.mxu0
    %v5280 = vadd.f32 %v5237, %v5279
    %v5281 = vpop.f32.mrf.mxu0
    %v5282 = vadd.f32 %v5239, %v5281
    %5283 = vdwg.mxu0
    %5284 = vmatprep.subr.bf16.mxu0 %v3945
    %5285 = vmatpush1.bf16.msra.mxu0 %v3944
    %5286 = vmatprep.subr.bf16.mxu0 %v3941
    %5287 = vmatpush1.bf16.msra.mxu0 %v3940
    %5288 = vmatprep.subr.bf16.mxu0 %v3937
    %5289 = vmatpush1.bf16.msra.mxu0 %v3936
    %5290 = vmatprep.subr.bf16.mxu0 %v3933
    %5291 = vmatpush1.bf16.msra.mxu0 %v3932
    %5292 = vmatprep.subr.bf16.mxu0 %v3929
    %5293 = vmatpush1.bf16.msra.mxu0 %v3928
    %5294 = vmatprep.subr.bf16.mxu0 %v3925
    %5295 = vmatpush1.bf16.msra.mxu0 %v3924
    %5296 = vmatprep.subr.bf16.mxu0 %v3921
    %5297 = vmatpush1.bf16.msra.mxu0 %v3920
    %5298 = vmatprep.subr.bf16.mxu0 %v3917
    %5299 = vmatpush1.bf16.msra.mxu0 %v3916
    %5300 = vmatprep.subr.bf16.mxu0 %v3977
    %5301 = vmatpush2.bf16.msra.mxu0 %v3976
    %5302 = vmatprep.subr.bf16.mxu0 %v3973
    %5303 = vmatpush2.bf16.msra.mxu0 %v3972
    %5304 = vmatprep.subr.bf16.mxu0 %v3969
    %5305 = vmatpush2.bf16.msra.mxu0 %v3968
    %5306 = vmatprep.subr.bf16.mxu0 %v3965
    %5307 = vmatpush2.bf16.msra.mxu0 %v3964
    %5308 = vmatprep.subr.bf16.mxu0 %v3961
    %5309 = vmatpush2.bf16.msra.mxu0 %v3960
    %5310 = vmatprep.subr.bf16.mxu0 %v3957
    %5311 = vmatpush2.bf16.msra.mxu0 %v3956
    %5312 = vmatprep.subr.bf16.mxu0 %v3953
    %5313 = vmatpush2.bf16.msra.mxu0 %v3952
    %5314 = vmatprep.subr.bf16.mxu0 %v3949
    %5315 = vmatpush2.bf16.msra.mxu0 %v3948
    %5316 = vmatprep.mubr.bf16.mxu0 %v1069
    %5317 = vmatmul.mubr.bf16.gmra.mxu0 %v1068
    %v5318 = vpop.f32.mrf.mxu0
    %v5319 = vadd.f32 %v5276, %v5318
    %v5320 = vpop.f32.mrf.mxu0
    %v5321 = vadd.f32 %v5278, %v5320
    %v5322 = vpop.f32.mrf.mxu0
    %v5323 = vadd.f32 %v5280, %v5322
    %v5324 = vpop.f32.mrf.mxu0
    %v5325 = vadd.f32 %v5282, %v5324
    %5326 = vdwg.mxu0
    %5327 = vmatprep.subr.bf16.mxu0 %v4009
    %5328 = vmatpush1.bf16.msra.mxu0 %v4008
    %5329 = vmatprep.subr.bf16.mxu0 %v4005
    %5330 = vmatpush1.bf16.msra.mxu0 %v4004
    %5331 = vmatprep.subr.bf16.mxu0 %v4001
    %5332 = vmatpush1.bf16.msra.mxu0 %v4000
    %5333 = vmatprep.subr.bf16.mxu0 %v3997
    %5334 = vmatpush1.bf16.msra.mxu0 %v3996
    %5335 = vmatprep.subr.bf16.mxu0 %v3993
    %5336 = vmatpush1.bf16.msra.mxu0 %v3992
    %5337 = vmatprep.subr.bf16.mxu0 %v3989
    %5338 = vmatpush1.bf16.msra.mxu0 %v3988
    %5339 = vmatprep.subr.bf16.mxu0 %v3985
    %5340 = vmatpush1.bf16.msra.mxu0 %v3984
    %5341 = vmatprep.subr.bf16.mxu0 %v3981
    %5342 = vmatpush1.bf16.msra.mxu0 %v3980
    %5343 = vmatprep.subr.bf16.mxu0 %v4041
    %5344 = vmatpush2.bf16.msra.mxu0 %v4040
    %5345 = vmatprep.subr.bf16.mxu0 %v4037
    %5346 = vmatpush2.bf16.msra.mxu0 %v4036
    %5347 = vmatprep.subr.bf16.mxu0 %v4033
    %5348 = vmatpush2.bf16.msra.mxu0 %v4032
    %5349 = vmatprep.subr.bf16.mxu0 %v4029
    %5350 = vmatpush2.bf16.msra.mxu0 %v4028
    %5351 = vmatprep.subr.bf16.mxu0 %v4025
    %5352 = vmatpush2.bf16.msra.mxu0 %v4024
    %5353 = vmatprep.subr.bf16.mxu0 %v4021
    %5354 = vmatpush2.bf16.msra.mxu0 %v4020
    %5355 = vmatprep.subr.bf16.mxu0 %v4017
    %5356 = vmatpush2.bf16.msra.mxu0 %v4016
    %5357 = vmatprep.subr.bf16.mxu0 %v4013
    %5358 = vmatpush2.bf16.msra.mxu0 %v4012
    %5359 = vmatprep.mubr.bf16.mxu0 %v1071
    %5360 = vmatmul.mubr.bf16.gmra.mxu0 %v1070
    %v5361 = vpop.f32.mrf.mxu0
    %v5362 = vadd.f32 %v5319, %v5361
    %v5363 = vpop.f32.mrf.mxu0
    %v5364 = vadd.f32 %v5321, %v5363
    %v5365 = vpop.f32.mrf.mxu0
    %v5366 = vadd.f32 %v5323, %v5365
    %v5367 = vpop.f32.mrf.mxu0
    %v5368 = vadd.f32 %v5325, %v5367
    %5369 = vdwg.mxu0
    %5370 = vmatprep.subr.bf16.mxu0 %v4073
    %5371 = vmatpush1.bf16.msra.mxu0 %v4072
    %5372 = vmatprep.subr.bf16.mxu0 %v4069
    %5373 = vmatpush1.bf16.msra.mxu0 %v4068
    %5374 = vmatprep.subr.bf16.mxu0 %v4065
    %5375 = vmatpush1.bf16.msra.mxu0 %v4064
    %5376 = vmatprep.subr.bf16.mxu0 %v4061
    %5377 = vmatpush1.bf16.msra.mxu0 %v4060
    %5378 = vmatprep.subr.bf16.mxu0 %v4057
    %5379 = vmatpush1.bf16.msra.mxu0 %v4056
    %5380 = vmatprep.subr.bf16.mxu0 %v4053
    %5381 = vmatpush1.bf16.msra.mxu0 %v4052
    %5382 = vmatprep.subr.bf16.mxu0 %v4049
    %5383 = vmatpush1.bf16.msra.mxu0 %v4048
    %5384 = vmatprep.subr.bf16.mxu0 %v4045
    %5385 = vmatpush1.bf16.msra.mxu0 %v4044
    %5386 = vmatprep.subr.bf16.mxu0 %v4105
    %5387 = vmatpush2.bf16.msra.mxu0 %v4104
    %5388 = vmatprep.subr.bf16.mxu0 %v4101
    %5389 = vmatpush2.bf16.msra.mxu0 %v4100
    %5390 = vmatprep.subr.bf16.mxu0 %v4097
    %5391 = vmatpush2.bf16.msra.mxu0 %v4096
    %5392 = vmatprep.subr.bf16.mxu0 %v4093
    %5393 = vmatpush2.bf16.msra.mxu0 %v4092
    %5394 = vmatprep.subr.bf16.mxu0 %v4089
    %5395 = vmatpush2.bf16.msra.mxu0 %v4088
    %5396 = vmatprep.subr.bf16.mxu0 %v4085
    %5397 = vmatpush2.bf16.msra.mxu0 %v4084
    %5398 = vmatprep.subr.bf16.mxu0 %v4081
    %5399 = vmatpush2.bf16.msra.mxu0 %v4080
    %5400 = vmatprep.subr.bf16.mxu0 %v4077
    %5401 = vmatpush2.bf16.msra.mxu0 %v4076
    %5402 = vmatprep.mubr.bf16.mxu0 %v1073
    %5403 = vmatmul.mubr.bf16.gmra.mxu0 %v1072
    %v5404 = vpop.f32.mrf.mxu0
    %v5405 = vadd.f32 %v5362, %v5404
    %v5406 = vpop.f32.mrf.mxu0
    %v5407 = vadd.f32 %v5364, %v5406
    %v5408 = vpop.f32.mrf.mxu0
    %v5409 = vadd.f32 %v5366, %v5408
    %v5410 = vpop.f32.mrf.mxu0
    %v5411 = vadd.f32 %v5368, %v5410
    %5412 = vdwg.mxu0
    %5413 = vmatprep.subr.bf16.mxu0 %v4137
    %5414 = vmatpush1.bf16.msra.mxu0 %v4136
    %5415 = vmatprep.subr.bf16.mxu0 %v4133
    %5416 = vmatpush1.bf16.msra.mxu0 %v4132
    %5417 = vmatprep.subr.bf16.mxu0 %v4129
    %5418 = vmatpush1.bf16.msra.mxu0 %v4128
    %5419 = vmatprep.subr.bf16.mxu0 %v4125
    %5420 = vmatpush1.bf16.msra.mxu0 %v4124
    %5421 = vmatprep.subr.bf16.mxu0 %v4121
    %5422 = vmatpush1.bf16.msra.mxu0 %v4120
    %5423 = vmatprep.subr.bf16.mxu0 %v4117
    %5424 = vmatpush1.bf16.msra.mxu0 %v4116
    %5425 = vmatprep.subr.bf16.mxu0 %v4113
    %5426 = vmatpush1.bf16.msra.mxu0 %v4112
    %5427 = vmatprep.subr.bf16.mxu0 %v4109
    %5428 = vmatpush1.bf16.msra.mxu0 %v4108
    %5429 = vmatprep.subr.bf16.mxu0 %v4169
    %5430 = vmatpush2.bf16.msra.mxu0 %v4168
    %5431 = vmatprep.subr.bf16.mxu0 %v4165
    %5432 = vmatpush2.bf16.msra.mxu0 %v4164
    %5433 = vmatprep.subr.bf16.mxu0 %v4161
    %5434 = vmatpush2.bf16.msra.mxu0 %v4160
    %5435 = vmatprep.subr.bf16.mxu0 %v4157
    %5436 = vmatpush2.bf16.msra.mxu0 %v4156
    %5437 = vmatprep.subr.bf16.mxu0 %v4153
    %5438 = vmatpush2.bf16.msra.mxu0 %v4152
    %5439 = vmatprep.subr.bf16.mxu0 %v4149
    %5440 = vmatpush2.bf16.msra.mxu0 %v4148
    %5441 = vmatprep.subr.bf16.mxu0 %v4145
    %5442 = vmatpush2.bf16.msra.mxu0 %v4144
    %5443 = vmatprep.subr.bf16.mxu0 %v4141
    %5444 = vmatpush2.bf16.msra.mxu0 %v4140
    %5445 = vmatprep.mubr.bf16.mxu0 %v1075
    %5446 = vmatmul.mubr.bf16.gmra.mxu0 %v1074
    %v5447 = vpop.f32.mrf.mxu0
    %v5448 = vadd.f32 %v5405, %v5447
    %v5449 = vpop.f32.mrf.mxu0
    %v5450 = vadd.f32 %v5407, %v5449
    %v5451 = vpop.f32.mrf.mxu0
    %v5452 = vadd.f32 %v5409, %v5451
    %v5453 = vpop.f32.mrf.mxu0
    %v5454 = vadd.f32 %v5411, %v5453
    %5455 = vdwg.mxu0
    %5456 = vmatprep.subr.bf16.mxu0 %v3435
    %5457 = vmatpush1.bf16.msra.mxu0 %v3434
    %5458 = vmatprep.subr.bf16.mxu0 %v3431
    %5459 = vmatpush1.bf16.msra.mxu0 %v3430
    %5460 = vmatprep.subr.bf16.mxu0 %v3427
    %5461 = vmatpush1.bf16.msra.mxu0 %v3426
    %5462 = vmatprep.subr.bf16.mxu0 %v3423
    %5463 = vmatpush1.bf16.msra.mxu0 %v3422
    %5464 = vmatprep.subr.bf16.mxu0 %v3419
    %5465 = vmatpush1.bf16.msra.mxu0 %v3418
    %5466 = vmatprep.subr.bf16.mxu0 %v3415
    %5467 = vmatpush1.bf16.msra.mxu0 %v3414
    %5468 = vmatprep.subr.bf16.mxu0 %v3411
    %5469 = vmatpush1.bf16.msra.mxu0 %v3410
    %5470 = vmatprep.subr.bf16.mxu0 %v3407
    %5471 = vmatpush1.bf16.msra.mxu0 %v3406
    %5472 = vmatprep.subr.bf16.mxu0 %v3467
    %5473 = vmatpush2.bf16.msra.mxu0 %v3466
    %5474 = vmatprep.subr.bf16.mxu0 %v3463
    %5475 = vmatpush2.bf16.msra.mxu0 %v3462
    %5476 = vmatprep.subr.bf16.mxu0 %v3459
    %5477 = vmatpush2.bf16.msra.mxu0 %v3458
    %5478 = vmatprep.subr.bf16.mxu0 %v3455
    %5479 = vmatpush2.bf16.msra.mxu0 %v3454
    %5480 = vmatprep.subr.bf16.mxu0 %v3451
    %5481 = vmatpush2.bf16.msra.mxu0 %v3450
    %5482 = vmatprep.subr.bf16.mxu0 %v3447
    %5483 = vmatpush2.bf16.msra.mxu0 %v3446
    %5484 = vmatprep.subr.bf16.mxu0 %v3443
    %5485 = vmatpush2.bf16.msra.mxu0 %v3442
    %5486 = vmatprep.subr.bf16.mxu0 %v3439
    %5487 = vmatpush2.bf16.msra.mxu0 %v3438
    %5488 = vmatprep.mubr.bf16.mxu0 %v1053
    %5489 = vmatmul.mubr.bf16.gmra.mxu0 %v1052
    %v5490 = vpop.f32.mrf.mxu0
    %v5491 = vadd.f32 %v971, %v5490
    %v5492 = vpop.f32.mrf.mxu0
    %v5493 = vadd.f32 %v975, %v5492
    %v5494 = vpop.f32.mrf.mxu0
    %v5495 = vadd.f32 %v971, %v5494
    %v5496 = vpop.f32.mrf.mxu0
    %v5497 = vadd.f32 %v975, %v5496
    %5498 = vdwg.mxu0
    %5499 = vmatprep.subr.bf16.mxu0 %v3499
    %5500 = vmatpush1.bf16.msra.mxu0 %v3498
    %5501 = vmatprep.subr.bf16.mxu0 %v3495
    %5502 = vmatpush1.bf16.msra.mxu0 %v3494
    %5503 = vmatprep.subr.bf16.mxu0 %v3491
    %5504 = vmatpush1.bf16.msra.mxu0 %v3490
    %5505 = vmatprep.subr.bf16.mxu0 %v3487
    %5506 = vmatpush1.bf16.msra.mxu0 %v3486
    %5507 = vmatprep.subr.bf16.mxu0 %v3483
    %5508 = vmatpush1.bf16.msra.mxu0 %v3482
    %5509 = vmatprep.subr.bf16.mxu0 %v3479
    %5510 = vmatpush1.bf16.msra.mxu0 %v3478
    %5511 = vmatprep.subr.bf16.mxu0 %v3475
    %5512 = vmatpush1.bf16.msra.mxu0 %v3474
    %5513 = vmatprep.subr.bf16.mxu0 %v3471
    %5514 = vmatpush1.bf16.msra.mxu0 %v3470
    %5515 = vmatprep.subr.bf16.mxu0 %v3531
    %5516 = vmatpush2.bf16.msra.mxu0 %v3530
    %5517 = vmatprep.subr.bf16.mxu0 %v3527
    %5518 = vmatpush2.bf16.msra.mxu0 %v3526
    %5519 = vmatprep.subr.bf16.mxu0 %v3523
    %5520 = vmatpush2.bf16.msra.mxu0 %v3522
    %5521 = vmatprep.subr.bf16.mxu0 %v3519
    %5522 = vmatpush2.bf16.msra.mxu0 %v3518
    %5523 = vmatprep.subr.bf16.mxu0 %v3515
    %5524 = vmatpush2.bf16.msra.mxu0 %v3514
    %5525 = vmatprep.subr.bf16.mxu0 %v3511
    %5526 = vmatpush2.bf16.msra.mxu0 %v3510
    %5527 = vmatprep.subr.bf16.mxu0 %v3507
    %5528 = vmatpush2.bf16.msra.mxu0 %v3506
    %5529 = vmatprep.subr.bf16.mxu0 %v3503
    %5530 = vmatpush2.bf16.msra.mxu0 %v3502
    %5531 = vmatprep.mubr.bf16.mxu0 %v1055
    %5532 = vmatmul.mubr.bf16.gmra.mxu0 %v1054
    %v5533 = vpop.f32.mrf.mxu0
    %v5534 = vadd.f32 %v5491, %v5533
    %v5535 = vpop.f32.mrf.mxu0
    %v5536 = vadd.f32 %v5493, %v5535
    %v5537 = vpop.f32.mrf.mxu0
    %v5538 = vadd.f32 %v5495, %v5537
    %v5539 = vpop.f32.mrf.mxu0
    %v5540 = vadd.f32 %v5497, %v5539
    %5541 = vdwg.mxu0
    %5542 = vmatprep.subr.bf16.mxu0 %v3563
    %5543 = vmatpush1.bf16.msra.mxu0 %v3562
    %5544 = vmatprep.subr.bf16.mxu0 %v3559
    %5545 = vmatpush1.bf16.msra.mxu0 %v3558
    %5546 = vmatprep.subr.bf16.mxu0 %v3555
    %5547 = vmatpush1.bf16.msra.mxu0 %v3554
    %5548 = vmatprep.subr.bf16.mxu0 %v3551
    %5549 = vmatpush1.bf16.msra.mxu0 %v3550
    %5550 = vmatprep.subr.bf16.mxu0 %v3547
    %5551 = vmatpush1.bf16.msra.mxu0 %v3546
    %5552 = vmatprep.subr.bf16.mxu0 %v3543
    %5553 = vmatpush1.bf16.msra.mxu0 %v3542
    %5554 = vmatprep.subr.bf16.mxu0 %v3539
    %5555 = vmatpush1.bf16.msra.mxu0 %v3538
    %5556 = vmatprep.subr.bf16.mxu0 %v3535
    %5557 = vmatpush1.bf16.msra.mxu0 %v3534
    %5558 = vmatprep.subr.bf16.mxu0 %v3595
    %5559 = vmatpush2.bf16.msra.mxu0 %v3594
    %5560 = vmatprep.subr.bf16.mxu0 %v3591
    %5561 = vmatpush2.bf16.msra.mxu0 %v3590
    %5562 = vmatprep.subr.bf16.mxu0 %v3587
    %5563 = vmatpush2.bf16.msra.mxu0 %v3586
    %5564 = vmatprep.subr.bf16.mxu0 %v3583
    %5565 = vmatpush2.bf16.msra.mxu0 %v3582
    %5566 = vmatprep.subr.bf16.mxu0 %v3579
    %5567 = vmatpush2.bf16.msra.mxu0 %v3578
    %5568 = vmatprep.subr.bf16.mxu0 %v3575
    %5569 = vmatpush2.bf16.msra.mxu0 %v3574
    %5570 = vmatprep.subr.bf16.mxu0 %v3571
    %5571 = vmatpush2.bf16.msra.mxu0 %v3570
    %5572 = vmatprep.subr.bf16.mxu0 %v3567
    %5573 = vmatpush2.bf16.msra.mxu0 %v3566
    %5574 = vmatprep.mubr.bf16.mxu0 %v1057
    %5575 = vmatmul.mubr.bf16.gmra.mxu0 %v1056
    %v5576 = vpop.f32.mrf.mxu0
    %v5577 = vadd.f32 %v5534, %v5576
    %v5578 = vpop.f32.mrf.mxu0
    %v5579 = vadd.f32 %v5536, %v5578
    %v5580 = vpop.f32.mrf.mxu0
    %v5581 = vadd.f32 %v5538, %v5580
    %v5582 = vpop.f32.mrf.mxu0
    %v5583 = vadd.f32 %v5540, %v5582
    %5584 = vdwg.mxu0
    %5585 = vmatprep.subr.bf16.mxu0 %v3627
    %5586 = vmatpush1.bf16.msra.mxu0 %v3626
    %5587 = vmatprep.subr.bf16.mxu0 %v3623
    %5588 = vmatpush1.bf16.msra.mxu0 %v3622
    %5589 = vmatprep.subr.bf16.mxu0 %v3619
    %5590 = vmatpush1.bf16.msra.mxu0 %v3618
    %5591 = vmatprep.subr.bf16.mxu0 %v3615
    %5592 = vmatpush1.bf16.msra.mxu0 %v3614
    %5593 = vmatprep.subr.bf16.mxu0 %v3611
    %5594 = vmatpush1.bf16.msra.mxu0 %v3610
    %5595 = vmatprep.subr.bf16.mxu0 %v3607
    %5596 = vmatpush1.bf16.msra.mxu0 %v3606
    %5597 = vmatprep.subr.bf16.mxu0 %v3603
    %5598 = vmatpush1.bf16.msra.mxu0 %v3602
    %5599 = vmatprep.subr.bf16.mxu0 %v3599
    %5600 = vmatpush1.bf16.msra.mxu0 %v3598
    %5601 = vmatprep.subr.bf16.mxu0 %v3659
    %5602 = vmatpush2.bf16.msra.mxu0 %v3658
    %5603 = vmatprep.subr.bf16.mxu0 %v3655
    %5604 = vmatpush2.bf16.msra.mxu0 %v3654
    %5605 = vmatprep.subr.bf16.mxu0 %v3651
    %5606 = vmatpush2.bf16.msra.mxu0 %v3650
    %5607 = vmatprep.subr.bf16.mxu0 %v3647
    %5608 = vmatpush2.bf16.msra.mxu0 %v3646
    %5609 = vmatprep.subr.bf16.mxu0 %v3643
    %5610 = vmatpush2.bf16.msra.mxu0 %v3642
    %5611 = vmatprep.subr.bf16.mxu0 %v3639
    %5612 = vmatpush2.bf16.msra.mxu0 %v3638
    %5613 = vmatprep.subr.bf16.mxu0 %v3635
    %5614 = vmatpush2.bf16.msra.mxu0 %v3634
    %5615 = vmatprep.subr.bf16.mxu0 %v3631
    %5616 = vmatpush2.bf16.msra.mxu0 %v3630
    %5617 = vmatprep.mubr.bf16.mxu0 %v1059
    %5618 = vmatmul.mubr.bf16.gmra.mxu0 %v1058
    %v5619 = vpop.f32.mrf.mxu0
    %v5620 = vadd.f32 %v5577, %v5619
    %v5621 = vpop.f32.mrf.mxu0
    %v5622 = vadd.f32 %v5579, %v5621
    %v5623 = vpop.f32.mrf.mxu0
    %v5624 = vadd.f32 %v5581, %v5623
    %v5625 = vpop.f32.mrf.mxu0
    %v5626 = vadd.f32 %v5583, %v5625
    %5627 = vdwg.mxu0
    %5628 = vmatprep.subr.bf16.mxu0 %v3691
    %5629 = vmatpush1.bf16.msra.mxu0 %v3690
    %5630 = vmatprep.subr.bf16.mxu0 %v3687
    %5631 = vmatpush1.bf16.msra.mxu0 %v3686
    %5632 = vmatprep.subr.bf16.mxu0 %v3683
    %5633 = vmatpush1.bf16.msra.mxu0 %v3682
    %5634 = vmatprep.subr.bf16.mxu0 %v3679
    %5635 = vmatpush1.bf16.msra.mxu0 %v3678
    %5636 = vmatprep.subr.bf16.mxu0 %v3675
    %5637 = vmatpush1.bf16.msra.mxu0 %v3674
    %5638 = vmatprep.subr.bf16.mxu0 %v3671
    %5639 = vmatpush1.bf16.msra.mxu0 %v3670
    %5640 = vmatprep.subr.bf16.mxu0 %v3667
    %5641 = vmatpush1.bf16.msra.mxu0 %v3666
    %5642 = vmatprep.subr.bf16.mxu0 %v3663
    %5643 = vmatpush1.bf16.msra.mxu0 %v3662
    %5644 = vmatprep.subr.bf16.mxu0 %v3723
    %5645 = vmatpush2.bf16.msra.mxu0 %v3722
    %5646 = vmatprep.subr.bf16.mxu0 %v3719
    %5647 = vmatpush2.bf16.msra.mxu0 %v3718
    %5648 = vmatprep.subr.bf16.mxu0 %v3715
    %5649 = vmatpush2.bf16.msra.mxu0 %v3714
    %5650 = vmatprep.subr.bf16.mxu0 %v3711
    %5651 = vmatpush2.bf16.msra.mxu0 %v3710
    %5652 = vmatprep.subr.bf16.mxu0 %v3707
    %5653 = vmatpush2.bf16.msra.mxu0 %v3706
    %5654 = vmatprep.subr.bf16.mxu0 %v3703
    %5655 = vmatpush2.bf16.msra.mxu0 %v3702
    %5656 = vmatprep.subr.bf16.mxu0 %v3699
    %5657 = vmatpush2.bf16.msra.mxu0 %v3698
    %5658 = vmatprep.subr.bf16.mxu0 %v3695
    %5659 = vmatpush2.bf16.msra.mxu0 %v3694
    %5660 = vmatprep.mubr.bf16.mxu0 %v1061
    %5661 = vmatmul.mubr.bf16.gmra.mxu0 %v1060
    %v5662 = vpop.f32.mrf.mxu0
    %v5663 = vadd.f32 %v5620, %v5662
    %v5664 = vpop.f32.mrf.mxu0
    %v5665 = vadd.f32 %v5622, %v5664
    %v5666 = vpop.f32.mrf.mxu0
    %v5667 = vadd.f32 %v5624, %v5666
    %v5668 = vpop.f32.mrf.mxu0
    %v5669 = vadd.f32 %v5626, %v5668
    %5670 = vdwg.mxu0
    %5671 = vmatprep.subr.bf16.mxu0 %v3755
    %5672 = vmatpush1.bf16.msra.mxu0 %v3754
    %5673 = vmatprep.subr.bf16.mxu0 %v3751
    %5674 = vmatpush1.bf16.msra.mxu0 %v3750
    %5675 = vmatprep.subr.bf16.mxu0 %v3747
    %5676 = vmatpush1.bf16.msra.mxu0 %v3746
    %5677 = vmatprep.subr.bf16.mxu0 %v3743
    %5678 = vmatpush1.bf16.msra.mxu0 %v3742
    %5679 = vmatprep.subr.bf16.mxu0 %v3739
    %5680 = vmatpush1.bf16.msra.mxu0 %v3738
    %5681 = vmatprep.subr.bf16.mxu0 %v3735
    %5682 = vmatpush1.bf16.msra.mxu0 %v3734
    %5683 = vmatprep.subr.bf16.mxu0 %v3731
    %5684 = vmatpush1.bf16.msra.mxu0 %v3730
    %5685 = vmatprep.subr.bf16.mxu0 %v3727
    %5686 = vmatpush1.bf16.msra.mxu0 %v3726
    %5687 = vmatprep.subr.bf16.mxu0 %v3787
    %5688 = vmatpush2.bf16.msra.mxu0 %v3786
    %5689 = vmatprep.subr.bf16.mxu0 %v3783
    %5690 = vmatpush2.bf16.msra.mxu0 %v3782
    %5691 = vmatprep.subr.bf16.mxu0 %v3779
    %5692 = vmatpush2.bf16.msra.mxu0 %v3778
    %5693 = vmatprep.subr.bf16.mxu0 %v3775
    %5694 = vmatpush2.bf16.msra.mxu0 %v3774
    %5695 = vmatprep.subr.bf16.mxu0 %v3771
    %5696 = vmatpush2.bf16.msra.mxu0 %v3770
    %5697 = vmatprep.subr.bf16.mxu0 %v3767
    %5698 = vmatpush2.bf16.msra.mxu0 %v3766
    %5699 = vmatprep.subr.bf16.mxu0 %v3763
    %5700 = vmatpush2.bf16.msra.mxu0 %v3762
    %5701 = vmatprep.subr.bf16.mxu0 %v3759
    %5702 = vmatpush2.bf16.msra.mxu0 %v3758
    %5703 = vmatprep.mubr.bf16.mxu0 %v1063
    %5704 = vmatmul.mubr.bf16.gmra.mxu0 %v1062
    %v5705 = vpop.f32.mrf.mxu0
    %v5706 = vadd.f32 %v5663, %v5705
    %v5707 = vpop.f32.mrf.mxu0
    %v5708 = vadd.f32 %v5665, %v5707
    %v5709 = vpop.f32.mrf.mxu0
    %v5710 = vadd.f32 %v5667, %v5709
    %v5711 = vpop.f32.mrf.mxu0
    %v5712 = vadd.f32 %v5669, %v5711
    %5713 = vdwg.mxu0
    %5714 = vmatprep.subr.bf16.mxu0 %v3819
    %5715 = vmatpush1.bf16.msra.mxu0 %v3818
    %5716 = vmatprep.subr.bf16.mxu0 %v3815
    %5717 = vmatpush1.bf16.msra.mxu0 %v3814
    %5718 = vmatprep.subr.bf16.mxu0 %v3811
    %5719 = vmatpush1.bf16.msra.mxu0 %v3810
    %5720 = vmatprep.subr.bf16.mxu0 %v3807
    %5721 = vmatpush1.bf16.msra.mxu0 %v3806
    %5722 = vmatprep.subr.bf16.mxu0 %v3803
    %5723 = vmatpush1.bf16.msra.mxu0 %v3802
    %5724 = vmatprep.subr.bf16.mxu0 %v3799
    %5725 = vmatpush1.bf16.msra.mxu0 %v3798
    %5726 = vmatprep.subr.bf16.mxu0 %v3795
    %5727 = vmatpush1.bf16.msra.mxu0 %v3794
    %5728 = vmatprep.subr.bf16.mxu0 %v3791
    %5729 = vmatpush1.bf16.msra.mxu0 %v3790
    %5730 = vmatprep.subr.bf16.mxu0 %v3851
    %5731 = vmatpush2.bf16.msra.mxu0 %v3850
    %5732 = vmatprep.subr.bf16.mxu0 %v3847
    %5733 = vmatpush2.bf16.msra.mxu0 %v3846
    %5734 = vmatprep.subr.bf16.mxu0 %v3843
    %5735 = vmatpush2.bf16.msra.mxu0 %v3842
    %5736 = vmatprep.subr.bf16.mxu0 %v3839
    %5737 = vmatpush2.bf16.msra.mxu0 %v3838
    %5738 = vmatprep.subr.bf16.mxu0 %v3835
    %5739 = vmatpush2.bf16.msra.mxu0 %v3834
    %5740 = vmatprep.subr.bf16.mxu0 %v3831
    %5741 = vmatpush2.bf16.msra.mxu0 %v3830
    %5742 = vmatprep.subr.bf16.mxu0 %v3827
    %5743 = vmatpush2.bf16.msra.mxu0 %v3826
    %5744 = vmatprep.subr.bf16.mxu0 %v3823
    %5745 = vmatpush2.bf16.msra.mxu0 %v3822
    %5746 = vmatprep.mubr.bf16.mxu0 %v1065
    %5747 = vmatmul.mubr.bf16.gmra.mxu0 %v1064
    %v5748 = vpop.f32.mrf.mxu0
    %v5749 = vadd.f32 %v5706, %v5748
    %v5750 = vpop.f32.mrf.mxu0
    %v5751 = vadd.f32 %v5708, %v5750
    %v5752 = vpop.f32.mrf.mxu0
    %v5753 = vadd.f32 %v5710, %v5752
    %v5754 = vpop.f32.mrf.mxu0
    %v5755 = vadd.f32 %v5712, %v5754
    %5756 = vdwg.mxu0
    %5757 = vmatprep.subr.bf16.mxu0 %v3883
    %5758 = vmatpush1.bf16.msra.mxu0 %v3882
    %5759 = vmatprep.subr.bf16.mxu0 %v3879
    %5760 = vmatpush1.bf16.msra.mxu0 %v3878
    %5761 = vmatprep.subr.bf16.mxu0 %v3875
    %5762 = vmatpush1.bf16.msra.mxu0 %v3874
    %5763 = vmatprep.subr.bf16.mxu0 %v3871
    %5764 = vmatpush1.bf16.msra.mxu0 %v3870
    %5765 = vmatprep.subr.bf16.mxu0 %v3867
    %5766 = vmatpush1.bf16.msra.mxu0 %v3866
    %5767 = vmatprep.subr.bf16.mxu0 %v3863
    %5768 = vmatpush1.bf16.msra.mxu0 %v3862
    %5769 = vmatprep.subr.bf16.mxu0 %v3859
    %5770 = vmatpush1.bf16.msra.mxu0 %v3858
    %5771 = vmatprep.subr.bf16.mxu0 %v3855
    %5772 = vmatpush1.bf16.msra.mxu0 %v3854
    %5773 = vmatprep.subr.bf16.mxu0 %v3915
    %5774 = vmatpush2.bf16.msra.mxu0 %v3914
    %5775 = vmatprep.subr.bf16.mxu0 %v3911
    %5776 = vmatpush2.bf16.msra.mxu0 %v3910
    %5777 = vmatprep.subr.bf16.mxu0 %v3907
    %5778 = vmatpush2.bf16.msra.mxu0 %v3906
    %5779 = vmatprep.subr.bf16.mxu0 %v3903
    %5780 = vmatpush2.bf16.msra.mxu0 %v3902
    %5781 = vmatprep.subr.bf16.mxu0 %v3899
    %5782 = vmatpush2.bf16.msra.mxu0 %v3898
    %5783 = vmatprep.subr.bf16.mxu0 %v3895
    %5784 = vmatpush2.bf16.msra.mxu0 %v3894
    %5785 = vmatprep.subr.bf16.mxu0 %v3891
    %5786 = vmatpush2.bf16.msra.mxu0 %v3890
    %5787 = vmatprep.subr.bf16.mxu0 %v3887
    %5788 = vmatpush2.bf16.msra.mxu0 %v3886
    %5789 = vmatprep.mubr.bf16.mxu0 %v1067
    %5790 = vmatmul.mubr.bf16.gmra.mxu0 %v1066
    %v5791 = vpop.f32.mrf.mxu0
    %v5792 = vadd.f32 %v5749, %v5791
    %v5793 = vpop.f32.mrf.mxu0
    %v5794 = vadd.f32 %v5751, %v5793
    %v5795 = vpop.f32.mrf.mxu0
    %v5796 = vadd.f32 %v5753, %v5795
    %v5797 = vpop.f32.mrf.mxu0
    %v5798 = vadd.f32 %v5755, %v5797
    %5799 = vdwg.mxu0
    %5800 = vmatprep.subr.bf16.mxu0 %v3947
    %5801 = vmatpush1.bf16.msra.mxu0 %v3946
    %5802 = vmatprep.subr.bf16.mxu0 %v3943
    %5803 = vmatpush1.bf16.msra.mxu0 %v3942
    %5804 = vmatprep.subr.bf16.mxu0 %v3939
    %5805 = vmatpush1.bf16.msra.mxu0 %v3938
    %5806 = vmatprep.subr.bf16.mxu0 %v3935
    %5807 = vmatpush1.bf16.msra.mxu0 %v3934
    %5808 = vmatprep.subr.bf16.mxu0 %v3931
    %5809 = vmatpush1.bf16.msra.mxu0 %v3930
    %5810 = vmatprep.subr.bf16.mxu0 %v3927
    %5811 = vmatpush1.bf16.msra.mxu0 %v3926
    %5812 = vmatprep.subr.bf16.mxu0 %v3923
    %5813 = vmatpush1.bf16.msra.mxu0 %v3922
    %5814 = vmatprep.subr.bf16.mxu0 %v3919
    %5815 = vmatpush1.bf16.msra.mxu0 %v3918
    %5816 = vmatprep.subr.bf16.mxu0 %v3979
    %5817 = vmatpush2.bf16.msra.mxu0 %v3978
    %5818 = vmatprep.subr.bf16.mxu0 %v3975
    %5819 = vmatpush2.bf16.msra.mxu0 %v3974
    %5820 = vmatprep.subr.bf16.mxu0 %v3971
    %5821 = vmatpush2.bf16.msra.mxu0 %v3970
    %5822 = vmatprep.subr.bf16.mxu0 %v3967
    %5823 = vmatpush2.bf16.msra.mxu0 %v3966
    %5824 = vmatprep.subr.bf16.mxu0 %v3963
    %5825 = vmatpush2.bf16.msra.mxu0 %v3962
    %5826 = vmatprep.subr.bf16.mxu0 %v3959
    %5827 = vmatpush2.bf16.msra.mxu0 %v3958
    %5828 = vmatprep.subr.bf16.mxu0 %v3955
    %5829 = vmatpush2.bf16.msra.mxu0 %v3954
    %5830 = vmatprep.subr.bf16.mxu0 %v3951
    %5831 = vmatpush2.bf16.msra.mxu0 %v3950
    %5832 = vmatprep.mubr.bf16.mxu0 %v1069
    %5833 = vmatmul.mubr.bf16.gmra.mxu0 %v1068
    %v5834 = vpop.f32.mrf.mxu0
    %v5835 = vadd.f32 %v5792, %v5834
    %v5836 = vpop.f32.mrf.mxu0
    %v5837 = vadd.f32 %v5794, %v5836
    %v5838 = vpop.f32.mrf.mxu0
    %v5839 = vadd.f32 %v5796, %v5838
    %v5840 = vpop.f32.mrf.mxu0
    %v5841 = vadd.f32 %v5798, %v5840
    %5842 = vdwg.mxu0
    %5843 = vmatprep.subr.bf16.mxu0 %v4011
    %5844 = vmatpush1.bf16.msra.mxu0 %v4010
    %5845 = vmatprep.subr.bf16.mxu0 %v4007
    %5846 = vmatpush1.bf16.msra.mxu0 %v4006
    %5847 = vmatprep.subr.bf16.mxu0 %v4003
    %5848 = vmatpush1.bf16.msra.mxu0 %v4002
    %5849 = vmatprep.subr.bf16.mxu0 %v3999
    %5850 = vmatpush1.bf16.msra.mxu0 %v3998
    %5851 = vmatprep.subr.bf16.mxu0 %v3995
    %5852 = vmatpush1.bf16.msra.mxu0 %v3994
    %5853 = vmatprep.subr.bf16.mxu0 %v3991
    %5854 = vmatpush1.bf16.msra.mxu0 %v3990
    %5855 = vmatprep.subr.bf16.mxu0 %v3987
    %5856 = vmatpush1.bf16.msra.mxu0 %v3986
    %5857 = vmatprep.subr.bf16.mxu0 %v3983
    %5858 = vmatpush1.bf16.msra.mxu0 %v3982
    %5859 = vmatprep.subr.bf16.mxu0 %v4043
    %5860 = vmatpush2.bf16.msra.mxu0 %v4042
    %5861 = vmatprep.subr.bf16.mxu0 %v4039
    %5862 = vmatpush2.bf16.msra.mxu0 %v4038
    %5863 = vmatprep.subr.bf16.mxu0 %v4035
    %5864 = vmatpush2.bf16.msra.mxu0 %v4034
    %5865 = vmatprep.subr.bf16.mxu0 %v4031
    %5866 = vmatpush2.bf16.msra.mxu0 %v4030
    %5867 = vmatprep.subr.bf16.mxu0 %v4027
    %5868 = vmatpush2.bf16.msra.mxu0 %v4026
    %5869 = vmatprep.subr.bf16.mxu0 %v4023
    %5870 = vmatpush2.bf16.msra.mxu0 %v4022
    %5871 = vmatprep.subr.bf16.mxu0 %v4019
    %5872 = vmatpush2.bf16.msra.mxu0 %v4018
    %5873 = vmatprep.subr.bf16.mxu0 %v4015
    %5874 = vmatpush2.bf16.msra.mxu0 %v4014
    %5875 = vmatprep.mubr.bf16.mxu0 %v1071
    %5876 = vmatmul.mubr.bf16.gmra.mxu0 %v1070
    %v5877 = vpop.f32.mrf.mxu0
    %v5878 = vadd.f32 %v5835, %v5877
    %v5879 = vpop.f32.mrf.mxu0
    %v5880 = vadd.f32 %v5837, %v5879
    %v5881 = vpop.f32.mrf.mxu0
    %v5882 = vadd.f32 %v5839, %v5881
    %v5883 = vpop.f32.mrf.mxu0
    %v5884 = vadd.f32 %v5841, %v5883
    %5885 = vdwg.mxu0
    %5886 = vmatprep.subr.bf16.mxu0 %v4075
    %5887 = vmatpush1.bf16.msra.mxu0 %v4074
    %5888 = vmatprep.subr.bf16.mxu0 %v4071
    %5889 = vmatpush1.bf16.msra.mxu0 %v4070
    %5890 = vmatprep.subr.bf16.mxu0 %v4067
    %5891 = vmatpush1.bf16.msra.mxu0 %v4066
    %5892 = vmatprep.subr.bf16.mxu0 %v4063
    %5893 = vmatpush1.bf16.msra.mxu0 %v4062
    %5894 = vmatprep.subr.bf16.mxu0 %v4059
    %5895 = vmatpush1.bf16.msra.mxu0 %v4058
    %5896 = vmatprep.subr.bf16.mxu0 %v4055
    %5897 = vmatpush1.bf16.msra.mxu0 %v4054
    %5898 = vmatprep.subr.bf16.mxu0 %v4051
    %5899 = vmatpush1.bf16.msra.mxu0 %v4050
    %5900 = vmatprep.subr.bf16.mxu0 %v4047
    %5901 = vmatpush1.bf16.msra.mxu0 %v4046
    %5902 = vmatprep.subr.bf16.mxu0 %v4107
    %5903 = vmatpush2.bf16.msra.mxu0 %v4106
    %5904 = vmatprep.subr.bf16.mxu0 %v4103
    %5905 = vmatpush2.bf16.msra.mxu0 %v4102
    %5906 = vmatprep.subr.bf16.mxu0 %v4099
    %5907 = vmatpush2.bf16.msra.mxu0 %v4098
    %5908 = vmatprep.subr.bf16.mxu0 %v4095
    %5909 = vmatpush2.bf16.msra.mxu0 %v4094
    %5910 = vmatprep.subr.bf16.mxu0 %v4091
    %5911 = vmatpush2.bf16.msra.mxu0 %v4090
    %5912 = vmatprep.subr.bf16.mxu0 %v4087
    %5913 = vmatpush2.bf16.msra.mxu0 %v4086
    %5914 = vmatprep.subr.bf16.mxu0 %v4083
    %5915 = vmatpush2.bf16.msra.mxu0 %v4082
    %5916 = vmatprep.subr.bf16.mxu0 %v4079
    %5917 = vmatpush2.bf16.msra.mxu0 %v4078
    %5918 = vmatprep.mubr.bf16.mxu0 %v1073
    %5919 = vmatmul.mubr.bf16.gmra.mxu0 %v1072
    %v5920 = vpop.f32.mrf.mxu0
    %v5921 = vadd.f32 %v5878, %v5920
    %v5922 = vpop.f32.mrf.mxu0
    %v5923 = vadd.f32 %v5880, %v5922
    %v5924 = vpop.f32.mrf.mxu0
    %v5925 = vadd.f32 %v5882, %v5924
    %v5926 = vpop.f32.mrf.mxu0
    %v5927 = vadd.f32 %v5884, %v5926
    %5928 = vdwg.mxu0
    %5929 = vmatprep.subr.bf16.mxu0 %v4139
    %5930 = vmatpush1.bf16.msra.mxu0 %v4138
    %5931 = vmatprep.subr.bf16.mxu0 %v4135
    %5932 = vmatpush1.bf16.msra.mxu0 %v4134
    %5933 = vmatprep.subr.bf16.mxu0 %v4131
    %5934 = vmatpush1.bf16.msra.mxu0 %v4130
    %5935 = vmatprep.subr.bf16.mxu0 %v4127
    %5936 = vmatpush1.bf16.msra.mxu0 %v4126
    %5937 = vmatprep.subr.bf16.mxu0 %v4123
    %5938 = vmatpush1.bf16.msra.mxu0 %v4122
    %5939 = vmatprep.subr.bf16.mxu0 %v4119
    %5940 = vmatpush1.bf16.msra.mxu0 %v4118
    %5941 = vmatprep.subr.bf16.mxu0 %v4115
    %5942 = vmatpush1.bf16.msra.mxu0 %v4114
    %5943 = vmatprep.subr.bf16.mxu0 %v4111
    %5944 = vmatpush1.bf16.msra.mxu0 %v4110
    %5945 = vmatprep.subr.bf16.mxu0 %v4171
    %5946 = vmatpush2.bf16.msra.mxu0 %v4170
    %5947 = vmatprep.subr.bf16.mxu0 %v4167
    %5948 = vmatpush2.bf16.msra.mxu0 %v4166
    %5949 = vmatprep.subr.bf16.mxu0 %v4163
    %5950 = vmatpush2.bf16.msra.mxu0 %v4162
    %5951 = vmatprep.subr.bf16.mxu0 %v4159
    %5952 = vmatpush2.bf16.msra.mxu0 %v4158
    %5953 = vmatprep.subr.bf16.mxu0 %v4155
    %5954 = vmatpush2.bf16.msra.mxu0 %v4154
    %5955 = vmatprep.subr.bf16.mxu0 %v4151
    %5956 = vmatpush2.bf16.msra.mxu0 %v4150
    %5957 = vmatprep.subr.bf16.mxu0 %v4147
    %5958 = vmatpush2.bf16.msra.mxu0 %v4146
    %5959 = vmatprep.subr.bf16.mxu0 %v4143
    %5960 = vmatpush2.bf16.msra.mxu0 %v4142
    %5961 = vmatprep.mubr.bf16.mxu0 %v1075
    %5962 = vmatmul.mubr.bf16.gmra.mxu0 %v1074
    %v5963 = vpop.f32.mrf.mxu0
    %v5964 = vadd.f32 %v5921, %v5963
    %v5965 = vpop.f32.mrf.mxu0
    %v5966 = vadd.f32 %v5923, %v5965
    %v5967 = vpop.f32.mrf.mxu0
    %v5968 = vadd.f32 %v5925, %v5967
    %v5969 = vpop.f32.mrf.mxu0
    %v5970 = vadd.f32 %v5927, %v5969
    %5971 = vdwg.mxu0
    %v5972 = vmax.f32 %v5448, 0.0
    %v5973 = vmax.f32 %v5450, 0.0
    %v5974 = vmax.f32 %v5964, 0.0
    %v5975 = vmax.f32 %v5966, 0.0
    %v5976 = vmax.f32 %v5452, 0.0
    %v5977 = vmax.f32 %v5454, 0.0
    %v5978 = vmax.f32 %v5968, 0.0
    %v5979 = vmax.f32 %v5970, 0.0
    %v5980 = vpack.c.bf16 %v5976, %v5972
    %v5981 = vpack.c.bf16 %v5977, %v5973
    %v5982 = vpack.c.bf16 %v5978, %v5974
    %v5983 = vpack.c.bf16 %v5979, %v5975
    %v5984 = vld [vmem:[#allocation8] sm:$0xff]
    %v5985 = vld [vmem:[#allocation8 + $0x8] sm:$0xff]
    %v5986 = vld [vmem:[#allocation8 + $0x10] sm:$0xff]
    %v5987 = vld [vmem:[#allocation8 + $0x18] sm:$0xff]
    %v5988 = vld [vmem:[#allocation8 + $0x20] sm:$0xff]
    %v5989 = vld [vmem:[#allocation8 + $0x28] sm:$0xff]
    %v5990 = vld [vmem:[#allocation8 + $0x30] sm:$0xff]
    %v5991 = vld [vmem:[#allocation8 + $0x38] sm:$0xff]
    %v5992 = vld [vmem:[#allocation8 + $0x40] sm:$0xff]
    %v5993 = vld [vmem:[#allocation8 + $0x48] sm:$0xff]
    %v5994 = vld [vmem:[#allocation8 + $0x50] sm:$0xff]
    %v5995 = vld [vmem:[#allocation8 + $0x58] sm:$0xff]
    %v5996 = vld [vmem:[#allocation8 + $0x60] sm:$0xff]
    %v5997 = vld [vmem:[#allocation8 + $0x68] sm:$0xff]
    %v5998 = vld [vmem:[#allocation8 + $0x70] sm:$0xff]
    %v5999 = vld [vmem:[#allocation8 + $0x78] sm:$0xff]
    %v6000 = vld [vmem:[#allocation8 + $0x80] sm:$0xff]
    %v6001 = vld [vmem:[#allocation8 + $0x88] sm:$0xff]
    %v6002 = vld [vmem:[#allocation8 + $0x90] sm:$0xff]
    %v6003 = vld [vmem:[#allocation8 + $0x98] sm:$0xff]
    %v6004 = vld [vmem:[#allocation8 + $0xa0] sm:$0xff]
    %v6005 = vld [vmem:[#allocation8 + $0xa8] sm:$0xff]
    %v6006 = vld [vmem:[#allocation8 + $0xb0] sm:$0xff]
    %v6007 = vld [vmem:[#allocation8 + $0xb8] sm:$0xff]
    %v6008 = vld [vmem:[#allocation8 + $0xc0] sm:$0xff]
    %v6009 = vld [vmem:[#allocation8 + $0xc8] sm:$0xff]
    %v6010 = vld [vmem:[#allocation8 + $0xd0] sm:$0xff]
    %v6011 = vld [vmem:[#allocation8 + $0xd8] sm:$0xff]
    %v6012 = vld [vmem:[#allocation8 + $0xe0] sm:$0xff]
    %v6013 = vld [vmem:[#allocation8 + $0xe8] sm:$0xff]
    %v6014 = vld [vmem:[#allocation8 + $0xf0] sm:$0xff]
    %v6015 = vld [vmem:[#allocation8 + $0xf8] sm:$0xff]
    %v6016 = vld [vmem:[#allocation8 + $0x100] sm:$0xff]
    %v6017 = vld [vmem:[#allocation8 + $0x108] sm:$0xff]
    %v6018 = vld [vmem:[#allocation8 + $0x110] sm:$0xff]
    %v6019 = vld [vmem:[#allocation8 + $0x118] sm:$0xff]
    %v6020 = vld [vmem:[#allocation8 + $0x120] sm:$0xff]
    %v6021 = vld [vmem:[#allocation8 + $0x128] sm:$0xff]
    %v6022 = vld [vmem:[#allocation8 + $0x130] sm:$0xff]
    %v6023 = vld [vmem:[#allocation8 + $0x138] sm:$0xff]
    %v6024 = vld [vmem:[#allocation8 + $0x140] sm:$0xff]
    %v6025 = vld [vmem:[#allocation8 + $0x148] sm:$0xff]
    %v6026 = vld [vmem:[#allocation8 + $0x150] sm:$0xff]
    %v6027 = vld [vmem:[#allocation8 + $0x158] sm:$0xff]
    %v6028 = vld [vmem:[#allocation8 + $0x160] sm:$0xff]
    %v6029 = vld [vmem:[#allocation8 + $0x168] sm:$0xff]
    %v6030 = vld [vmem:[#allocation8 + $0x170] sm:$0xff]
    %v6031 = vld [vmem:[#allocation8 + $0x178] sm:$0xff]
    %v6032 = vld [vmem:[#allocation8 + $0x180] sm:$0xff]
    %v6033 = vld [vmem:[#allocation8 + $0x188] sm:$0xff]
    %v6034 = vld [vmem:[#allocation8 + $0x190] sm:$0xff]
    %v6035 = vld [vmem:[#allocation8 + $0x198] sm:$0xff]
    %v6036 = vld [vmem:[#allocation8 + $0x1a0] sm:$0xff]
    %v6037 = vld [vmem:[#allocation8 + $0x1a8] sm:$0xff]
    %v6038 = vld [vmem:[#allocation8 + $0x1b0] sm:$0xff]
    %v6039 = vld [vmem:[#allocation8 + $0x1b8] sm:$0xff]
    %v6040 = vld [vmem:[#allocation8 + $0x1c0] sm:$0xff]
    %v6041 = vld [vmem:[#allocation8 + $0x1c8] sm:$0xff]
    %v6042 = vld [vmem:[#allocation8 + $0x1d0] sm:$0xff]
    %v6043 = vld [vmem:[#allocation8 + $0x1d8] sm:$0xff]
    %v6044 = vld [vmem:[#allocation8 + $0x1e0] sm:$0xff]
    %v6045 = vld [vmem:[#allocation8 + $0x1e8] sm:$0xff]
    %v6046 = vld [vmem:[#allocation8 + $0x1f0] sm:$0xff]
    %v6047 = vld [vmem:[#allocation8 + $0x1f8] sm:$0xff]
    %v6048 = vld [vmem:[#allocation10] sm:$0x3]
    %v6050 = vlaneseq
    %v6051 = vshrl.u32 %v6050, 7
    %v6052 = vsub.s32 0, %v6051
    %v6053 = vrot.slane %v6048, %v6052
    %v6054 = vlaneseq
    %v6055 = vshrl.u32 %v6054, 7
    %v6056 = vsub.s32 1, %v6055
    %v6057 = vrot.slane %v6048, %v6056
    %v6124 = vunpack.c.l.b16 %v5984
    %v6125 = vunpack.c.h.b16 %v5984
    %v6126 = vunpack.c.l.b16 %v5985
    %v6127 = vunpack.c.h.b16 %v5985
    %v6128 = vunpack.c.l.b16 %v5986
    %v6129 = vunpack.c.h.b16 %v5986
    %v6130 = vunpack.c.l.b16 %v5987
    %v6131 = vunpack.c.h.b16 %v5987
    %v6132 = vunpack.c.l.b16 %v5988
    %v6133 = vunpack.c.h.b16 %v5988
    %v6134 = vunpack.c.l.b16 %v5989
    %v6135 = vunpack.c.h.b16 %v5989
    %v6136 = vunpack.c.l.b16 %v5990
    %v6137 = vunpack.c.h.b16 %v5990
    %v6138 = vunpack.c.l.b16 %v5991
    %v6139 = vunpack.c.h.b16 %v5991
    %v6140 = vunpack.c.l.b16 %v5992
    %v6141 = vunpack.c.h.b16 %v5992
    %v6142 = vunpack.c.l.b16 %v5993
    %v6143 = vunpack.c.h.b16 %v5993
    %v6144 = vunpack.c.l.b16 %v5994
    %v6145 = vunpack.c.h.b16 %v5994
    %v6146 = vunpack.c.l.b16 %v5995
    %v6147 = vunpack.c.h.b16 %v5995
    %v6148 = vunpack.c.l.b16 %v5996
    %v6149 = vunpack.c.h.b16 %v5996
    %v6150 = vunpack.c.l.b16 %v5997
    %v6151 = vunpack.c.h.b16 %v5997
    %v6152 = vunpack.c.l.b16 %v5998
    %v6153 = vunpack.c.h.b16 %v5998
    %v6154 = vunpack.c.l.b16 %v5999
    %v6155 = vunpack.c.h.b16 %v5999
    %v6156 = vunpack.c.l.b16 %v6000
    %v6157 = vunpack.c.h.b16 %v6000
    %v6158 = vunpack.c.l.b16 %v6001
    %v6159 = vunpack.c.h.b16 %v6001
    %v6160 = vunpack.c.l.b16 %v6002
    %v6161 = vunpack.c.h.b16 %v6002
    %v6162 = vunpack.c.l.b16 %v6003
    %v6163 = vunpack.c.h.b16 %v6003
    %v6164 = vunpack.c.l.b16 %v6004
    %v6165 = vunpack.c.h.b16 %v6004
    %v6166 = vunpack.c.l.b16 %v6005
    %v6167 = vunpack.c.h.b16 %v6005
    %v6168 = vunpack.c.l.b16 %v6006
    %v6169 = vunpack.c.h.b16 %v6006
    %v6170 = vunpack.c.l.b16 %v6007
    %v6171 = vunpack.c.h.b16 %v6007
    %v6172 = vunpack.c.l.b16 %v6008
    %v6173 = vunpack.c.h.b16 %v6008
    %v6174 = vunpack.c.l.b16 %v6009
    %v6175 = vunpack.c.h.b16 %v6009
    %v6176 = vunpack.c.l.b16 %v6010
    %v6177 = vunpack.c.h.b16 %v6010
    %v6178 = vunpack.c.l.b16 %v6011
    %v6179 = vunpack.c.h.b16 %v6011
    %v6180 = vunpack.c.l.b16 %v6012
    %v6181 = vunpack.c.h.b16 %v6012
    %v6182 = vunpack.c.l.b16 %v6013
    %v6183 = vunpack.c.h.b16 %v6013
    %v6184 = vunpack.c.l.b16 %v6014
    %v6185 = vunpack.c.h.b16 %v6014
    %v6186 = vunpack.c.l.b16 %v6015
    %v6187 = vunpack.c.h.b16 %v6015
    %v6188 = vunpack.c.l.b16 %v6016
    %v6189 = vunpack.c.h.b16 %v6016
    %v6190 = vunpack.c.l.b16 %v6017
    %v6191 = vunpack.c.h.b16 %v6017
    %v6192 = vunpack.c.l.b16 %v6018
    %v6193 = vunpack.c.h.b16 %v6018
    %v6194 = vunpack.c.l.b16 %v6019
    %v6195 = vunpack.c.h.b16 %v6019
    %v6196 = vunpack.c.l.b16 %v6020
    %v6197 = vunpack.c.h.b16 %v6020
    %v6198 = vunpack.c.l.b16 %v6021
    %v6199 = vunpack.c.h.b16 %v6021
    %v6200 = vunpack.c.l.b16 %v6022
    %v6201 = vunpack.c.h.b16 %v6022
    %v6202 = vunpack.c.l.b16 %v6023
    %v6203 = vunpack.c.h.b16 %v6023
    %v6204 = vunpack.c.l.b16 %v6024
    %v6205 = vunpack.c.h.b16 %v6024
    %v6206 = vunpack.c.l.b16 %v6025
    %v6207 = vunpack.c.h.b16 %v6025
    %v6208 = vunpack.c.l.b16 %v6026
    %v6209 = vunpack.c.h.b16 %v6026
    %v6210 = vunpack.c.l.b16 %v6027
    %v6211 = vunpack.c.h.b16 %v6027
    %v6212 = vunpack.c.l.b16 %v6028
    %v6213 = vunpack.c.h.b16 %v6028
    %v6214 = vunpack.c.l.b16 %v6029
    %v6215 = vunpack.c.h.b16 %v6029
    %v6216 = vunpack.c.l.b16 %v6030
    %v6217 = vunpack.c.h.b16 %v6030
    %v6218 = vunpack.c.l.b16 %v6031
    %v6219 = vunpack.c.h.b16 %v6031
    %v6220 = vunpack.c.l.b16 %v6032
    %v6221 = vunpack.c.h.b16 %v6032
    %v6222 = vunpack.c.l.b16 %v6033
    %v6223 = vunpack.c.h.b16 %v6033
    %v6224 = vunpack.c.l.b16 %v6034
    %v6225 = vunpack.c.h.b16 %v6034
    %v6226 = vunpack.c.l.b16 %v6035
    %v6227 = vunpack.c.h.b16 %v6035
    %v6228 = vunpack.c.l.b16 %v6036
    %v6229 = vunpack.c.h.b16 %v6036
    %v6230 = vunpack.c.l.b16 %v6037
    %v6231 = vunpack.c.h.b16 %v6037
    %v6232 = vunpack.c.l.b16 %v6038
    %v6233 = vunpack.c.h.b16 %v6038
    %v6234 = vunpack.c.l.b16 %v6039
    %v6235 = vunpack.c.h.b16 %v6039
    %v6236 = vunpack.c.l.b16 %v6040
    %v6237 = vunpack.c.h.b16 %v6040
    %v6238 = vunpack.c.l.b16 %v6041
    %v6239 = vunpack.c.h.b16 %v6041
    %v6240 = vunpack.c.l.b16 %v6042
    %v6241 = vunpack.c.h.b16 %v6042
    %v6242 = vunpack.c.l.b16 %v6043
    %v6243 = vunpack.c.h.b16 %v6043
    %v6244 = vunpack.c.l.b16 %v6044
    %v6245 = vunpack.c.h.b16 %v6044
    %v6246 = vunpack.c.l.b16 %v6045
    %v6247 = vunpack.c.h.b16 %v6045
    %v6248 = vunpack.c.l.b16 %v6046
    %v6249 = vunpack.c.h.b16 %v6046
    %v6250 = vunpack.c.l.b16 %v6047
    %v6251 = vunpack.c.h.b16 %v6047
    %v6252 = vpack.c.b16 %v6126, %v6124
    %v6253 = vpack.c.b16 %v6127, %v6125
    %v6254 = vpack.c.b16 %v6130, %v6128
    %v6255 = vpack.c.b16 %v6131, %v6129
    %v6256 = vpack.c.b16 %v6134, %v6132
    %v6257 = vpack.c.b16 %v6135, %v6133
    %v6258 = vpack.c.b16 %v6138, %v6136
    %v6259 = vpack.c.b16 %v6139, %v6137
    %v6260 = vpack.c.b16 %v6142, %v6140
    %v6261 = vpack.c.b16 %v6143, %v6141
    %v6262 = vpack.c.b16 %v6146, %v6144
    %v6263 = vpack.c.b16 %v6147, %v6145
    %v6264 = vpack.c.b16 %v6150, %v6148
    %v6265 = vpack.c.b16 %v6151, %v6149
    %v6266 = vpack.c.b16 %v6154, %v6152
    %v6267 = vpack.c.b16 %v6155, %v6153
    %v6268 = vpack.c.b16 %v6158, %v6156
    %v6269 = vpack.c.b16 %v6159, %v6157
    %v6270 = vpack.c.b16 %v6162, %v6160
    %v6271 = vpack.c.b16 %v6163, %v6161
    %v6272 = vpack.c.b16 %v6166, %v6164
    %v6273 = vpack.c.b16 %v6167, %v6165
    %v6274 = vpack.c.b16 %v6170, %v6168
    %v6275 = vpack.c.b16 %v6171, %v6169
    %v6276 = vpack.c.b16 %v6174, %v6172
    %v6277 = vpack.c.b16 %v6175, %v6173
    %v6278 = vpack.c.b16 %v6178, %v6176
    %v6279 = vpack.c.b16 %v6179, %v6177
    %v6280 = vpack.c.b16 %v6182, %v6180
    %v6281 = vpack.c.b16 %v6183, %v6181
    %v6282 = vpack.c.b16 %v6186, %v6184
    %v6283 = vpack.c.b16 %v6187, %v6185
    %v6284 = vpack.c.b16 %v6190, %v6188
    %v6285 = vpack.c.b16 %v6191, %v6189
    %v6286 = vpack.c.b16 %v6194, %v6192
    %v6287 = vpack.c.b16 %v6195, %v6193
    %v6288 = vpack.c.b16 %v6198, %v6196
    %v6289 = vpack.c.b16 %v6199, %v6197
    %v6290 = vpack.c.b16 %v6202, %v6200
    %v6291 = vpack.c.b16 %v6203, %v6201
    %v6292 = vpack.c.b16 %v6206, %v6204
    %v6293 = vpack.c.b16 %v6207, %v6205
    %v6294 = vpack.c.b16 %v6210, %v6208
    %v6295 = vpack.c.b16 %v6211, %v6209
    %v6296 = vpack.c.b16 %v6214, %v6212
    %v6297 = vpack.c.b16 %v6215, %v6213
    %v6298 = vpack.c.b16 %v6218, %v6216
    %v6299 = vpack.c.b16 %v6219, %v6217
    %v6300 = vpack.c.b16 %v6222, %v6220
    %v6301 = vpack.c.b16 %v6223, %v6221
    %v6302 = vpack.c.b16 %v6226, %v6224
    %v6303 = vpack.c.b16 %v6227, %v6225
    %v6304 = vpack.c.b16 %v6230, %v6228
    %v6305 = vpack.c.b16 %v6231, %v6229
    %v6306 = vpack.c.b16 %v6234, %v6232
    %v6307 = vpack.c.b16 %v6235, %v6233
    %v6308 = vpack.c.b16 %v6238, %v6236
    %v6309 = vpack.c.b16 %v6239, %v6237
    %v6310 = vpack.c.b16 %v6242, %v6240
    %v6311 = vpack.c.b16 %v6243, %v6241
    %v6312 = vpack.c.b16 %v6246, %v6244
    %v6313 = vpack.c.b16 %v6247, %v6245
    %v6314 = vpack.c.b16 %v6250, %v6248
    %v6315 = vpack.c.b16 %v6251, %v6249
    %6380 = vmatprep.subr.bf16.mxu0 %v6267
    %6381 = vmatpush1.bf16.msra.mxu0 %v6266
    %6382 = vmatprep.subr.bf16.mxu0 %v6265
    %6383 = vmatpush1.bf16.msra.mxu0 %v6264
    %6384 = vmatprep.subr.bf16.mxu0 %v6263
    %6385 = vmatpush1.bf16.msra.mxu0 %v6262
    %6386 = vmatprep.subr.bf16.mxu0 %v6261
    %6387 = vmatpush1.bf16.msra.mxu0 %v6260
    %6388 = vmatprep.subr.bf16.mxu0 %v6259
    %6389 = vmatpush1.bf16.msra.mxu0 %v6258
    %6390 = vmatprep.subr.bf16.mxu0 %v6257
    %6391 = vmatpush1.bf16.msra.mxu0 %v6256
    %6392 = vmatprep.subr.bf16.mxu0 %v6255
    %6393 = vmatpush1.bf16.msra.mxu0 %v6254
    %6394 = vmatprep.subr.bf16.mxu0 %v6253
    %6395 = vmatpush1.bf16.msra.mxu0 %v6252
    %6396 = vmatprep.subr.bf16.mxu0 %v6283
    %6397 = vmatpush2.bf16.msra.mxu0 %v6282
    %6398 = vmatprep.subr.bf16.mxu0 %v6281
    %6399 = vmatpush2.bf16.msra.mxu0 %v6280
    %6400 = vmatprep.subr.bf16.mxu0 %v6279
    %6401 = vmatpush2.bf16.msra.mxu0 %v6278
    %6402 = vmatprep.subr.bf16.mxu0 %v6277
    %6403 = vmatpush2.bf16.msra.mxu0 %v6276
    %6404 = vmatprep.subr.bf16.mxu0 %v6275
    %6405 = vmatpush2.bf16.msra.mxu0 %v6274
    %6406 = vmatprep.subr.bf16.mxu0 %v6273
    %6407 = vmatpush2.bf16.msra.mxu0 %v6272
    %6408 = vmatprep.subr.bf16.mxu0 %v6271
    %6409 = vmatpush2.bf16.msra.mxu0 %v6270
    %6410 = vmatprep.subr.bf16.mxu0 %v6269
    %6411 = vmatpush2.bf16.msra.mxu0 %v6268
    %6412 = vmatprep.mubr.bf16.mxu0 %v5981
    %6413 = vmatmul.mubr.bf16.gmra.mxu0 %v5980
    %v6414 = vpop.f32.mrf.mxu0
    %v6415 = vadd.f32 %v6053, %v6414
    %v6416 = vpop.f32.mrf.mxu0
    %v6417 = vadd.f32 %v6057, %v6416
    %v6418 = vpop.f32.mrf.mxu0
    %v6419 = vadd.f32 %v6053, %v6418
    %v6420 = vpop.f32.mrf.mxu0
    %v6421 = vadd.f32 %v6057, %v6420
    %6422 = vdwg.mxu0
    %6423 = vmatprep.subr.bf16.mxu0 %v6299
    %6424 = vmatpush1.bf16.msra.mxu0 %v6298
    %6425 = vmatprep.subr.bf16.mxu0 %v6297
    %6426 = vmatpush1.bf16.msra.mxu0 %v6296
    %6427 = vmatprep.subr.bf16.mxu0 %v6295
    %6428 = vmatpush1.bf16.msra.mxu0 %v6294
    %6429 = vmatprep.subr.bf16.mxu0 %v6293
    %6430 = vmatpush1.bf16.msra.mxu0 %v6292
    %6431 = vmatprep.subr.bf16.mxu0 %v6291
    %6432 = vmatpush1.bf16.msra.mxu0 %v6290
    %6433 = vmatprep.subr.bf16.mxu0 %v6289
    %6434 = vmatpush1.bf16.msra.mxu0 %v6288
    %6435 = vmatprep.subr.bf16.mxu0 %v6287
    %6436 = vmatpush1.bf16.msra.mxu0 %v6286
    %6437 = vmatprep.subr.bf16.mxu0 %v6285
    %6438 = vmatpush1.bf16.msra.mxu0 %v6284
    %6439 = vmatprep.subr.bf16.mxu0 %v6315
    %6440 = vmatpush2.bf16.msra.mxu0 %v6314
    %6441 = vmatprep.subr.bf16.mxu0 %v6313
    %6442 = vmatpush2.bf16.msra.mxu0 %v6312
    %6443 = vmatprep.subr.bf16.mxu0 %v6311
    %6444 = vmatpush2.bf16.msra.mxu0 %v6310
    %6445 = vmatprep.subr.bf16.mxu0 %v6309
    %6446 = vmatpush2.bf16.msra.mxu0 %v6308
    %6447 = vmatprep.subr.bf16.mxu0 %v6307
    %6448 = vmatpush2.bf16.msra.mxu0 %v6306
    %6449 = vmatprep.subr.bf16.mxu0 %v6305
    %6450 = vmatpush2.bf16.msra.mxu0 %v6304
    %6451 = vmatprep.subr.bf16.mxu0 %v6303
    %6452 = vmatpush2.bf16.msra.mxu0 %v6302
    %6453 = vmatprep.subr.bf16.mxu0 %v6301
    %6454 = vmatpush2.bf16.msra.mxu0 %v6300
    %6455 = vmatprep.mubr.bf16.mxu0 %v5983
    %6456 = vmatmul.mubr.bf16.gmra.mxu0 %v5982
    %v6457 = vpop.f32.mrf.mxu0
    %v6458 = vadd.f32 %v6415, %v6457
    %v6459 = vpop.f32.mrf.mxu0
    %v6460 = vadd.f32 %v6417, %v6459
    %v6461 = vpop.f32.mrf.mxu0
    %v6462 = vadd.f32 %v6419, %v6461
    %v6463 = vpop.f32.mrf.mxu0
    %v6464 = vadd.f32 %v6421, %v6463
    %6465 = vdwg.mxu0
    %v6466 = vmax.f32 %v6458, 0.0
    %v6467 = vmax.f32 %v6460, 0.0
    %v6468 = vmax.f32 %v6462, 0.0
    %v6469 = vmax.f32 %v6464, 0.0
    %v6470 = vpack.c.bf16 %v6468, %v6466
    %v6471 = vpack.c.bf16 %v6469, %v6467
    %v6472 = vld [vmem:[#allocation11] sm:$0xf]
    %v6473 = vld [vmem:[#allocation11 + $0x4] sm:$0xf]
    %v6474 = vld [vmem:[#allocation11 + $0x8] sm:$0xf]
    %v6475 = vld [vmem:[#allocation11 + $0xc] sm:$0xf]
    %v6476 = vld [vmem:[#allocation11 + $0x10] sm:$0xf]
    %v6477 = vld [vmem:[#allocation11 + $0x14] sm:$0xf]
    %v6478 = vld [vmem:[#allocation11 + $0x18] sm:$0xf]
    %v6479 = vld [vmem:[#allocation11 + $0x1c] sm:$0xf]
    %v6480 = vld [vmem:[#allocation11 + $0x20] sm:$0xf]
    %v6481 = vld [vmem:[#allocation11 + $0x24] sm:$0xf]
    %v6482 = vld [vmem:[#allocation11 + $0x28] sm:$0xf]
    %v6483 = vld [vmem:[#allocation11 + $0x2c] sm:$0xf]
    %v6484 = vld [vmem:[#allocation11 + $0x30] sm:$0xf]
    %v6485 = vld [vmem:[#allocation11 + $0x34] sm:$0xf]
    %v6486 = vld [vmem:[#allocation11 + $0x38] sm:$0xf]
    %v6487 = vld [vmem:[#allocation11 + $0x3c] sm:$0xf]
    %v6488 = vld [vmem:[#allocation11 + $0x40] sm:$0xf]
    %v6489 = vld [vmem:[#allocation11 + $0x44] sm:$0xf]
    %v6490 = vld [vmem:[#allocation11 + $0x48] sm:$0xf]
    %v6491 = vld [vmem:[#allocation11 + $0x4c] sm:$0xf]
    %v6492 = vld [vmem:[#allocation11 + $0x50] sm:$0xf]
    %v6493 = vld [vmem:[#allocation11 + $0x54] sm:$0xf]
    %v6494 = vld [vmem:[#allocation11 + $0x58] sm:$0xf]
    %v6495 = vld [vmem:[#allocation11 + $0x5c] sm:$0xf]
    %v6496 = vld [vmem:[#allocation11 + $0x60] sm:$0xf]
    %v6497 = vld [vmem:[#allocation11 + $0x64] sm:$0xf]
    %v6498 = vld [vmem:[#allocation11 + $0x68] sm:$0xf]
    %v6499 = vld [vmem:[#allocation11 + $0x6c] sm:$0xf]
    %v6500 = vld [vmem:[#allocation11 + $0x70] sm:$0xf]
    %v6501 = vld [vmem:[#allocation11 + $0x74] sm:$0xf]
    %v6502 = vld [vmem:[#allocation11 + $0x78] sm:$0xf]
    %v6503 = vld [vmem:[#allocation11 + $0x7c] sm:$0xf]
    %v6504 = vld [vmem:[#allocation13] sm:$0x1]
    %v6506 = vlaneseq
    %v6507 = vshrl.u32 %v6506, 7
    %v6508 = vsub.s32 0, %v6507
    %v6509 = vrot.slane %v6504, %v6508
    %v6543 = vunpack.c.l.b16 %v6472
    %v6544 = vunpack.c.l.b16 %v6473
    %v6545 = vunpack.c.l.b16 %v6474
    %v6546 = vunpack.c.l.b16 %v6475
    %v6547 = vunpack.c.l.b16 %v6476
    %v6548 = vunpack.c.l.b16 %v6477
    %v6549 = vunpack.c.l.b16 %v6478
    %v6550 = vunpack.c.l.b16 %v6479
    %v6551 = vunpack.c.l.b16 %v6480
    %v6552 = vunpack.c.l.b16 %v6481
    %v6553 = vunpack.c.l.b16 %v6482
    %v6554 = vunpack.c.l.b16 %v6483
    %v6555 = vunpack.c.l.b16 %v6484
    %v6556 = vunpack.c.l.b16 %v6485
    %v6557 = vunpack.c.l.b16 %v6486
    %v6558 = vunpack.c.l.b16 %v6487
    %v6559 = vunpack.c.l.b16 %v6488
    %v6560 = vunpack.c.l.b16 %v6489
    %v6561 = vunpack.c.l.b16 %v6490
    %v6562 = vunpack.c.l.b16 %v6491
    %v6563 = vunpack.c.l.b16 %v6492
    %v6564 = vunpack.c.l.b16 %v6493
    %v6565 = vunpack.c.l.b16 %v6494
    %v6566 = vunpack.c.l.b16 %v6495
    %v6567 = vunpack.c.l.b16 %v6496
    %v6568 = vunpack.c.l.b16 %v6497
    %v6569 = vunpack.c.l.b16 %v6498
    %v6570 = vunpack.c.l.b16 %v6499
    %v6571 = vunpack.c.l.b16 %v6500
    %v6572 = vunpack.c.l.b16 %v6501
    %v6573 = vunpack.c.l.b16 %v6502
    %v6574 = vunpack.c.l.b16 %v6503
    %v6575 = vpack.c.b16 %v6544, %v6543
    %v6576 = vpack.c.b16 %v6546, %v6545
    %v6577 = vpack.c.b16 %v6548, %v6547
    %v6578 = vpack.c.b16 %v6550, %v6549
    %v6579 = vpack.c.b16 %v6552, %v6551
    %v6580 = vpack.c.b16 %v6554, %v6553
    %v6581 = vpack.c.b16 %v6556, %v6555
    %v6582 = vpack.c.b16 %v6558, %v6557
    %v6583 = vpack.c.b16 %v6560, %v6559
    %v6584 = vpack.c.b16 %v6562, %v6561
    %v6585 = vpack.c.b16 %v6564, %v6563
    %v6586 = vpack.c.b16 %v6566, %v6565
    %v6587 = vpack.c.b16 %v6568, %v6567
    %v6588 = vpack.c.b16 %v6570, %v6569
    %v6589 = vpack.c.b16 %v6572, %v6571
    %v6590 = vpack.c.b16 %v6574, %v6573
    %6607 = vmatprep.subr.bf16.mxu0 0
    %6608 = vmatpush1.bf16.msra.mxu0 %v6582
    %6609 = vmatprep.subr.bf16.mxu0 0
    %6610 = vmatpush1.bf16.msra.mxu0 %v6581
    %6611 = vmatprep.subr.bf16.mxu0 0
    %6612 = vmatpush1.bf16.msra.mxu0 %v6580
    %6613 = vmatprep.subr.bf16.mxu0 0
    %6614 = vmatpush1.bf16.msra.mxu0 %v6579
    %6615 = vmatprep.subr.bf16.mxu0 0
    %6616 = vmatpush1.bf16.msra.mxu0 %v6578
    %6617 = vmatprep.subr.bf16.mxu0 0
    %6618 = vmatpush1.bf16.msra.mxu0 %v6577
    %6619 = vmatprep.subr.bf16.mxu0 0
    %6620 = vmatpush1.bf16.msra.mxu0 %v6576
    %6621 = vmatprep.subr.bf16.mxu0 0
    %6622 = vmatpush1.bf16.msra.mxu0 %v6575
    %6623 = vmatprep.subr.bf16.mxu0 0
    %6624 = vmatpush2.bf16.msra.mxu0 %v6590
    %6625 = vmatprep.subr.bf16.mxu0 0
    %6626 = vmatpush2.bf16.msra.mxu0 %v6589
    %6627 = vmatprep.subr.bf16.mxu0 0
    %6628 = vmatpush2.bf16.msra.mxu0 %v6588
    %6629 = vmatprep.subr.bf16.mxu0 0
    %6630 = vmatpush2.bf16.msra.mxu0 %v6587
    %6631 = vmatprep.subr.bf16.mxu0 0
    %6632 = vmatpush2.bf16.msra.mxu0 %v6586
    %6633 = vmatprep.subr.bf16.mxu0 0
    %6634 = vmatpush2.bf16.msra.mxu0 %v6585
    %6635 = vmatprep.subr.bf16.mxu0 0
    %6636 = vmatpush2.bf16.msra.mxu0 %v6584
    %6637 = vmatprep.subr.bf16.mxu0 0
    %6638 = vmatpush2.bf16.msra.mxu0 %v6583
    %6639 = vmatprep.mubr.bf16.mxu0 %v6471
    %6640 = vmatmul.mubr.bf16.gmra.mxu0 %v6470
    %v6641 = vpop.f32.mrf.mxu0
    %v6642 = vadd.f32 %v6509, %v6641
    %v6643 = vpop.f32.mrf.mxu0
    %v6644 = vpop.f32.mrf.mxu0
    %v6645 = vadd.f32 %v6509, %v6644
    %v6646 = vpop.f32.mrf.mxu0
    %6647 = vdwg.mxu0
    %v6648 = vmax.f32 %v6642, 0.0
    %v6649 = vmax.f32 %v6645, 0.0
    %v6650 = vpack.c.bf16 %v6649, %v6648
    %v6651 = vld [vmem:[%s7] sm:$0xf]
    %v6652 = vld [vmem:[%s7 + $0x4] sm:$0xf]
    %v6653 = vld [vmem:[%s7 + $0x8] sm:$0xf]
    %v6654 = vld [vmem:[%s7 + $0xc] sm:$0xf]
    %v6655 = vld [vmem:[%s7 + $0x10] sm:$0xf]
    %v6656 = vld [vmem:[%s7 + $0x14] sm:$0xf]
    %v6657 = vld [vmem:[%s7 + $0x18] sm:$0xf]
    %v6658 = vld [vmem:[%s7 + $0x1c] sm:$0xf]
    %v6659 = vld [vmem:[%s7 + $0x20] sm:$0xf]
    %v6660 = vld [vmem:[%s7 + $0x24] sm:$0xf]
    %v6661 = vld [vmem:[%s7 + $0x28] sm:$0xf]
    %v6662 = vld [vmem:[%s7 + $0x2c] sm:$0xf]
    %v6663 = vld [vmem:[%s7 + $0x30] sm:$0xf]
    %v6664 = vld [vmem:[%s7 + $0x34] sm:$0xf]
    %v6665 = vld [vmem:[%s7 + $0x38] sm:$0xf]
    %v6666 = vld [vmem:[%s7 + $0x3c] sm:$0xf]
    %v6667 = vld [vmem:[#allocation14] sm:$0x1]
    %v6669 = vlaneseq
    %v6670 = vshrl.u32 %v6669, 7
    %v6671 = vsub.s32 0, %v6670
    %v6672 = vrot.slane %v6667, %v6671
    %v6690 = vunpack.c.l.b16 %v6651
    %v6691 = vunpack.c.l.b16 %v6652
    %v6692 = vunpack.c.l.b16 %v6653
    %v6693 = vunpack.c.l.b16 %v6654
    %v6694 = vunpack.c.l.b16 %v6655
    %v6695 = vunpack.c.l.b16 %v6656
    %v6696 = vunpack.c.l.b16 %v6657
    %v6697 = vunpack.c.l.b16 %v6658
    %v6698 = vunpack.c.l.b16 %v6659
    %v6699 = vunpack.c.l.b16 %v6660
    %v6700 = vunpack.c.l.b16 %v6661
    %v6701 = vunpack.c.l.b16 %v6662
    %v6702 = vunpack.c.l.b16 %v6663
    %v6703 = vunpack.c.l.b16 %v6664
    %v6704 = vunpack.c.l.b16 %v6665
    %v6705 = vunpack.c.l.b16 %v6666
    %v6706 = vpack.c.b16 %v6691, %v6690
    %v6707 = vpack.c.b16 %v6693, %v6692
    %v6708 = vpack.c.b16 %v6695, %v6694
    %v6709 = vpack.c.b16 %v6697, %v6696
    %v6710 = vpack.c.b16 %v6699, %v6698
    %v6711 = vpack.c.b16 %v6701, %v6700
    %v6712 = vpack.c.b16 %v6703, %v6702
    %v6713 = vpack.c.b16 %v6705, %v6704
    %6722 = vmatprep.subr.bf16.mxu0 0
    %6723 = vmatpush1.bf16.msra.mxu0 %v6713
    %6724 = vmatprep.subr.bf16.mxu0 0
    %6725 = vmatpush1.bf16.msra.mxu0 %v6712
    %6726 = vmatprep.subr.bf16.mxu0 0
    %6727 = vmatpush1.bf16.msra.mxu0 %v6711
    %6728 = vmatprep.subr.bf16.mxu0 0
    %6729 = vmatpush1.bf16.msra.mxu0 %v6710
    %6730 = vmatprep.subr.bf16.mxu0 0
    %6731 = vmatpush1.bf16.msra.mxu0 %v6709
    %6732 = vmatprep.subr.bf16.mxu0 0
    %6733 = vmatpush1.bf16.msra.mxu0 %v6708
    %6734 = vmatprep.subr.bf16.mxu0 0
    %6735 = vmatpush1.bf16.msra.mxu0 %v6707
    %6736 = vmatprep.subr.bf16.mxu0 0
    %6737 = vmatpush1.bf16.msra.mxu0 %v6706
    %6738 = vmatprep.subr.bf16.mxu0 0
    %6739 = vmatpush2.bf16.msra.mxu0 0
    %6740 = vmatprep.subr.bf16.mxu0 0
    %6741 = vmatpush2.bf16.msra.mxu0 0
    %6742 = vmatprep.subr.bf16.mxu0 0
    %6743 = vmatpush2.bf16.msra.mxu0 0
    %6744 = vmatprep.subr.bf16.mxu0 0
    %6745 = vmatpush2.bf16.msra.mxu0 0
    %6746 = vmatprep.subr.bf16.mxu0 0
    %6747 = vmatpush2.bf16.msra.mxu0 0
    %6748 = vmatprep.subr.bf16.mxu0 0
    %6749 = vmatpush2.bf16.msra.mxu0 0
    %6750 = vmatprep.subr.bf16.mxu0 0
    %6751 = vmatpush2.bf16.msra.mxu0 0
    %6752 = vmatprep.subr.bf16.mxu0 0
    %6753 = vmatpush2.bf16.msra.mxu0 0
    %6754 = vmatprep.mubr.bf16.mxu0 0
    %6755 = vmatmul.mubr.bf16.gmra.mxu0 %v6650
    %v6756 = vpop.f32.mrf.mxu0
    %v6757 = vadd.f32 %v6672, %v6756
    %v6758 = vpop.f32.mrf.mxu0
    %v6759 = vpop.f32.mrf.mxu0
    %v6760 = vadd.f32 %v6672, %v6759
    %v6761 = vpop.f32.mrf.mxu0
    %6762 = vdwg.mxu0
    %v6763 = vmax.f32 %v6757, 0.0
    %v6764 = vmax.f32 %v6760, 0.0
    %v6765 = vpack.c.bf16 %v6764, %v6763
    %v6766 = vld [vmem:[#allocation16] sm:$0xf]
    %v6767 = vld [vmem:[#allocation16 + $0x4] sm:$0xf]
    %v6768 = vld [vmem:[#allocation16 + $0x8] sm:$0xf]
    %v6769 = vld [vmem:[#allocation16 + $0xc] sm:$0xf]
    %v6770 = vld [vmem:[#allocation16 + $0x10] sm:$0xf]
    %v6771 = vld [vmem:[#allocation16 + $0x14] sm:$0xf]
    %v6772 = vld [vmem:[#allocation16 + $0x18] sm:$0xf]
    %v6773 = vld [vmem:[#allocation16 + $0x1c] sm:$0xf]
    %v6774 = vld [vmem:[#allocation17] sm:$0x1]
    %v6776 = vlaneseq
    %v6777 = vshrl.u32 %v6776, 7
    %v6778 = vsub.s32 0, %v6777
    %v6779 = vrot.slane %v6774, %v6778
    %v6789 = vunpack.c.l.b16 %v6766
    %v6790 = vunpack.c.l.b16 %v6767
    %v6791 = vunpack.c.l.b16 %v6768
    %v6792 = vunpack.c.l.b16 %v6769
    %v6793 = vunpack.c.l.b16 %v6770
    %v6794 = vunpack.c.l.b16 %v6771
    %v6795 = vunpack.c.l.b16 %v6772
    %v6796 = vunpack.c.l.b16 %v6773
    %v6797 = vpack.c.b16 %v6790, %v6789
    %v6798 = vpack.c.b16 %v6792, %v6791
    %v6799 = vpack.c.b16 %v6794, %v6793
    %v6800 = vpack.c.b16 %v6796, %v6795
    %vm6805 = vcmask 523264
    %v6807 = vsel %vm6805, %v6765, 0
    %6809 = vmatprep.subr.bf16.mxu0 0
    %6810 = vmatpush1.bf16.msra.mxu0 0
    %6811 = vmatprep.subr.bf16.mxu0 0
    %6812 = vmatpush1.bf16.msra.mxu0 0
    %6813 = vmatprep.subr.bf16.mxu0 0
    %6814 = vmatpush1.bf16.msra.mxu0 0
    %6815 = vmatprep.subr.bf16.mxu0 0
    %6816 = vmatpush1.bf16.msra.mxu0 0
    %6817 = vmatprep.subr.bf16.mxu0 0
    %6818 = vmatpush1.bf16.msra.mxu0 %v6800
    %6819 = vmatprep.subr.bf16.mxu0 0
    %6820 = vmatpush1.bf16.msra.mxu0 %v6799
    %6821 = vmatprep.subr.bf16.mxu0 0
    %6822 = vmatpush1.bf16.msra.mxu0 %v6798
    %6823 = vmatprep.subr.bf16.mxu0 0
    %6824 = vmatpush1.bf16.msra.mxu0 %v6797
    %6825 = vmatprep.subr.bf16.mxu0 0
    %6826 = vmatpush2.bf16.msra.mxu0 0
    %6827 = vmatprep.subr.bf16.mxu0 0
    %6828 = vmatpush2.bf16.msra.mxu0 0
    %6829 = vmatprep.subr.bf16.mxu0 0
    %6830 = vmatpush2.bf16.msra.mxu0 0
    %6831 = vmatprep.subr.bf16.mxu0 0
    %6832 = vmatpush2.bf16.msra.mxu0 0
    %6833 = vmatprep.subr.bf16.mxu0 0
    %6834 = vmatpush2.bf16.msra.mxu0 0
    %6835 = vmatprep.subr.bf16.mxu0 0
    %6836 = vmatpush2.bf16.msra.mxu0 0
    %6837 = vmatprep.subr.bf16.mxu0 0
    %6838 = vmatpush2.bf16.msra.mxu0 0
    %6839 = vmatprep.subr.bf16.mxu0 0
    %6840 = vmatpush2.bf16.msra.mxu0 0
    %6841 = vmatprep.mubr.bf16.mxu0 0
    %6842 = vmatmul.mubr.bf16.gmra.mxu0 %v6807
    %v6843 = vpop.f32.mrf.mxu0
    %v6844 = vadd.f32 %v6779, %v6843
    %v6845 = vpop.f32.mrf.mxu0
    %v6846 = vpop.f32.mrf.mxu0
    %v6847 = vadd.f32 %v6779, %v6846
    %v6848 = vpop.f32.mrf.mxu0
    %6849 = vdwg.mxu0
    %6850 = vmax.xlane.f32.xlu0 %v6844
    %v6851 = vpop.xlane.xlu0 %6850
    %6852 = vmax.xlane.f32.xlu0 %v6847
    %v6853 = vpop.xlane.xlu0 %6852
    %v6854 = vsub.f32 %v6844, %v6851
    %v6855 = vsub.f32 %v6847, %v6853
    %v6856 = vmul.f32 %v6854, 1.442695
    %v6857 = vpow.pop %v6856
    %v6858 = vmul.f32 %v6855, 1.442695
    %v6859 = vpow.pop %v6858
    %6860 = vadd.xlane.f32.xlu0 %v6857
    %v6861 = vpop.xlane.xlu0 %6860
    %6862 = vadd.xlane.f32.xlu0 %v6859
    %v6863 = vpop.xlane.xlu0 %6862
    %v6864 = vlog2.pop %v6861
    %v6865 = vmul.f32 %v6864, 0.6931472
    %v6866 = vlog2.pop %v6863
    %v6867 = vmul.f32 %v6866, 0.6931472
    %v6868 = vsub.f32 %v6854, %v6865
    %v6869 = vsub.f32 %v6855, %v6867
    %6870 = vst [vmem:[#allocation19] sm:$0xff] %v6868
    %6871 = vst [vmem:[#allocation19 + $0x8] sm:$0xff] %v6869
    // Predicated region
    $region86: #{tpu_custom_call.1} parent=1 // pred_check
      _
    $region87: #{tpu_custom_call.1} parent=1 // pred_check_branch
      %6873 = sbr.rel (0) target = $region89
    $region88: #{tpu_custom_call.1} parent=1 // pred_region
      %s6875 = ssub.s32 256, 256
      %6876 = vsyncadd [#allocation4], %s6875
      %s6877 = sshll.u32 [#allocation19], 4
      %s6878 = int_to_ptr.vmem [resolvable:$true] %s6877
      %6883 = dma.vmem_to_hbm [thread:$0]  %s6878, 256, %s11, [#allocation4], 128, 128, 8
    $region89: #{tpu_custom_call.1} parent=1 // pred_fallthru
      _
    // Predicated region
    $region90: #{tpu_custom_call.1} parent=1 // pred_check
      _
    $region91: #{tpu_custom_call.1} parent=1 // pred_check_branch
      %6885 = sbr.rel (0) target = $region93
    $region92: #{tpu_custom_call.1} parent=1 // pred_region
      %6886 = dma.done [#allocation4], 256
    $region93: #{tpu_custom_call.1} parent=1 // pred_fallthru
      _
    %6887 = vsyncpa [#allocation3], 1
    %6888 = vsyncpa [#allocation6], 1
    %6889 = vsyncpa [#allocation9], 1
    %6890 = vsyncpa [#allocation12], 1
    %6891 = vsyncpa [#allocation15], 1
    %6892 = vsyncpa [#allocation18], 1
    %6893 = vsyncpa [#allocation4], 1

</llo_original>
